<compile_context>
chip_gen: v5e
topology: v5e:2x2
jax: 0.10.0
libtpu: 0.0.40
codegen_flags: <defaults>
</compile_context>

<pallas_src>
import numpy as np

import jax
import jax.numpy as jnp
from jax import lax
from jax.experimental import pallas as pl
from jax.experimental.pallas import tpu as pltpu


BT = 8  # images per grid step (multiple of 8 -> all sublane slices stay tile-aligned)


# ---------------------------------------------------------------------------
# Host-side weight repacking (one-time, outside the per-call path)
# ---------------------------------------------------------------------------
def _banded_pool_weight(w_oihw, in_w, *, k_pad=None, half=128):
    """Per-row-tap banded conv weights, even/odd output-W columns in lane halves.

    out[i, wpos*I + ci, (p%2)*half + (p//2)*O + co] = w[co, ci, i, wpos - p]
    so that (row-tap slice [M, in_w*I]) @ out[i] accumulates all output columns,
    with even W positions in lanes [0, half) and odd in [half, 2*half) — the 2x2
    max-pool W direction becomes max(acc[:, :half], acc[:, half:]).
    """
    O, I, KH, KW = w_oihw.shape
    ow = in_w - KW + 1
    assert ow % 2 == 0 and (ow // 2) * O <= half
    K = in_w * I if k_pad is None else k_pad
    assert K >= in_w * I
    out = np.zeros((KH, K, 2 * half), np.float32)
    for i in range(KH):
        for p in range(ow):
            col = (p % 2) * half + (p // 2) * O
            for j in range(KW):
                out[i, (p + j) * I:(p + j + 1) * I, col:col + O] = w_oihw[:, :, i, j].T
    return out


def _banded_weight(w_oihw, in_w, *, k_pad=None):
    """Per-row-tap banded conv weights, no pooling: out lane = p*O + co."""
    O, I, KH, KW = w_oihw.shape
    ow = in_w - KW + 1
    K = in_w * I if k_pad is None else k_pad
    assert K >= in_w * I
    out = np.zeros((KH, K, ow * O), np.float32)
    for i in range(KH):
        for p in range(ow):
            for j in range(KW):
                out[i, (p + j) * I:(p + j + 1) * I, p * O:(p + 1) * O] = w_oihw[:, :, i, j].T
    return out


def _pool_select_pad(bt, oh, row_pad, parity):
    """[bt*row_pad, bt*oh]: output row b*row_pad + s picks input row b*oh + 2s + parity.

    row_pad >= oh//2; extra rows are all-zero so the pooled activation gets an
    8-aligned per-image row count (tile-friendly reshape to (bt, row_pad, 128)).
    """
    m = np.zeros((bt * row_pad, bt * oh), np.float32)
    for b in range(bt):
        for s in range(oh // 2):
            m[b * row_pad + s, b * oh + 2 * s + parity] = 1.0
    return m


def _pool_select_rows(bt, oh, parity):
    """[(oh//2)*bt, bt*oh]: output row s*bt + b picks input row b*oh + 2s + parity.

    Groups the pooled rows by spatial row s, so per-s (bt, 128) blocks are
    bt-aligned static sublane slices of the result.
    """
    m = np.zeros(((oh // 2) * bt, bt * oh), np.float32)
    for s in range(oh // 2):
        for b in range(bt):
            m[s * bt + b, b * oh + 2 * s + parity] = 1.0
    return m


def prepare_params(p, bt=BT):
    assert bt % 8 == 0
    c1w = np.asarray(p["conv1_w"], np.float32)   # [8, 1, 5, 5]
    c2w = np.asarray(p["conv2_w"], np.float32)   # [16, 8, 5, 5]
    c3w = np.asarray(p["conv3_w"], np.float32)   # [32, 16, 3, 3]
    f1w = np.asarray(p["fc1_w"], np.float32)     # [32, 128]
    f2w = np.asarray(p["fc2_w"], np.float32)     # [16, 32]
    f3w = np.asarray(p["fc3_w"], np.float32)     # [10, 16]
    c1b = np.asarray(p["conv1_b"], np.float32)
    c2b = np.asarray(p["conv2_b"], np.float32)
    c3b = np.asarray(p["conv3_b"], np.float32)
    f1b = np.asarray(p["fc1_b"], np.float32)
    f2b = np.asarray(p["fc2_b"], np.float32)
    f3b = np.asarray(p["fc3_b"], np.float32)

    # Banded row-tap conv weights (even/odd W-pool columns in 128-lane halves).
    w1 = _banded_pool_weight(c1w, in_w=28)                 # [5, 28, 256]
    w2 = _banded_pool_weight(c2w, in_w=12, k_pad=128)      # [5, 128, 256]
    w3 = _banded_weight(c3w, in_w=4, k_pad=128)            # [3, 128, 64]

    # Per-lane bias vectors (pad lanes are zero -> stay zero through max/relu).
    b1 = np.zeros((1, 128), np.float32); b1[0, :96] = np.tile(c1b, 12)
    b2 = np.zeros((1, 128), np.float32); b2[0, :64] = np.tile(c2b, 4)
    b3 = np.tile(c3b, 2).reshape(1, 64)

    # H-pool row-selection matrices (hoisted out of the kernel).
    pe1 = _pool_select_pad(bt, oh=24, row_pad=16, parity=0)   # [bt*16, bt*24]
    po1 = _pool_select_pad(bt, oh=24, row_pad=16, parity=1)
    pe2 = _pool_select_rows(bt, oh=8, parity=0)               # [4*bt, bt*8]
    po2 = _pool_select_rows(bt, oh=8, parity=1)

    # fc1 with the PyTorch NCHW flatten order folded into the packing.
    f1 = f1w.reshape(32, 32, 2, 2)                            # [o, c, h, w]
    wf1a = f1[:, :, 0, :].transpose(2, 1, 0).reshape(64, 32).copy()
    wf1b = f1[:, :, 1, :].transpose(2, 1, 0).reshape(64, 32).copy()

    # fc3 padded to 128 output lanes -> dense (BT, 128) writeback.
    wf3 = np.zeros((16, 128), np.float32); wf3[:, :10] = f3w.T
    bf3 = np.zeros((1, 128), np.float32); bf3[0, :10] = f3b

    prep = {
        "w1": w1, "pe1": pe1, "po1": po1, "b1": b1,
        "w2": w2, "pe2": pe2, "po2": po2, "b2": b2,
        "w3": w3, "b3": b3,
        "wf1a": wf1a, "wf1b": wf1b, "bf1": f1b.reshape(1, 32),
        "wf2": f2w.T.copy(), "bf2": f2b.reshape(1, 16),
        "wf3": wf3, "bf3": bf3,
    }
    return {k: jnp.asarray(v) for k, v in prep.items()}


_WEIGHT_ORDER = ["w1", "pe1", "po1", "b1",
                 "w2", "pe2", "po2", "b2",
                 "w3", "b3",
                 "wf1a", "wf1b", "bf1", "wf2", "bf2", "wf3", "bf3"]


# ---------------------------------------------------------------------------
# Fused whole-network kernel (one grid step == BT images)
# ---------------------------------------------------------------------------
def _convnet_kernel(x_ref, w1_ref, pe1_ref, po1_ref, b1_ref,
                    w2_ref, pe2_ref, po2_ref, b2_ref,
                    w3_ref, b3_ref,
                    wf1a_ref, wf1b_ref, bf1_ref,
                    wf2_ref, bf2_ref, wf3_ref, bf3_ref,
                    o_ref, a1_ref):
    bt = x_ref.shape[0]
    f32 = jnp.float32

    # ---- conv1 (5x5, 1->8) + 2x2 pool ------------------------------------
    acc1 = jnp.zeros((bt * 24, 256), f32)
    for i in range(5):                                       # 5 row-tap dots
        s = x_ref[:, i:i + 24, :].reshape(bt * 24, 28)
        acc1 = acc1 + jnp.dot(s, w1_ref[i], preferred_element_type=f32)
    hw1 = jnp.maximum(acc1[:, :128], acc1[:, 128:])          # W-pool (lane halves)
    p1 = jnp.maximum(jnp.dot(pe1_ref[...], hw1, preferred_element_type=f32),
                     jnp.dot(po1_ref[...], hw1, preferred_element_type=f32))
    a1 = jnp.maximum(p1 + b1_ref[...], 0.0)                  # [bt*16, 128] (12 real rows/img)
    a1_ref[...] = a1.reshape(bt, 16, 128)

    # ---- conv2 (5x5, 8->16) + 2x2 pool ------------------------------------
    acc2 = jnp.zeros((bt * 8, 256), f32)
    for i in range(5):
        s = a1_ref[:, i:i + 8, :].reshape(bt * 8, 128)
        acc2 = acc2 + jnp.dot(s, w2_ref[i], preferred_element_type=f32)
    hw2 = jnp.maximum(acc2[:, :128], acc2[:, 128:])          # [bt*8, 128]
    p2 = jnp.maximum(jnp.dot(pe2_ref[...], hw2, preferred_element_type=f32),
                     jnp.dot(po2_ref[...], hw2, preferred_element_type=f32))
    a2 = jnp.maximum(p2 + b2_ref[...], 0.0)                  # [4*bt, 128], row = s*bt + b

    # ---- conv3 (3x3, 16->32), output rows 0/1 kept separate ---------------
    r = [a2[s * bt:(s + 1) * bt, :] for s in range(4)]       # bt-aligned sublane slices
    c0 = jnp.zeros((bt, 64), f32)
    c1 = jnp.zeros((bt, 64), f32)
    for i in range(3):
        c0 = c0 + jnp.dot(r[i], w3_ref[i], preferred_element_type=f32)
        c1 = c1 + jnp.dot(r[i + 1], w3_ref[i], preferred_element_type=f32)
    c0 = jnp.maximum(c0 + b3_ref[...], 0.0)                  # [bt, 64]
    c1 = jnp.maximum(c1 + b3_ref[...], 0.0)

    # ---- fc1 / fc2 / fc3 (NCHW flatten folded into wf1a / wf1b) -----------
    h = jnp.dot(c0, wf1a_ref[...], preferred_element_type=f32)
    h = h + jnp.dot(c1, wf1b_ref[...], preferred_element_type=f32)
    h = jnp.maximum(h + bf1_ref[...], 0.0)                   # [bt, 32]
    h = jnp.maximum(jnp.dot(h, wf2_ref[...], preferred_element_type=f32)
                    + bf2_ref[...], 0.0)                     # [bt, 16]
    o_ref[...] = (jnp.dot(h, wf3_ref[...], preferred_element_type=f32)
                  + bf3_ref[...])                            # [bt, 128] lane-dense write


# ---------------------------------------------------------------------------
# Forward pass (single fused pallas_call)
# ---------------------------------------------------------------------------
def convnet_forward(prep, x_nchw, *, bt=BT):
    B = x_nchw.shape[0]
    x = x_nchw.reshape(B, 28, 28).astype(jnp.float32)        # C=1 -> [B, H, W]
    bp = ((B + bt - 1) // bt) * bt
    if bp != B:
        x = jnp.pad(x, ((0, bp - B), (0, 0), (0, 0)))

    def _const_spec(arr):
        nd = arr.ndim
        return pl.BlockSpec(arr.shape, lambda b, _nd=nd: (0,) * _nd)

    in_specs = [pl.BlockSpec((bt, 28, 28), lambda b: (b, 0, 0))]
    in_specs += [_const_spec(prep[n]) for n in _WEIGHT_ORDER]

    out = pl.pallas_call(
        _convnet_kernel,
        out_shape=jax.ShapeDtypeStruct((bp, 128), jnp.float32),
        grid=(bp // bt,),
        in_specs=in_specs,
        out_specs=pl.BlockSpec((bt, 128), lambda b: (b, 0)),
        scratch_shapes=[pltpu.VMEM((bt, 16, 128), jnp.float32)],
        compiler_params=pltpu.CompilerParams(
            dimension_semantics=("parallel",),
            vmem_limit_bytes=32 * 1024 * 1024,
        ),
    )(x, *[prep[n] for n in _WEIGHT_ORDER])
    return out[:B, :10]


# ---------------------------------------------------------------------------
# Parameters (deterministic, PyTorch-like uniform(-1/sqrt(fan_in), +))
# ---------------------------------------------------------------------------
def init_params(key):
    ks = jax.random.split(key, 12)

    def u(k, shape, fan_in):
        bound = 1.0 / float(fan_in) ** 0.5
        return jax.random.uniform(k, shape, jnp.float32, -bound, bound)

    return {
        "conv1_w": u(ks[0], (8, 1, 5, 5), 1 * 5 * 5),
        "conv1_b": u(ks[1], (8,), 1 * 5 * 5),
        "conv2_w": u(ks[2], (16, 8, 5, 5), 8 * 5 * 5),
        "conv2_b": u(ks[3], (16,), 8 * 5 * 5),
        "conv3_w": u(ks[4], (32, 16, 3, 3), 16 * 3 * 3),
        "conv3_b": u(ks[5], (32,), 16 * 3 * 3),
        "fc1_w": u(ks[6], (32, 128), 128),   # PyTorch Linear: [out, in]
        "fc1_b": u(ks[7], (32,), 128),
        "fc2_w": u(ks[8], (16, 32), 32),
        "fc2_b": u(ks[9], (16,), 32),
        "fc3_w": u(ks[10], (10, 16), 16),
        "fc3_b": u(ks[11], (10,), 16),
    }


# ---------------------------------------------------------------------------
# Pure-JAX reference (sanity check against the fused kernel)
# ---------------------------------------------------------------------------
def reference_forward(params, x_nchw):
    def conv(x, w, b):
        y = lax.conv_general_dilated(
            x, w, (1, 1), "VALID",
            dimension_numbers=("NCHW", "OIHW", "NCHW"),
            precision=lax.Precision.HIGHEST)
        return y + b.reshape(1, -1, 1, 1)

    def pool(x):
        return jnp.maximum(
            jnp.maximum(x[:, :, 0::2, 0::2], x[:, :, 0::2, 1::2]),
            jnp.maximum(x[:, :, 1::2, 0::2], x[:, :, 1::2, 1::2]))

    x = jax.nn.relu(conv(x_nchw, params["conv1_w"], params["conv1_b"]))
    x = pool(x)
    x = jax.nn.relu(conv(x, params["conv2_w"], params["conv2_b"]))
    x = pool(x)
    x = jax.nn.relu(conv(x, params["conv3_w"], params["conv3_b"]))
    flat = x.reshape(x.shape[0], -1)                     # NCHW flatten -> [B, 128]
    h = jax.nn.relu(jnp.dot(flat, params["fc1_w"].T, precision=lax.Precision.HIGHEST)
                    + params["fc1_b"])
    h = jax.nn.relu(jnp.dot(h, params["fc2_w"].T, precision=lax.Precision.HIGHEST)
                    + params["fc2_b"])
    return jnp.dot(h, params["fc3_w"].T, precision=lax.Precision.HIGHEST) + params["fc3_b"]


if __name__ == "__main__":
    key = jax.random.PRNGKey(0)
    k_param, k_x = jax.random.split(key)
    params = init_params(k_param)
    prep = prepare_params(params)      # one-time host-side weight repacking
    # fc1 expects 128 = 32*2*2 features -> input spatial must be 28x28 (MNIST-like).
    # B=16 with BT=8 -> grid of 2 (keeps both v7x TensorCores busy).
    x = jax.random.normal(k_x, (16, 1, 28, 28), jnp.float32)

    out = jax.jit(convnet_forward)(prep, x)
    out = jax.block_until_ready(out)
    assert out.shape == (16, 10) and out.dtype == jnp.float32

    ref = reference_forward(params, x)
    assert bool(jnp.allclose(out, ref, rtol=5e-2, atol=5e-2)), "mismatch vs reference"

    print("KERNEL_OK")
</pallas_src>

<mosaic_0001>
module attributes {stable_mosaic.version = 11 : i64} {
  func.func @_convnet_kernel(%arg0: i32, %arg1: memref<8x28x28xf32, #tpu.memory_space<vmem>>, %arg2: memref<5x28x256xf32, #tpu.memory_space<vmem>>, %arg3: memref<128x192xf32, #tpu.memory_space<vmem>>, %arg4: memref<128x192xf32, #tpu.memory_space<vmem>>, %arg5: memref<1x128xf32, #tpu.memory_space<vmem>>, %arg6: memref<5x128x256xf32, #tpu.memory_space<vmem>>, %arg7: memref<32x64xf32, #tpu.memory_space<vmem>>, %arg8: memref<32x64xf32, #tpu.memory_space<vmem>>, %arg9: memref<1x128xf32, #tpu.memory_space<vmem>>, %arg10: memref<3x128x64xf32, #tpu.memory_space<vmem>>, %arg11: memref<1x64xf32, #tpu.memory_space<vmem>>, %arg12: memref<64x32xf32, #tpu.memory_space<vmem>>, %arg13: memref<64x32xf32, #tpu.memory_space<vmem>>, %arg14: memref<1x32xf32, #tpu.memory_space<vmem>>, %arg15: memref<32x16xf32, #tpu.memory_space<vmem>>, %arg16: memref<1x16xf32, #tpu.memory_space<vmem>>, %arg17: memref<16x128xf32, #tpu.memory_space<vmem>>, %arg18: memref<1x128xf32, #tpu.memory_space<vmem>>, %arg19: memref<8x128xf32, #tpu.memory_space<vmem>>, %arg20: memref<8x16x128xf32, #tpu.memory_space<vmem>>) attributes {dimension_semantics = [#tpu.dimension_semantics<parallel>], iteration_bounds = array<i64: 2>, scalar_prefetch = 0 : i64, scratch_operands = 1 : i64, tpu.core_type = #tpu.core_type<tc>, window_params = [{transform_indices = @transform_0, window_bounds = array<i64: 8, 28, 28>}, {pipeline_mode = #tpu.pipeline_mode<synchronous>, transform_indices = @transform_1, window_bounds = array<i64: 5, 28, 256>}, {pipeline_mode = #tpu.pipeline_mode<synchronous>, transform_indices = @transform_2, window_bounds = array<i64: 128, 192>}, {pipeline_mode = #tpu.pipeline_mode<synchronous>, transform_indices = @transform_3, window_bounds = array<i64: 128, 192>}, {pipeline_mode = #tpu.pipeline_mode<synchronous>, transform_indices = @transform_4, window_bounds = array<i64: 1, 128>}, {pipeline_mode = #tpu.pipeline_mode<synchronous>, transform_indices = @transform_5, window_bounds = array<i64: 5, 128, 256>}, {pipeline_mode = #tpu.pipeline_mode<synchronous>, transform_indices = @transform_6, window_bounds = array<i64: 32, 64>}, {pipeline_mode = #tpu.pipeline_mode<synchronous>, transform_indices = @transform_7, window_bounds = array<i64: 32, 64>}, {pipeline_mode = #tpu.pipeline_mode<synchronous>, transform_indices = @transform_8, window_bounds = array<i64: 1, 128>}, {pipeline_mode = #tpu.pipeline_mode<synchronous>, transform_indices = @transform_9, window_bounds = array<i64: 3, 128, 64>}, {pipeline_mode = #tpu.pipeline_mode<synchronous>, transform_indices = @transform_10, window_bounds = array<i64: 1, 64>}, {pipeline_mode = #tpu.pipeline_mode<synchronous>, transform_indices = @transform_11, window_bounds = array<i64: 64, 32>}, {pipeline_mode = #tpu.pipeline_mode<synchronous>, transform_indices = @transform_12, window_bounds = array<i64: 64, 32>}, {pipeline_mode = #tpu.pipeline_mode<synchronous>, transform_indices = @transform_13, window_bounds = array<i64: 1, 32>}, {pipeline_mode = #tpu.pipeline_mode<synchronous>, transform_indices = @transform_14, window_bounds = array<i64: 32, 16>}, {pipeline_mode = #tpu.pipeline_mode<synchronous>, transform_indices = @transform_15, window_bounds = array<i64: 1, 16>}, {pipeline_mode = #tpu.pipeline_mode<synchronous>, transform_indices = @transform_16, window_bounds = array<i64: 16, 128>}, {pipeline_mode = #tpu.pipeline_mode<synchronous>, transform_indices = @transform_17, window_bounds = array<i64: 1, 128>}, {transform_indices = @transform_18, window_bounds = array<i64: 8, 128>}]} {
    %cst = arith.constant 0.000000e+00 : f32
    %0 = vector.broadcast %cst : f32 to vector<192x256xf32>
    %c0 = arith.constant 0 : index
    %c0_0 = arith.constant 0 : index
    %c0_1 = arith.constant 0 : index
    %1 = vector.load %arg1[%c0, %c0_0, %c0_1] : memref<8x28x28xf32, #tpu.memory_space<vmem>>, vector<8x24x28xf32>
    %2 = vector.shape_cast %1 : vector<8x24x28xf32> to vector<192x28xf32>
    %c0_2 = arith.constant 0 : index
    %c0_3 = arith.constant 0 : index
    %c0_4 = arith.constant 0 : index
    %3 = vector.load %arg2[%c0_2, %c0_3, %c0_4] : memref<5x28x256xf32, #tpu.memory_space<vmem>>, vector<1x28x256xf32>
    %4 = vector.shape_cast %3 : vector<1x28x256xf32> to vector<28x256xf32>
    %cst_5 = arith.constant dense<0.000000e+00> : vector<192x256xf32>
    %5 = tpu.matmul %2, %4, %cst_5 {dimension_numbers = #tpu.dot_dimension_numbers<[1], [0], [0], [1], [0, 0, 1, 1], [], []>} : vector<192x28xf32>, vector<28x256xf32>, vector<192x256xf32> -> vector<192x256xf32>
    %6 = arith.addf %0, %5 : vector<192x256xf32>
    %c0_6 = arith.constant 0 : index
    %c1 = arith.constant 1 : index
    %c0_7 = arith.constant 0 : index
    %7 = vector.load %arg1[%c0_6, %c1, %c0_7] : memref<8x28x28xf32, #tpu.memory_space<vmem>>, vector<8x24x28xf32>
    %8 = vector.shape_cast %7 : vector<8x24x28xf32> to vector<192x28xf32>
    %c1_8 = arith.constant 1 : index
    %c0_9 = arith.constant 0 : index
    %c0_10 = arith.constant 0 : index
    %9 = vector.load %arg2[%c1_8, %c0_9, %c0_10] : memref<5x28x256xf32, #tpu.memory_space<vmem>>, vector<1x28x256xf32>
    %10 = vector.shape_cast %9 : vector<1x28x256xf32> to vector<28x256xf32>
    %cst_11 = arith.constant dense<0.000000e+00> : vector<192x256xf32>
    %11 = tpu.matmul %8, %10, %cst_11 {dimension_numbers = #tpu.dot_dimension_numbers<[1], [0], [0], [1], [0, 0, 1, 1], [], []>} : vector<192x28xf32>, vector<28x256xf32>, vector<192x256xf32> -> vector<192x256xf32>
    %12 = arith.addf %6, %11 : vector<192x256xf32>
    %c0_12 = arith.constant 0 : index
    %c2 = arith.constant 2 : index
    %c0_13 = arith.constant 0 : index
    %13 = vector.load %arg1[%c0_12, %c2, %c0_13] : memref<8x28x28xf32, #tpu.memory_space<vmem>>, vector<8x24x28xf32>
    %14 = vector.shape_cast %13 : vector<8x24x28xf32> to vector<192x28xf32>
    %c2_14 = arith.constant 2 : index
    %c0_15 = arith.constant 0 : index
    %c0_16 = arith.constant 0 : index
    %15 = vector.load %arg2[%c2_14, %c0_15, %c0_16] : memref<5x28x256xf32, #tpu.memory_space<vmem>>, vector<1x28x256xf32>
    %16 = vector.shape_cast %15 : vector<1x28x256xf32> to vector<28x256xf32>
    %cst_17 = arith.constant dense<0.000000e+00> : vector<192x256xf32>
    %17 = tpu.matmul %14, %16, %cst_17 {dimension_numbers = #tpu.dot_dimension_numbers<[1], [0], [0], [1], [0, 0, 1, 1], [], []>} : vector<192x28xf32>, vector<28x256xf32>, vector<192x256xf32> -> vector<192x256xf32>
    %18 = arith.addf %12, %17 : vector<192x256xf32>
    %c0_18 = arith.constant 0 : index
    %c3 = arith.constant 3 : index
    %c0_19 = arith.constant 0 : index
    %19 = vector.load %arg1[%c0_18, %c3, %c0_19] : memref<8x28x28xf32, #tpu.memory_space<vmem>>, vector<8x24x28xf32>
    %20 = vector.shape_cast %19 : vector<8x24x28xf32> to vector<192x28xf32>
    %c3_20 = arith.constant 3 : index
    %c0_21 = arith.constant 0 : index
    %c0_22 = arith.constant 0 : index
    %21 = vector.load %arg2[%c3_20, %c0_21, %c0_22] : memref<5x28x256xf32, #tpu.memory_space<vmem>>, vector<1x28x256xf32>
    %22 = vector.shape_cast %21 : vector<1x28x256xf32> to vector<28x256xf32>
    %cst_23 = arith.constant dense<0.000000e+00> : vector<192x256xf32>
    %23 = tpu.matmul %20, %22, %cst_23 {dimension_numbers = #tpu.dot_dimension_numbers<[1], [0], [0], [1], [0, 0, 1, 1], [], []>} : vector<192x28xf32>, vector<28x256xf32>, vector<192x256xf32> -> vector<192x256xf32>
    %24 = arith.addf %18, %23 : vector<192x256xf32>
    %c0_24 = arith.constant 0 : index
    %c4 = arith.constant 4 : index
    %c0_25 = arith.constant 0 : index
    %25 = vector.load %arg1[%c0_24, %c4, %c0_25] : memref<8x28x28xf32, #tpu.memory_space<vmem>>, vector<8x24x28xf32>
    %26 = vector.shape_cast %25 : vector<8x24x28xf32> to vector<192x28xf32>
    %c4_26 = arith.constant 4 : index
    %c0_27 = arith.constant 0 : index
    %c0_28 = arith.constant 0 : index
    %27 = vector.load %arg2[%c4_26, %c0_27, %c0_28] : memref<5x28x256xf32, #tpu.memory_space<vmem>>, vector<1x28x256xf32>
    %28 = vector.shape_cast %27 : vector<1x28x256xf32> to vector<28x256xf32>
    %cst_29 = arith.constant dense<0.000000e+00> : vector<192x256xf32>
    %29 = tpu.matmul %26, %28, %cst_29 {dimension_numbers = #tpu.dot_dimension_numbers<[1], [0], [0], [1], [0, 0, 1, 1], [], []>} : vector<192x28xf32>, vector<28x256xf32>, vector<192x256xf32> -> vector<192x256xf32>
    %30 = arith.addf %24, %29 : vector<192x256xf32>
    %31 = vector.extract_strided_slice %30 {offsets = [0, 0], sizes = [192, 128], strides = [1, 1]} : vector<192x256xf32> to vector<192x128xf32>
    %32 = vector.extract_strided_slice %30 {offsets = [0, 128], sizes = [192, 128], strides = [1, 1]} : vector<192x256xf32> to vector<192x128xf32>
    %33 = arith.maximumf %31, %32 : vector<192x128xf32>
    %c0_30 = arith.constant 0 : index
    %c0_31 = arith.constant 0 : index
    %34 = vector.load %arg3[%c0_30, %c0_31] : memref<128x192xf32, #tpu.memory_space<vmem>>, vector<128x192xf32>
    %cst_32 = arith.constant dense<0.000000e+00> : vector<128x128xf32>
    %35 = tpu.matmul %34, %33, %cst_32 {dimension_numbers = #tpu.dot_dimension_numbers<[1], [0], [0], [1], [0, 0, 1, 1], [], []>} : vector<128x192xf32>, vector<192x128xf32>, vector<128x128xf32> -> vector<128x128xf32>
    %c0_33 = arith.constant 0 : index
    %c0_34 = arith.constant 0 : index
    %36 = vector.load %arg4[%c0_33, %c0_34] : memref<128x192xf32, #tpu.memory_space<vmem>>, vector<128x192xf32>
    %cst_35 = arith.constant dense<0.000000e+00> : vector<128x128xf32>
    %37 = tpu.matmul %36, %33, %cst_35 {dimension_numbers = #tpu.dot_dimension_numbers<[1], [0], [0], [1], [0, 0, 1, 1], [], []>} : vector<128x192xf32>, vector<192x128xf32>, vector<128x128xf32> -> vector<128x128xf32>
    %38 = arith.maximumf %35, %37 : vector<128x128xf32>
    %c0_36 = arith.constant 0 : index
    %c0_37 = arith.constant 0 : index
    %39 = vector.load %arg5[%c0_36, %c0_37] : memref<1x128xf32, #tpu.memory_space<vmem>>, vector<1x128xf32>
    %40 = vector.broadcast %39 : vector<1x128xf32> to vector<128x128xf32>
    %41 = arith.addf %38, %40 : vector<128x128xf32>
    %cst_38 = arith.constant 0.000000e+00 : f32
    %42 = vector.broadcast %cst_38 : f32 to vector<128x128xf32>
    %43 = arith.maximumf %41, %42 : vector<128x128xf32>
    %44 = vector.shape_cast %43 : vector<128x128xf32> to vector<8x16x128xf32>
    %c0_39 = arith.constant 0 : index
    %c0_40 = arith.constant 0 : index
    %c0_41 = arith.constant 0 : index
    %45 = vector.load %arg20[%c0_39, %c0_40, %c0_41] : memref<8x16x128xf32, #tpu.memory_space<vmem>>, vector<8x16x128xf32>
    tpu.vector_store %arg20[%c0_39, %c0_40, %c0_41], %44 {strides = array<i32>} : memref<8x16x128xf32, #tpu.memory_space<vmem>>, vector<8x16x128xf32>,
    %cst_42 = arith.constant 0.000000e+00 : f32
    %46 = vector.broadcast %cst_42 : f32 to vector<64x256xf32>
    %c0_43 = arith.constant 0 : index
    %c0_44 = arith.constant 0 : index
    %c0_45 = arith.constant 0 : index
    %47 = vector.load %arg20[%c0_43, %c0_44, %c0_45] : memref<8x16x128xf32, #tpu.memory_space<vmem>>, vector<8x8x128xf32>
    %48 = vector.shape_cast %47 : vector<8x8x128xf32> to vector<64x128xf32>
    %c0_46 = arith.constant 0 : index
    %c0_47 = arith.constant 0 : index
    %c0_48 = arith.constant 0 : index
    %49 = vector.load %arg6[%c0_46, %c0_47, %c0_48] : memref<5x128x256xf32, #tpu.memory_space<vmem>>, vector<1x128x256xf32>
    %50 = vector.shape_cast %49 : vector<1x128x256xf32> to vector<128x256xf32>
    %cst_49 = arith.constant dense<0.000000e+00> : vector<64x256xf32>
    %51 = tpu.matmul %48, %50, %cst_49 {dimension_numbers = #tpu.dot_dimension_numbers<[1], [0], [0], [1], [0, 0, 1, 1], [], []>} : vector<64x128xf32>, vector<128x256xf32>, vector<64x256xf32> -> vector<64x256xf32>
    %52 = arith.addf %46, %51 : vector<64x256xf32>
    %c0_50 = arith.constant 0 : index
    %c1_51 = arith.constant 1 : index
    %c0_52 = arith.constant 0 : index
    %53 = vector.load %arg20[%c0_50, %c1_51, %c0_52] : memref<8x16x128xf32, #tpu.memory_space<vmem>>, vector<8x8x128xf32>
    %54 = vector.shape_cast %53 : vector<8x8x128xf32> to vector<64x128xf32>
    %c1_53 = arith.constant 1 : index
    %c0_54 = arith.constant 0 : index
    %c0_55 = arith.constant 0 : index
    %55 = vector.load %arg6[%c1_53, %c0_54, %c0_55] : memref<5x128x256xf32, #tpu.memory_space<vmem>>, vector<1x128x256xf32>
    %56 = vector.shape_cast %55 : vector<1x128x256xf32> to vector<128x256xf32>
    %cst_56 = arith.constant dense<0.000000e+00> : vector<64x256xf32>
    %57 = tpu.matmul %54, %56, %cst_56 {dimension_numbers = #tpu.dot_dimension_numbers<[1], [0], [0], [1], [0, 0, 1, 1], [], []>} : vector<64x128xf32>, vector<128x256xf32>, vector<64x256xf32> -> vector<64x256xf32>
    %58 = arith.addf %52, %57 : vector<64x256xf32>
    %c0_57 = arith.constant 0 : index
    %c2_58 = arith.constant 2 : index
    %c0_59 = arith.constant 0 : index
    %59 = vector.load %arg20[%c0_57, %c2_58, %c0_59] : memref<8x16x128xf32, #tpu.memory_space<vmem>>, vector<8x8x128xf32>
    %60 = vector.shape_cast %59 : vector<8x8x128xf32> to vector<64x128xf32>
    %c2_60 = arith.constant 2 : index
    %c0_61 = arith.constant 0 : index
    %c0_62 = arith.constant 0 : index
    %61 = vector.load %arg6[%c2_60, %c0_61, %c0_62] : memref<5x128x256xf32, #tpu.memory_space<vmem>>, vector<1x128x256xf32>
    %62 = vector.shape_cast %61 : vector<1x128x256xf32> to vector<128x256xf32>
    %cst_63 = arith.constant dense<0.000000e+00> : vector<64x256xf32>
    %63 = tpu.matmul %60, %62, %cst_63 {dimension_numbers = #tpu.dot_dimension_numbers<[1], [0], [0], [1], [0, 0, 1, 1], [], []>} : vector<64x128xf32>, vector<128x256xf32>, vector<64x256xf32> -> vector<64x256xf32>
    %64 = arith.addf %58, %63 : vector<64x256xf32>
    %c0_64 = arith.constant 0 : index
    %c3_65 = arith.constant 3 : index
    %c0_66 = arith.constant 0 : index
    %65 = vector.load %arg20[%c0_64, %c3_65, %c0_66] : memref<8x16x128xf32, #tpu.memory_space<vmem>>, vector<8x8x128xf32>
    %66 = vector.shape_cast %65 : vector<8x8x128xf32> to vector<64x128xf32>
    %c3_67 = arith.constant 3 : index
    %c0_68 = arith.constant 0 : index
    %c0_69 = arith.constant 0 : index
    %67 = vector.load %arg6[%c3_67, %c0_68, %c0_69] : memref<5x128x256xf32, #tpu.memory_space<vmem>>, vector<1x128x256xf32>
    %68 = vector.shape_cast %67 : vector<1x128x256xf32> to vector<128x256xf32>
    %cst_70 = arith.constant dense<0.000000e+00> : vector<64x256xf32>
    %69 = tpu.matmul %66, %68, %cst_70 {dimension_numbers = #tpu.dot_dimension_numbers<[1], [0], [0], [1], [0, 0, 1, 1], [], []>} : vector<64x128xf32>, vector<128x256xf32>, vector<64x256xf32> -> vector<64x256xf32>
    %70 = arith.addf %64, %69 : vector<64x256xf32>
    %c0_71 = arith.constant 0 : index
    %c4_72 = arith.constant 4 : index
    %c0_73 = arith.constant 0 : index
    %71 = vector.load %arg20[%c0_71, %c4_72, %c0_73] : memref<8x16x128xf32, #tpu.memory_space<vmem>>, vector<8x8x128xf32>
    %72 = vector.shape_cast %71 : vector<8x8x128xf32> to vector<64x128xf32>
    %c4_74 = arith.constant 4 : index
    %c0_75 = arith.constant 0 : index
    %c0_76 = arith.constant 0 : index
    %73 = vector.load %arg6[%c4_74, %c0_75, %c0_76] : memref<5x128x256xf32, #tpu.memory_space<vmem>>, vector<1x128x256xf32>
    %74 = vector.shape_cast %73 : vector<1x128x256xf32> to vector<128x256xf32>
    %cst_77 = arith.constant dense<0.000000e+00> : vector<64x256xf32>
    %75 = tpu.matmul %72, %74, %cst_77 {dimension_numbers = #tpu.dot_dimension_numbers<[1], [0], [0], [1], [0, 0, 1, 1], [], []>} : vector<64x128xf32>, vector<128x256xf32>, vector<64x256xf32> -> vector<64x256xf32>
    %76 = arith.addf %70, %75 : vector<64x256xf32>
    %77 = vector.extract_strided_slice %76 {offsets = [0, 0], sizes = [64, 128], strides = [1, 1]} : vector<64x256xf32> to vector<64x128xf32>
    %78 = vector.extract_strided_slice %76 {offsets = [0, 128], sizes = [64, 128], strides = [1, 1]} : vector<64x256xf32> to vector<64x128xf32>
    %79 = arith.maximumf %77, %78 : vector<64x128xf32>
    %c0_78 = arith.constant 0 : index
    %c0_79 = arith.constant 0 : index
    %80 = vector.load %arg7[%c0_78, %c0_79] : memref<32x64xf32, #tpu.memory_space<vmem>>, vector<32x64xf32>
    %cst_80 = arith.constant dense<0.000000e+00> : vector<32x128xf32>
    %81 = tpu.matmul %80, %79, %cst_80 {dimension_numbers = #tpu.dot_dimension_numbers<[1], [0], [0], [1], [0, 0, 1, 1], [], []>} : vector<32x64xf32>, vector<64x128xf32>, vector<32x128xf32> -> vector<32x128xf32>
    %c0_81 = arith.constant 0 : index
    %c0_82 = arith.constant 0 : index
    %82 = vector.load %arg8[%c0_81, %c0_82] : memref<32x64xf32, #tpu.memory_space<vmem>>, vector<32x64xf32>
    %cst_83 = arith.constant dense<0.000000e+00> : vector<32x128xf32>
    %83 = tpu.matmul %82, %79, %cst_83 {dimension_numbers = #tpu.dot_dimension_numbers<[1], [0], [0], [1], [0, 0, 1, 1], [], []>} : vector<32x64xf32>, vector<64x128xf32>, vector<32x128xf32> -> vector<32x128xf32>
    %84 = arith.maximumf %81, %83 : vector<32x128xf32>
    %c0_84 = arith.constant 0 : index
    %c0_85 = arith.constant 0 : index
    %85 = vector.load %arg9[%c0_84, %c0_85] : memref<1x128xf32, #tpu.memory_space<vmem>>, vector<1x128xf32>
    %86 = vector.broadcast %85 : vector<1x128xf32> to vector<32x128xf32>
    %87 = arith.addf %84, %86 : vector<32x128xf32>
    %cst_86 = arith.constant 0.000000e+00 : f32
    %88 = vector.broadcast %cst_86 : f32 to vector<32x128xf32>
    %89 = arith.maximumf %87, %88 : vector<32x128xf32>
    %90 = vector.extract_strided_slice %89 {offsets = [0, 0], sizes = [8, 128], strides = [1, 1]} : vector<32x128xf32> to vector<8x128xf32>
    %91 = vector.extract_strided_slice %89 {offsets = [8, 0], sizes = [8, 128], strides = [1, 1]} : vector<32x128xf32> to vector<8x128xf32>
    %92 = vector.extract_strided_slice %89 {offsets = [16, 0], sizes = [8, 128], strides = [1, 1]} : vector<32x128xf32> to vector<8x128xf32>
    %93 = vector.extract_strided_slice %89 {offsets = [24, 0], sizes = [8, 128], strides = [1, 1]} : vector<32x128xf32> to vector<8x128xf32>
    %cst_87 = arith.constant 0.000000e+00 : f32
    %94 = vector.broadcast %cst_87 : f32 to vector<8x64xf32>
    %cst_88 = arith.constant 0.000000e+00 : f32
    %95 = vector.broadcast %cst_88 : f32 to vector<8x64xf32>
    %c0_89 = arith.constant 0 : index
    %c0_90 = arith.constant 0 : index
    %c0_91 = arith.constant 0 : index
    %96 = vector.load %arg10[%c0_89, %c0_90, %c0_91] : memref<3x128x64xf32, #tpu.memory_space<vmem>>, vector<1x128x64xf32>
    %97 = vector.shape_cast %96 : vector<1x128x64xf32> to vector<128x64xf32>
    %cst_92 = arith.constant dense<0.000000e+00> : vector<8x64xf32>
    %98 = tpu.matmul %90, %97, %cst_92 {dimension_numbers = #tpu.dot_dimension_numbers<[1], [0], [0], [1], [0, 0, 1, 1], [], []>} : vector<8x128xf32>, vector<128x64xf32>, vector<8x64xf32> -> vector<8x64xf32>
    %99 = arith.addf %94, %98 : vector<8x64xf32>
    %c0_93 = arith.constant 0 : index
    %c0_94 = arith.constant 0 : index
    %c0_95 = arith.constant 0 : index
    %100 = vector.load %arg10[%c0_93, %c0_94, %c0_95] : memref<3x128x64xf32, #tpu.memory_space<vmem>>, vector<1x128x64xf32>
    %101 = vector.shape_cast %100 : vector<1x128x64xf32> to vector<128x64xf32>
    %cst_96 = arith.constant dense<0.000000e+00> : vector<8x64xf32>
    %102 = tpu.matmul %91, %101, %cst_96 {dimension_numbers = #tpu.dot_dimension_numbers<[1], [0], [0], [1], [0, 0, 1, 1], [], []>} : vector<8x128xf32>, vector<128x64xf32>, vector<8x64xf32> -> vector<8x64xf32>
    %103 = arith.addf %95, %102 : vector<8x64xf32>
    %c1_97 = arith.constant 1 : index
    %c0_98 = arith.constant 0 : index
    %c0_99 = arith.constant 0 : index
    %104 = vector.load %arg10[%c1_97, %c0_98, %c0_99] : memref<3x128x64xf32, #tpu.memory_space<vmem>>, vector<1x128x64xf32>
    %105 = vector.shape_cast %104 : vector<1x128x64xf32> to vector<128x64xf32>
    %cst_100 = arith.constant dense<0.000000e+00> : vector<8x64xf32>
    %106 = tpu.matmul %91, %105, %cst_100 {dimension_numbers = #tpu.dot_dimension_numbers<[1], [0], [0], [1], [0, 0, 1, 1], [], []>} : vector<8x128xf32>, vector<128x64xf32>, vector<8x64xf32> -> vector<8x64xf32>
    %107 = arith.addf %99, %106 : vector<8x64xf32>
    %c1_101 = arith.constant 1 : index
    %c0_102 = arith.constant 0 : index
    %c0_103 = arith.constant 0 : index
    %108 = vector.load %arg10[%c1_101, %c0_102, %c0_103] : memref<3x128x64xf32, #tpu.memory_space<vmem>>, vector<1x128x64xf32>
    %109 = vector.shape_cast %108 : vector<1x128x64xf32> to vector<128x64xf32>
    %cst_104 = arith.constant dense<0.000000e+00> : vector<8x64xf32>
    %110 = tpu.matmul %92, %109, %cst_104 {dimension_numbers = #tpu.dot_dimension_numbers<[1], [0], [0], [1], [0, 0, 1, 1], [], []>} : vector<8x128xf32>, vector<128x64xf32>, vector<8x64xf32> -> vector<8x64xf32>
    %111 = arith.addf %103, %110 : vector<8x64xf32>
    %c2_105 = arith.constant 2 : index
    %c0_106 = arith.constant 0 : index
    %c0_107 = arith.constant 0 : index
    %112 = vector.load %arg10[%c2_105, %c0_106, %c0_107] : memref<3x128x64xf32, #tpu.memory_space<vmem>>, vector<1x128x64xf32>
    %113 = vector.shape_cast %112 : vector<1x128x64xf32> to vector<128x64xf32>
    %cst_108 = arith.constant dense<0.000000e+00> : vector<8x64xf32>
    %114 = tpu.matmul %92, %113, %cst_108 {dimension_numbers = #tpu.dot_dimension_numbers<[1], [0], [0], [1], [0, 0, 1, 1], [], []>} : vector<8x128xf32>, vector<128x64xf32>, vector<8x64xf32> -> vector<8x64xf32>
    %115 = arith.addf %107, %114 : vector<8x64xf32>
    %c2_109 = arith.constant 2 : index
    %c0_110 = arith.constant 0 : index
    %c0_111 = arith.constant 0 : index
    %116 = vector.load %arg10[%c2_109, %c0_110, %c0_111] : memref<3x128x64xf32, #tpu.memory_space<vmem>>, vector<1x128x64xf32>
    %117 = vector.shape_cast %116 : vector<1x128x64xf32> to vector<128x64xf32>
    %cst_112 = arith.constant dense<0.000000e+00> : vector<8x64xf32>
    %118 = tpu.matmul %93, %117, %cst_112 {dimension_numbers = #tpu.dot_dimension_numbers<[1], [0], [0], [1], [0, 0, 1, 1], [], []>} : vector<8x128xf32>, vector<128x64xf32>, vector<8x64xf32> -> vector<8x64xf32>
    %119 = arith.addf %111, %118 : vector<8x64xf32>
    %c0_113 = arith.constant 0 : index
    %c0_114 = arith.constant 0 : index
    %120 = vector.load %arg11[%c0_113, %c0_114] : memref<1x64xf32, #tpu.memory_space<vmem>>, vector<1x64xf32>
    %121 = vector.broadcast %120 : vector<1x64xf32> to vector<8x64xf32>
    %122 = arith.addf %115, %121 : vector<8x64xf32>
    %cst_115 = arith.constant 0.000000e+00 : f32
    %123 = vector.broadcast %cst_115 : f32 to vector<8x64xf32>
    %124 = arith.maximumf %122, %123 : vector<8x64xf32>
    %c0_116 = arith.constant 0 : index
    %c0_117 = arith.constant 0 : index
    %125 = vector.load %arg11[%c0_116, %c0_117] : memref<1x64xf32, #tpu.memory_space<vmem>>, vector<1x64xf32>
    %126 = vector.broadcast %125 : vector<1x64xf32> to vector<8x64xf32>
    %127 = arith.addf %119, %126 : vector<8x64xf32>
    %cst_118 = arith.constant 0.000000e+00 : f32
    %128 = vector.broadcast %cst_118 : f32 to vector<8x64xf32>
    %129 = arith.maximumf %127, %128 : vector<8x64xf32>
    %c0_119 = arith.constant 0 : index
    %c0_120 = arith.constant 0 : index
    %130 = vector.load %arg12[%c0_119, %c0_120] : memref<64x32xf32, #tpu.memory_space<vmem>>, vector<64x32xf32>
    %cst_121 = arith.constant dense<0.000000e+00> : vector<8x32xf32>
    %131 = tpu.matmul %124, %130, %cst_121 {dimension_numbers = #tpu.dot_dimension_numbers<[1], [0], [0], [1], [0, 0, 1, 1], [], []>} : vector<8x64xf32>, vector<64x32xf32>, vector<8x32xf32> -> vector<8x32xf32>
    %c0_122 = arith.constant 0 : index
    %c0_123 = arith.constant 0 : index
    %132 = vector.load %arg13[%c0_122, %c0_123] : memref<64x32xf32, #tpu.memory_space<vmem>>, vector<64x32xf32>
    %cst_124 = arith.constant dense<0.000000e+00> : vector<8x32xf32>
    %133 = tpu.matmul %129, %132, %cst_124 {dimension_numbers = #tpu.dot_dimension_numbers<[1], [0], [0], [1], [0, 0, 1, 1], [], []>} : vector<8x64xf32>, vector<64x32xf32>, vector<8x32xf32> -> vector<8x32xf32>
    %134 = arith.addf %131, %133 : vector<8x32xf32>
    %c0_125 = arith.constant 0 : index
    %c0_126 = arith.constant 0 : index
    %135 = vector.load %arg14[%c0_125, %c0_126] : memref<1x32xf32, #tpu.memory_space<vmem>>, vector<1x32xf32>
    %136 = vector.broadcast %135 : vector<1x32xf32> to vector<8x32xf32>
    %137 = arith.addf %134, %136 : vector<8x32xf32>
    %cst_127 = arith.constant 0.000000e+00 : f32
    %138 = vector.broadcast %cst_127 : f32 to vector<8x32xf32>
    %139 = arith.maximumf %137, %138 : vector<8x32xf32>
    %c0_128 = arith.constant 0 : index
    %c0_129 = arith.constant 0 : index
    %140 = vector.load %arg15[%c0_128, %c0_129] : memref<32x16xf32, #tpu.memory_space<vmem>>, vector<32x16xf32>
    %cst_130 = arith.constant dense<0.000000e+00> : vector<8x16xf32>
    %141 = tpu.matmul %139, %140, %cst_130 {dimension_numbers = #tpu.dot_dimension_numbers<[1], [0], [0], [1], [0, 0, 1, 1], [], []>} : vector<8x32xf32>, vector<32x16xf32>, vector<8x16xf32> -> vector<8x16xf32>
    %c0_131 = arith.constant 0 : index
    %c0_132 = arith.constant 0 : index
    %142 = vector.load %arg16[%c0_131, %c0_132] : memref<1x16xf32, #tpu.memory_space<vmem>>, vector<1x16xf32>
    %143 = vector.broadcast %142 : vector<1x16xf32> to vector<8x16xf32>
    %144 = arith.addf %141, %143 : vector<8x16xf32>
    %cst_133 = arith.constant 0.000000e+00 : f32
    %145 = vector.broadcast %cst_133 : f32 to vector<8x16xf32>
    %146 = arith.maximumf %144, %145 : vector<8x16xf32>
    %c0_134 = arith.constant 0 : index
    %c0_135 = arith.constant 0 : index
    %147 = vector.load %arg17[%c0_134, %c0_135] : memref<16x128xf32, #tpu.memory_space<vmem>>, vector<16x128xf32>
    %cst_136 = arith.constant dense<0.000000e+00> : vector<8x128xf32>
    %148 = tpu.matmul %146, %147, %cst_136 {dimension_numbers = #tpu.dot_dimension_numbers<[1], [0], [0], [1], [0, 0, 1, 1], [], []>} : vector<8x16xf32>, vector<16x128xf32>, vector<8x128xf32> -> vector<8x128xf32>
    %c0_137 = arith.constant 0 : index
    %c0_138 = arith.constant 0 : index
    %149 = vector.load %arg18[%c0_137, %c0_138] : memref<1x128xf32, #tpu.memory_space<vmem>>, vector<1x128xf32>
    %150 = vector.broadcast %149 : vector<1x128xf32> to vector<8x128xf32>
    %151 = arith.addf %148, %150 : vector<8x128xf32>
    %c0_139 = arith.constant 0 : index
    %c0_140 = arith.constant 0 : index
    %152 = vector.load %arg19[%c0_139, %c0_140] : memref<8x128xf32, #tpu.memory_space<vmem>>, vector<8x128xf32>
    tpu.vector_store %arg19[%c0_139, %c0_140], %151 {strides = array<i32>} : memref<8x128xf32, #tpu.memory_space<vmem>>, vector<8x128xf32>,
    return
  }
  func.func @transform_0(%arg0: i32) -> (i32, i32, i32) {
    %c0_i32 = arith.constant 0 : i32
    %c0_i32_0 = arith.constant 0 : i32
    %c0_i32_1 = arith.constant 0 : i32
    return %arg0, %c0_i32, %c0_i32_0 : i32, i32, i32
  }
  func.func @transform_1(%arg0: i32) -> (i32, i32, i32) {
    %c0_i32 = arith.constant 0 : i32
    %c0_i32_0 = arith.constant 0 : i32
    %c0_i32_1 = arith.constant 0 : i32
    %c0_i32_2 = arith.constant 0 : i32
    return %c0_i32, %c0_i32_0, %c0_i32_1 : i32, i32, i32
  }
  func.func @transform_2(%arg0: i32) -> (i32, i32) {
    %c0_i32 = arith.constant 0 : i32
    %c0_i32_0 = arith.constant 0 : i32
    %c0_i32_1 = arith.constant 0 : i32
    return %c0_i32, %c0_i32_0 : i32, i32
  }
  func.func @transform_3(%arg0: i32) -> (i32, i32) {
    %c0_i32 = arith.constant 0 : i32
    %c0_i32_0 = arith.constant 0 : i32
    %c0_i32_1 = arith.constant 0 : i32
    return %c0_i32, %c0_i32_0 : i32, i32
  }
  func.func @transform_4(%arg0: i32) -> (i32, i32) {
    %c0_i32 = arith.constant 0 : i32
    %c0_i32_0 = arith.constant 0 : i32
    %c0_i32_1 = arith.constant 0 : i32
    return %c0_i32, %c0_i32_0 : i32, i32
  }
  func.func @transform_5(%arg0: i32) -> (i32, i32, i32) {
    %c0_i32 = arith.constant 0 : i32
    %c0_i32_0 = arith.constant 0 : i32
    %c0_i32_1 = arith.constant 0 : i32
    %c0_i32_2 = arith.constant 0 : i32
    return %c0_i32, %c0_i32_0, %c0_i32_1 : i32, i32, i32
  }
  func.func @transform_6(%arg0: i32) -> (i32, i32) {
    %c0_i32 = arith.constant 0 : i32
    %c0_i32_0 = arith.constant 0 : i32
    %c0_i32_1 = arith.constant 0 : i32
    return %c0_i32, %c0_i32_0 : i32, i32
  }
  func.func @transform_7(%arg0: i32) -> (i32, i32) {
    %c0_i32 = arith.constant 0 : i32
    %c0_i32_0 = arith.constant 0 : i32
    %c0_i32_1 = arith.constant 0 : i32
    return %c0_i32, %c0_i32_0 : i32, i32
  }
  func.func @transform_8(%arg0: i32) -> (i32, i32) {
    %c0_i32 = arith.constant 0 : i32
    %c0_i32_0 = arith.constant 0 : i32
    %c0_i32_1 = arith.constant 0 : i32
    return %c0_i32, %c0_i32_0 : i32, i32
  }
  func.func @transform_9(%arg0: i32) -> (i32, i32, i32) {
    %c0_i32 = arith.constant 0 : i32
    %c0_i32_0 = arith.constant 0 : i32
    %c0_i32_1 = arith.constant 0 : i32
    %c0_i32_2 = arith.constant 0 : i32
    return %c0_i32, %c0_i32_0, %c0_i32_1 : i32, i32, i32
  }
  func.func @transform_10(%arg0: i32) -> (i32, i32) {
    %c0_i32 = arith.constant 0 : i32
    %c0_i32_0 = arith.constant 0 : i32
    %c0_i32_1 = arith.constant 0 : i32
    return %c0_i32, %c0_i32_0 : i32, i32
  }
  func.func @transform_11(%arg0: i32) -> (i32, i32) {
    %c0_i32 = arith.constant 0 : i32
    %c0_i32_0 = arith.constant 0 : i32
    %c0_i32_1 = arith.constant 0 : i32
    return %c0_i32, %c0_i32_0 : i32, i32
  }
  func.func @transform_12(%arg0: i32) -> (i32, i32) {
    %c0_i32 = arith.constant 0 : i32
    %c0_i32_0 = arith.constant 0 : i32
    %c0_i32_1 = arith.constant 0 : i32
    return %c0_i32, %c0_i32_0 : i32, i32
  }
  func.func @transform_13(%arg0: i32) -> (i32, i32) {
    %c0_i32 = arith.constant 0 : i32
    %c0_i32_0 = arith.constant 0 : i32
    %c0_i32_1 = arith.constant 0 : i32
    return %c0_i32, %c0_i32_0 : i32, i32
  }
  func.func @transform_14(%arg0: i32) -> (i32, i32) {
    %c0_i32 = arith.constant 0 : i32
    %c0_i32_0 = arith.constant 0 : i32
    %c0_i32_1 = arith.constant 0 : i32
    return %c0_i32, %c0_i32_0 : i32, i32
  }
  func.func @transform_15(%arg0: i32) -> (i32, i32) {
    %c0_i32 = arith.constant 0 : i32
    %c0_i32_0 = arith.constant 0 : i32
    %c0_i32_1 = arith.constant 0 : i32
    return %c0_i32, %c0_i32_0 : i32, i32
  }
  func.func @transform_16(%arg0: i32) -> (i32, i32) {
    %c0_i32 = arith.constant 0 : i32
    %c0_i32_0 = arith.constant 0 : i32
    %c0_i32_1 = arith.constant 0 : i32
    return %c0_i32, %c0_i32_0 : i32, i32
  }
  func.func @transform_17(%arg0: i32) -> (i32, i32) {
    %c0_i32 = arith.constant 0 : i32
    %c0_i32_0 = arith.constant 0 : i32
    %c0_i32_1 = arith.constant 0 : i32
    return %c0_i32, %c0_i32_0 : i32, i32
  }
  func.func @transform_18(%arg0: i32) -> (i32, i32) {
    %c0_i32 = arith.constant 0 : i32
    %c0_i32_0 = arith.constant 0 : i32
    return %arg0, %c0_i32 : i32, i32
  }
}

</mosaic_0001>

<llo_original>
// kernel: convnet_forward.1
$region0: #{convnet_forward.1}
  #allocation0 [shape = 'u32[]', space=smem, size = 0x4, offset = 0x4, fixed_abs, tag = 'smem constant byte address 0x4 - core index']
  #allocation1 [shape = 'u32[72,128]{1,0:T(1,128)}', space=vmem, size = 0x9000, scoped, tag = 'internal scratch']
  #allocation2 [shape = 'f32[8,16,128]{2,1,0:T(8,128)}', space=vmem, size = 0x10000, scoped, tag = 'scratch operand']
  %s0 = inlined_call_operand.vmem [shape: f32[16,28,28], index: 0, kind: input, shape index: {}]
  %s1 = inlined_call_operand.vmem [shape: f32[5,28,256], index: 1, kind: input, shape index: {}]
  %s2 = inlined_call_operand.vmem [shape: f32[128,192], index: 2, kind: input, shape index: {}]
  %s3 = inlined_call_operand.vmem [shape: f32[128,192], index: 3, kind: input, shape index: {}]
  %s4 = inlined_call_operand.vmem [shape: f32[1,128], index: 4, kind: input, shape index: {}]
  %s5 = inlined_call_operand.vmem [shape: f32[5,128,256], index: 5, kind: input, shape index: {}]
  %s6 = inlined_call_operand.hbm [shape: f32[32,64], index: 6, kind: input, shape index: {}]
  %s7 = inlined_call_operand.hbm [shape: f32[32,64], index: 7, kind: input, shape index: {}]
  %s8 = inlined_call_operand.vmem [shape: f32[1,128], index: 8, kind: input, shape index: {}]
  %s9 = inlined_call_operand.vmem [shape: f32[3,128,64], index: 9, kind: input, shape index: {}]
  %s10 = inlined_call_operand.vmem [shape: f32[1,64], index: 10, kind: input, shape index: {}]
  %s11 = inlined_call_operand.vmem [shape: f32[64,32], index: 11, kind: input, shape index: {}]
  %s12 = inlined_call_operand.vmem [shape: f32[64,32], index: 12, kind: input, shape index: {}]
  %s13 = inlined_call_operand.vmem [shape: f32[1,32], index: 13, kind: input, shape index: {}]
  %s14 = inlined_call_operand.vmem [shape: f32[32,16], index: 14, kind: input, shape index: {}]
  %s15 = inlined_call_operand.vmem [shape: f32[1,16], index: 15, kind: input, shape index: {}]
  %s16 = inlined_call_operand.vmem [shape: f32[16,128], index: 16, kind: input, shape index: {}]
  %s17 = inlined_call_operand.vmem [shape: f32[1,128], index: 17, kind: input, shape index: {}]
  %s18 = inlined_call_operand.hbm [shape: f32[16,128], index: 18, kind: output, shape index: {}]
  %s19 = sld [smem:[#allocation0]]
  $region113: #{convnet_forward.1} parent=0
    _
  %s21 = ssub.s32 1, %s19
  %s22 = scalar_select 0, %s21, %s19
  $region1: #{convnet_forward.1} parent=0
    #allocation3 [shape = 'u8[16384]{0}', space=vmem, size = 0x4000, scoped, tag = 'input window, operand 6, single buffered']
    #allocation4 [shape = 's32[2]{0}', space=sflag, size = 0x8, scoped, tag = 'scoped memory for convnet_forward.1']
    #allocation5 [shape = 's32[2]{0}', space=sflag, size = 0x8, scoped, tag = 'scoped memory for convnet_forward.1']
    #allocation6 [shape = 'u8[16384]{0}', space=vmem, size = 0x4000, scoped, tag = 'input window, operand 7, single buffered']
    #allocation7 [shape = 's32[1]{0}', space=sflag, size = 0x4, scoped, tag = 'scoped memory for convnet_forward.1']
    #allocation8 [shape = 'u8[8192]{0}', space=vmem, size = 0x2000, scoped, tag = 'output window, operand 0']
    %23 = vsyncpa [#allocation4], 0
    %24 = vsyncpa [#allocation7], 0
    %25 = vsyncpa [#allocation5], 0
    %s26 = scalar_lea.sflag [#allocation5], 1
    %27 = vsyncpa %s26, 0
    loop: start=0, step=1, limit=4
    $region2: #{convnet_forward.1} parent=1 // loop_pre_header
      _
    $region3: #{convnet_forward.1} parent=1 // loop_header
      %s29 = sphi 0, %s33
      %p30 = scmp.ge.s32.totalorder %s29, 4
      %s39 = sphi 0, %s41
      %s42 = sphi 0, %s39
      %s43 = sphi 0, %s42
      %s59 = sphi 0, %s43
      %s63 = sphi 0, %s63
      %s65 = sphi 0, %s63
      %s66 = sphi 0, %s65
      %s80 = sphi 0, %s66
      %s84 = sphi 0, %s84
      %s86 = sphi 0, %s84
      %s87 = sphi 0, %s86
      %s101 = sphi 0, %s87
      %s105 = sphi 0, %s105
      %s107 = sphi 0, %s105
      %s108 = sphi 0, %s107
      %s122 = sphi 0, %s108
      %s126 = sphi 0, %s126
      %s128 = sphi 0, %s126
      %s129 = sphi 0, %s128
      %s143 = sphi 0, %s129
      %s147 = sphi 0, %s147
      %s149 = sphi 0, %s147
      %s150 = sphi 0, %s149
      %s164 = sphi 0, %s150
      %s168 = sphi 0, %s168
      %s170 = sphi 0, %s168
      %s171 = sphi 0, %s170
      %s185 = sphi 0, %s171
      %s189 = sphi 0, %s189
      %s191 = sphi 0, %s189
      %s192 = sphi 0, %s191
      %s206 = sphi 0, %s192
      %s210 = sphi 0, %s210
      %s212 = sphi 0, %s210
      %s213 = sphi 0, %s212
      %s227 = sphi 0, %s213
      %s231 = sphi 0, %s231
      %s233 = sphi 0, %s231
      %s234 = sphi 0, %s233
      %s248 = sphi 0, %s234
      %s252 = sphi 0, %s252
      %s254 = sphi 0, %s252
      %s255 = sphi 0, %s254
      %s269 = sphi 0, %s255
      %s273 = sphi 0, %s273
      %s275 = sphi 0, %s273
      %s276 = sphi 0, %s275
      %s290 = sphi 0, %s276
      %s294 = sphi 0, %s294
      %s296 = sphi 0, %s294
      %s297 = sphi 0, %s296
      %s311 = sphi 0, %s297
      %s315 = sphi 0, %s315
      %s317 = sphi 0, %s315
      %s318 = sphi 0, %s317
      %s332 = sphi 0, %s318
      %s336 = sphi 0, %s336
      %s338 = sphi 0, %s336
      %s339 = sphi 0, %s338
      %s353 = sphi 0, %s339
      %s357 = sphi 0, %s357
      %s359 = sphi 0, %s357
      %s360 = sphi 0, %s359
      %s374 = sphi 0, %s360
      %s378 = sphi 0, %s378
      %s380 = sphi 0, %s378
      %s381 = sphi 0, %s380
      %s395 = sphi 0, %s381
      %s399 = sphi 0, %s399
      %s401 = sphi 0, %s399
      %s402 = sphi 0, %s401
      %s416 = sphi 0, %s402
      %s422 = sphi 0, %s424
      %s425 = sphi 0, %s422
      %s426 = sphi 0, %s425
      %s442 = sphi 0, %s426
    $region4: #{convnet_forward.1} parent=1 // loop_header_branch
      %32 = sbr.rel (%p30) target = $region8
    $region5: #{convnet_forward.1} parent=1 // loop_body
      %s34 = ssub.s32 %s29, 1
      %s35 = ssub.s32 %s29, 2
      %s36 = sadd.s32 %s29, 1
      %s37 = ssub.s32 %s29, %s36
      %p38 = scmp.eq.s32.totalorder %s37, 0
      %s40 = sadd.s32 %s39, 1
      %s41 = scalar_select %p38, %s39, %s40
      %p44 = pneg %p38
      %p45 = scmp.eq.s32.totalorder %s29, 1
      %p46 = por %p44, %p45
      %p47 = scmp.ne.s32.totalorder %s39, %s42
      %p48 = scmp.eq.s32.totalorder %s29, 0
      %p49 = por %p47, %p48
      %p50 = scmp.ne.s32.totalorder %s39, %s42
      %p51 = scmp.eq.s32.totalorder %s34, 1
      %p52 = por %p50, %p51
      %p53 = scmp.ne.s32.totalorder %s42, %s43
      %p54 = scmp.eq.s32.totalorder %s34, 0
      %p55 = por %p53, %p54
      %p56 = scmp.ne.s32.totalorder %s42, %s43
      %p57 = scmp.eq.s32.totalorder %s35, 1
      %p58 = por %p56, %p57
      %p60 = scmp.ne.s32.totalorder %s43, %s59
      %p61 = scmp.eq.s32.totalorder %s35, 0
      %p62 = por %p60, %p61
      %s64 = sadd.s32 %s63, 1
      %p67 = scmp.eq.s32.totalorder %s29, 1
      %p68 = scmp.ne.s32.totalorder %s63, %s65
      %p69 = scmp.eq.s32.totalorder %s29, 0
      %p70 = por %p68, %p69
      %p71 = scmp.ne.s32.totalorder %s63, %s65
      %p72 = scmp.eq.s32.totalorder %s34, 1
      %p73 = por %p71, %p72
      %p74 = scmp.ne.s32.totalorder %s65, %s66
      %p75 = scmp.eq.s32.totalorder %s34, 0
      %p76 = por %p74, %p75
      %p77 = scmp.ne.s32.totalorder %s65, %s66
      %p78 = scmp.eq.s32.totalorder %s35, 1
      %p79 = por %p77, %p78
      %p81 = scmp.ne.s32.totalorder %s66, %s80
      %p82 = scmp.eq.s32.totalorder %s35, 0
      %p83 = por %p81, %p82
      %s85 = sadd.s32 %s84, 1
      %p88 = scmp.eq.s32.totalorder %s29, 1
      %p89 = scmp.ne.s32.totalorder %s84, %s86
      %p90 = scmp.eq.s32.totalorder %s29, 0
      %p91 = por %p89, %p90
      %p92 = scmp.ne.s32.totalorder %s84, %s86
      %p93 = scmp.eq.s32.totalorder %s34, 1
      %p94 = por %p92, %p93
      %p95 = scmp.ne.s32.totalorder %s86, %s87
      %p96 = scmp.eq.s32.totalorder %s34, 0
      %p97 = por %p95, %p96
      %p98 = scmp.ne.s32.totalorder %s86, %s87
      %p99 = scmp.eq.s32.totalorder %s35, 1
      %p100 = por %p98, %p99
      %p102 = scmp.ne.s32.totalorder %s87, %s101
      %p103 = scmp.eq.s32.totalorder %s35, 0
      %p104 = por %p102, %p103
      %s106 = sadd.s32 %s105, 1
      %p109 = scmp.eq.s32.totalorder %s29, 1
      %p110 = scmp.ne.s32.totalorder %s105, %s107
      %p111 = scmp.eq.s32.totalorder %s29, 0
      %p112 = por %p110, %p111
      %p113 = scmp.ne.s32.totalorder %s105, %s107
      %p114 = scmp.eq.s32.totalorder %s34, 1
      %p115 = por %p113, %p114
      %p116 = scmp.ne.s32.totalorder %s107, %s108
      %p117 = scmp.eq.s32.totalorder %s34, 0
      %p118 = por %p116, %p117
      %p119 = scmp.ne.s32.totalorder %s107, %s108
      %p120 = scmp.eq.s32.totalorder %s35, 1
      %p121 = por %p119, %p120
      %p123 = scmp.ne.s32.totalorder %s108, %s122
      %p124 = scmp.eq.s32.totalorder %s35, 0
      %p125 = por %p123, %p124
      %s127 = sadd.s32 %s126, 1
      %p130 = scmp.eq.s32.totalorder %s29, 1
      %p131 = scmp.ne.s32.totalorder %s126, %s128
      %p132 = scmp.eq.s32.totalorder %s29, 0
      %p133 = por %p131, %p132
      %p134 = scmp.ne.s32.totalorder %s126, %s128
      %p135 = scmp.eq.s32.totalorder %s34, 1
      %p136 = por %p134, %p135
      %p137 = scmp.ne.s32.totalorder %s128, %s129
      %p138 = scmp.eq.s32.totalorder %s34, 0
      %p139 = por %p137, %p138
      %p140 = scmp.ne.s32.totalorder %s128, %s129
      %p141 = scmp.eq.s32.totalorder %s35, 1
      %p142 = por %p140, %p141
      %p144 = scmp.ne.s32.totalorder %s129, %s143
      %p145 = scmp.eq.s32.totalorder %s35, 0
      %p146 = por %p144, %p145
      %s148 = sadd.s32 %s147, 1
      %p151 = scmp.eq.s32.totalorder %s29, 1
      %p152 = scmp.ne.s32.totalorder %s147, %s149
      %p153 = scmp.eq.s32.totalorder %s29, 0
      %p154 = por %p152, %p153
      %p155 = scmp.ne.s32.totalorder %s147, %s149
      %p156 = scmp.eq.s32.totalorder %s34, 1
      %p157 = por %p155, %p156
      %p158 = scmp.ne.s32.totalorder %s149, %s150
      %p159 = scmp.eq.s32.totalorder %s34, 0
      %p160 = por %p158, %p159
      %p161 = scmp.ne.s32.totalorder %s149, %s150
      %p162 = scmp.eq.s32.totalorder %s35, 1
      %p163 = por %p161, %p162
      %p165 = scmp.ne.s32.totalorder %s150, %s164
      %p166 = scmp.eq.s32.totalorder %s35, 0
      %p167 = por %p165, %p166
      %s169 = sadd.s32 %s168, 1
      %p172 = scmp.eq.s32.totalorder %s29, 1
      %p173 = scmp.ne.s32.totalorder %s168, %s170
      %p174 = scmp.eq.s32.totalorder %s29, 0
      %p175 = por %p173, %p174
      %p176 = scmp.ne.s32.totalorder %s168, %s170
      %p177 = scmp.eq.s32.totalorder %s34, 1
      %p178 = por %p176, %p177
      %p179 = scmp.ne.s32.totalorder %s170, %s171
      %p180 = scmp.eq.s32.totalorder %s34, 0
      %p181 = por %p179, %p180
      %p182 = scmp.ne.s32.totalorder %s170, %s171
      %p183 = scmp.eq.s32.totalorder %s35, 1
      %p184 = por %p182, %p183
      %p186 = scmp.ne.s32.totalorder %s171, %s185
      %p187 = scmp.eq.s32.totalorder %s35, 0
      %p188 = por %p186, %p187
      %s190 = sadd.s32 %s189, 1
      %p193 = scmp.eq.s32.totalorder %s29, 1
      %p194 = scmp.ne.s32.totalorder %s189, %s191
      %p195 = scmp.eq.s32.totalorder %s29, 0
      %p196 = por %p194, %p195
      %p197 = scmp.ne.s32.totalorder %s189, %s191
      %p198 = scmp.eq.s32.totalorder %s34, 1
      %p199 = por %p197, %p198
      %p200 = scmp.ne.s32.totalorder %s191, %s192
      %p201 = scmp.eq.s32.totalorder %s34, 0
      %p202 = por %p200, %p201
      %p203 = scmp.ne.s32.totalorder %s191, %s192
      %p204 = scmp.eq.s32.totalorder %s35, 1
      %p205 = por %p203, %p204
      %p207 = scmp.ne.s32.totalorder %s192, %s206
      %p208 = scmp.eq.s32.totalorder %s35, 0
      %p209 = por %p207, %p208
      %s211 = sadd.s32 %s210, 1
      %p214 = scmp.eq.s32.totalorder %s29, 1
      %p215 = scmp.ne.s32.totalorder %s210, %s212
      %p216 = scmp.eq.s32.totalorder %s29, 0
      %p217 = por %p215, %p216
      %p218 = scmp.ne.s32.totalorder %s210, %s212
      %p219 = scmp.eq.s32.totalorder %s34, 1
      %p220 = por %p218, %p219
      %p221 = scmp.ne.s32.totalorder %s212, %s213
      %p222 = scmp.eq.s32.totalorder %s34, 0
      %p223 = por %p221, %p222
      %p224 = scmp.ne.s32.totalorder %s212, %s213
      %p225 = scmp.eq.s32.totalorder %s35, 1
      %p226 = por %p224, %p225
      %p228 = scmp.ne.s32.totalorder %s213, %s227
      %p229 = scmp.eq.s32.totalorder %s35, 0
      %p230 = por %p228, %p229
      %s232 = sadd.s32 %s231, 1
      %p235 = scmp.eq.s32.totalorder %s29, 1
      %p236 = scmp.ne.s32.totalorder %s231, %s233
      %p237 = scmp.eq.s32.totalorder %s29, 0
      %p238 = por %p236, %p237
      %p239 = scmp.ne.s32.totalorder %s231, %s233
      %p240 = scmp.eq.s32.totalorder %s34, 1
      %p241 = por %p239, %p240
      %p242 = scmp.ne.s32.totalorder %s233, %s234
      %p243 = scmp.eq.s32.totalorder %s34, 0
      %p244 = por %p242, %p243
      %p245 = scmp.ne.s32.totalorder %s233, %s234
      %p246 = scmp.eq.s32.totalorder %s35, 1
      %p247 = por %p245, %p246
      %p249 = scmp.ne.s32.totalorder %s234, %s248
      %p250 = scmp.eq.s32.totalorder %s35, 0
      %p251 = por %p249, %p250
      %s253 = sadd.s32 %s252, 1
      %p256 = scmp.eq.s32.totalorder %s29, 1
      %p257 = scmp.ne.s32.totalorder %s252, %s254
      %p258 = scmp.eq.s32.totalorder %s29, 0
      %p259 = por %p257, %p258
      %p260 = scmp.ne.s32.totalorder %s252, %s254
      %p261 = scmp.eq.s32.totalorder %s34, 1
      %p262 = por %p260, %p261
      %p263 = scmp.ne.s32.totalorder %s254, %s255
      %p264 = scmp.eq.s32.totalorder %s34, 0
      %p265 = por %p263, %p264
      %p266 = scmp.ne.s32.totalorder %s254, %s255
      %p267 = scmp.eq.s32.totalorder %s35, 1
      %p268 = por %p266, %p267
      %p270 = scmp.ne.s32.totalorder %s255, %s269
      %p271 = scmp.eq.s32.totalorder %s35, 0
      %p272 = por %p270, %p271
      %s274 = sadd.s32 %s273, 1
      %p277 = scmp.eq.s32.totalorder %s29, 1
      %p278 = scmp.ne.s32.totalorder %s273, %s275
      %p279 = scmp.eq.s32.totalorder %s29, 0
      %p280 = por %p278, %p279
      %p281 = scmp.ne.s32.totalorder %s273, %s275
      %p282 = scmp.eq.s32.totalorder %s34, 1
      %p283 = por %p281, %p282
      %p284 = scmp.ne.s32.totalorder %s275, %s276
      %p285 = scmp.eq.s32.totalorder %s34, 0
      %p286 = por %p284, %p285
      %p287 = scmp.ne.s32.totalorder %s275, %s276
      %p288 = scmp.eq.s32.totalorder %s35, 1
      %p289 = por %p287, %p288
      %p291 = scmp.ne.s32.totalorder %s276, %s290
      %p292 = scmp.eq.s32.totalorder %s35, 0
      %p293 = por %p291, %p292
      %s295 = sadd.s32 %s294, 1
      %p298 = scmp.eq.s32.totalorder %s29, 1
      %p299 = scmp.ne.s32.totalorder %s294, %s296
      %p300 = scmp.eq.s32.totalorder %s29, 0
      %p301 = por %p299, %p300
      %p302 = scmp.ne.s32.totalorder %s294, %s296
      %p303 = scmp.eq.s32.totalorder %s34, 1
      %p304 = por %p302, %p303
      %p305 = scmp.ne.s32.totalorder %s296, %s297
      %p306 = scmp.eq.s32.totalorder %s34, 0
      %p307 = por %p305, %p306
      %p308 = scmp.ne.s32.totalorder %s296, %s297
      %p309 = scmp.eq.s32.totalorder %s35, 1
      %p310 = por %p308, %p309
      %p312 = scmp.ne.s32.totalorder %s297, %s311
      %p313 = scmp.eq.s32.totalorder %s35, 0
      %p314 = por %p312, %p313
      %s316 = sadd.s32 %s315, 1
      %p319 = scmp.eq.s32.totalorder %s29, 1
      %p320 = scmp.ne.s32.totalorder %s315, %s317
      %p321 = scmp.eq.s32.totalorder %s29, 0
      %p322 = por %p320, %p321
      %p323 = scmp.ne.s32.totalorder %s315, %s317
      %p324 = scmp.eq.s32.totalorder %s34, 1
      %p325 = por %p323, %p324
      %p326 = scmp.ne.s32.totalorder %s317, %s318
      %p327 = scmp.eq.s32.totalorder %s34, 0
      %p328 = por %p326, %p327
      %p329 = scmp.ne.s32.totalorder %s317, %s318
      %p330 = scmp.eq.s32.totalorder %s35, 1
      %p331 = por %p329, %p330
      %p333 = scmp.ne.s32.totalorder %s318, %s332
      %p334 = scmp.eq.s32.totalorder %s35, 0
      %p335 = por %p333, %p334
      %s337 = sadd.s32 %s336, 1
      %p340 = scmp.eq.s32.totalorder %s29, 1
      %p341 = scmp.ne.s32.totalorder %s336, %s338
      %p342 = scmp.eq.s32.totalorder %s29, 0
      %p343 = por %p341, %p342
      %p344 = scmp.ne.s32.totalorder %s336, %s338
      %p345 = scmp.eq.s32.totalorder %s34, 1
      %p346 = por %p344, %p345
      %p347 = scmp.ne.s32.totalorder %s338, %s339
      %p348 = scmp.eq.s32.totalorder %s34, 0
      %p349 = por %p347, %p348
      %p350 = scmp.ne.s32.totalorder %s338, %s339
      %p351 = scmp.eq.s32.totalorder %s35, 1
      %p352 = por %p350, %p351
      %p354 = scmp.ne.s32.totalorder %s339, %s353
      %p355 = scmp.eq.s32.totalorder %s35, 0
      %p356 = por %p354, %p355
      %s358 = sadd.s32 %s357, 1
      %p361 = scmp.eq.s32.totalorder %s29, 1
      %p362 = scmp.ne.s32.totalorder %s357, %s359
      %p363 = scmp.eq.s32.totalorder %s29, 0
      %p364 = por %p362, %p363
      %p365 = scmp.ne.s32.totalorder %s357, %s359
      %p366 = scmp.eq.s32.totalorder %s34, 1
      %p367 = por %p365, %p366
      %p368 = scmp.ne.s32.totalorder %s359, %s360
      %p369 = scmp.eq.s32.totalorder %s34, 0
      %p370 = por %p368, %p369
      %p371 = scmp.ne.s32.totalorder %s359, %s360
      %p372 = scmp.eq.s32.totalorder %s35, 1
      %p373 = por %p371, %p372
      %p375 = scmp.ne.s32.totalorder %s360, %s374
      %p376 = scmp.eq.s32.totalorder %s35, 0
      %p377 = por %p375, %p376
      %s379 = sadd.s32 %s378, 1
      %p382 = scmp.eq.s32.totalorder %s29, 1
      %p383 = scmp.ne.s32.totalorder %s378, %s380
      %p384 = scmp.eq.s32.totalorder %s29, 0
      %p385 = por %p383, %p384
      %p386 = scmp.ne.s32.totalorder %s378, %s380
      %p387 = scmp.eq.s32.totalorder %s34, 1
      %p388 = por %p386, %p387
      %p389 = scmp.ne.s32.totalorder %s380, %s381
      %p390 = scmp.eq.s32.totalorder %s34, 0
      %p391 = por %p389, %p390
      %p392 = scmp.ne.s32.totalorder %s380, %s381
      %p393 = scmp.eq.s32.totalorder %s35, 1
      %p394 = por %p392, %p393
      %p396 = scmp.ne.s32.totalorder %s381, %s395
      %p397 = scmp.eq.s32.totalorder %s35, 0
      %p398 = por %p396, %p397
      %s400 = sadd.s32 %s399, 1
      %p403 = scmp.eq.s32.totalorder %s29, 1
      %p404 = scmp.ne.s32.totalorder %s399, %s401
      %p405 = scmp.eq.s32.totalorder %s29, 0
      %p406 = por %p404, %p405
      %p407 = scmp.ne.s32.totalorder %s399, %s401
      %p408 = scmp.eq.s32.totalorder %s34, 1
      %p409 = por %p407, %p408
      %p410 = scmp.ne.s32.totalorder %s401, %s402
      %p411 = scmp.eq.s32.totalorder %s34, 0
      %p412 = por %p410, %p411
      %p413 = scmp.ne.s32.totalorder %s401, %s402
      %p414 = scmp.eq.s32.totalorder %s35, 1
      %p415 = por %p413, %p414
      %p417 = scmp.ne.s32.totalorder %s402, %s416
      %p418 = scmp.eq.s32.totalorder %s35, 0
      %p419 = por %p417, %p418
      %s420 = ssub.s32 %s29, %s36
      %p421 = scmp.eq.s32.totalorder %s420, 0
      %s423 = sadd.s32 %s422, 1
      %s424 = scalar_select %p421, %s422, %s423
      %p427 = pneg %p421
      %p428 = scmp.eq.s32.totalorder %s29, 1
      %p429 = por %p427, %p428
      %p430 = scmp.ne.s32.totalorder %s422, %s425
      %p431 = scmp.eq.s32.totalorder %s29, 0
      %p432 = por %p430, %p431
      %p433 = scmp.ne.s32.totalorder %s422, %s425
      %p434 = scmp.eq.s32.totalorder %s34, 1
      %p435 = por %p433, %p434
      %p436 = scmp.ne.s32.totalorder %s425, %s426
      %p437 = scmp.eq.s32.totalorder %s34, 0
      %p438 = por %p436, %p437
      %p439 = scmp.ne.s32.totalorder %s425, %s426
      %p440 = scmp.eq.s32.totalorder %s35, 1
      %p441 = por %p439, %p440
      %p443 = scmp.ne.s32.totalorder %s426, %s442
      %p444 = scmp.eq.s32.totalorder %s35, 0
      %p445 = por %p443, %p444
      %p446 = scmp.le.s32.totalorder 1, %s29
      %p447 = scmp.lt.s32.totalorder %s29, 3
      %p448 = pnand %p446, %p447
      %p449 = pneg %p448
      // Predicated region
      $region9: #{convnet_forward.1} parent=5 // pred_check
        _
      $region10: #{convnet_forward.1} parent=5 // pred_check_branch
        %451 = sbr.rel (%p448) target = $region12
      $region11: #{convnet_forward.1} parent=5 // pred_region
        %s452 = ssub.s32 %s29, 1
        // Predicated region
        $region13: #{convnet_forward.1} parent=11 // pred_check
          %p453 = pneg %p76
        $region14: #{convnet_forward.1} parent=11 // pred_check_branch
          %455 = sbr.rel (%p453) target = $region16
        $region15: #{convnet_forward.1} parent=11 // pred_region
          _
        $region16: #{convnet_forward.1} parent=11 // pred_fallthru
          _
        // Predicated region
        $region17: #{convnet_forward.1} parent=11 // pred_check
          %p456 = pneg %p97
        $region18: #{convnet_forward.1} parent=11 // pred_check_branch
          %458 = sbr.rel (%p456) target = $region20
        $region19: #{convnet_forward.1} parent=11 // pred_region
          _
        $region20: #{convnet_forward.1} parent=11 // pred_fallthru
          _
        // Predicated region
        $region21: #{convnet_forward.1} parent=11 // pred_check
          %p459 = pneg %p118
        $region22: #{convnet_forward.1} parent=11 // pred_check_branch
          %461 = sbr.rel (%p459) target = $region24
        $region23: #{convnet_forward.1} parent=11 // pred_region
          _
        $region24: #{convnet_forward.1} parent=11 // pred_fallthru
          _
        // Predicated region
        $region25: #{convnet_forward.1} parent=11 // pred_check
          %p462 = pneg %p139
        $region26: #{convnet_forward.1} parent=11 // pred_check_branch
          %464 = sbr.rel (%p462) target = $region28
        $region27: #{convnet_forward.1} parent=11 // pred_region
          _
        $region28: #{convnet_forward.1} parent=11 // pred_fallthru
          _
        // Predicated region
        $region29: #{convnet_forward.1} parent=11 // pred_check
          %p465 = pneg %p160
        $region30: #{convnet_forward.1} parent=11 // pred_check_branch
          %467 = sbr.rel (%p465) target = $region32
        $region31: #{convnet_forward.1} parent=11 // pred_region
          _
        $region32: #{convnet_forward.1} parent=11 // pred_fallthru
          _
        // Predicated region
        $region33: #{convnet_forward.1} parent=11 // pred_check
          %p468 = pneg %p181
        $region34: #{convnet_forward.1} parent=11 // pred_check_branch
          %470 = sbr.rel (%p468) target = $region36
        $region35: #{convnet_forward.1} parent=11 // pred_region
          %472 = vsyncadd [#allocation4], 0
          %s473 = sshll.u32 %s6, 4
          %s474 = int_to_ptr.hbm [resolvable:$true] %s473
          %s475 = sshll.u32 [#allocation3], 4
          %s476 = int_to_ptr.vmem [resolvable:$true] %s475
          %481 = dma.hbm_to_vmem [thread:$0]  %s474, 512, %s476, [#allocation4], 128, 128, 8
        $region36: #{convnet_forward.1} parent=11 // pred_fallthru
          _
        // Predicated region
        $region37: #{convnet_forward.1} parent=11 // pred_check
          %p482 = pneg %p202
        $region38: #{convnet_forward.1} parent=11 // pred_check_branch
          %484 = sbr.rel (%p482) target = $region40
        $region39: #{convnet_forward.1} parent=11 // pred_region
          %486 = vsyncadd [#allocation7], 0
          %s487 = sshll.u32 %s7, 4
          %s488 = int_to_ptr.hbm [resolvable:$true] %s487
          %s489 = sshll.u32 [#allocation6], 4
          %s490 = int_to_ptr.vmem [resolvable:$true] %s489
          %495 = dma.hbm_to_vmem [thread:$0]  %s488, 512, %s490, [#allocation7], 128, 128, 8
        $region40: #{convnet_forward.1} parent=11 // pred_fallthru
          _
        // Predicated region
        $region41: #{convnet_forward.1} parent=11 // pred_check
          %p496 = pneg %p223
        $region42: #{convnet_forward.1} parent=11 // pred_check_branch
          %498 = sbr.rel (%p496) target = $region44
        $region43: #{convnet_forward.1} parent=11 // pred_region
          _
        $region44: #{convnet_forward.1} parent=11 // pred_fallthru
          _
        // Predicated region
        $region45: #{convnet_forward.1} parent=11 // pred_check
          %p499 = pneg %p244
        $region46: #{convnet_forward.1} parent=11 // pred_check_branch
          %501 = sbr.rel (%p499) target = $region48
        $region47: #{convnet_forward.1} parent=11 // pred_region
          _
        $region48: #{convnet_forward.1} parent=11 // pred_fallthru
          _
        // Predicated region
        $region49: #{convnet_forward.1} parent=11 // pred_check
          %p502 = pneg %p265
        $region50: #{convnet_forward.1} parent=11 // pred_check_branch
          %504 = sbr.rel (%p502) target = $region52
        $region51: #{convnet_forward.1} parent=11 // pred_region
          _
        $region52: #{convnet_forward.1} parent=11 // pred_fallthru
          _
        // Predicated region
        $region53: #{convnet_forward.1} parent=11 // pred_check
          %p505 = pneg %p286
        $region54: #{convnet_forward.1} parent=11 // pred_check_branch
          %507 = sbr.rel (%p505) target = $region56
        $region55: #{convnet_forward.1} parent=11 // pred_region
          _
        $region56: #{convnet_forward.1} parent=11 // pred_fallthru
          _
        // Predicated region
        $region57: #{convnet_forward.1} parent=11 // pred_check
          %p508 = pneg %p307
        $region58: #{convnet_forward.1} parent=11 // pred_check_branch
          %510 = sbr.rel (%p508) target = $region60
        $region59: #{convnet_forward.1} parent=11 // pred_region
          _
        $region60: #{convnet_forward.1} parent=11 // pred_fallthru
          _
        // Predicated region
        $region61: #{convnet_forward.1} parent=11 // pred_check
          %p511 = pneg %p328
        $region62: #{convnet_forward.1} parent=11 // pred_check_branch
          %513 = sbr.rel (%p511) target = $region64
        $region63: #{convnet_forward.1} parent=11 // pred_region
          _
        $region64: #{convnet_forward.1} parent=11 // pred_fallthru
          _
        // Predicated region
        $region65: #{convnet_forward.1} parent=11 // pred_check
          %p514 = pneg %p349
        $region66: #{convnet_forward.1} parent=11 // pred_check_branch
          %516 = sbr.rel (%p514) target = $region68
        $region67: #{convnet_forward.1} parent=11 // pred_region
          _
        $region68: #{convnet_forward.1} parent=11 // pred_fallthru
          _
        // Predicated region
        $region69: #{convnet_forward.1} parent=11 // pred_check
          %p517 = pneg %p370
        $region70: #{convnet_forward.1} parent=11 // pred_check_branch
          %519 = sbr.rel (%p517) target = $region72
        $region71: #{convnet_forward.1} parent=11 // pred_region
          _
        $region72: #{convnet_forward.1} parent=11 // pred_fallthru
          _
        // Predicated region
        $region73: #{convnet_forward.1} parent=11 // pred_check
          %p520 = pneg %p391
        $region74: #{convnet_forward.1} parent=11 // pred_check_branch
          %522 = sbr.rel (%p520) target = $region76
        $region75: #{convnet_forward.1} parent=11 // pred_region
          _
        $region76: #{convnet_forward.1} parent=11 // pred_fallthru
          _
        // Predicated region
        $region77: #{convnet_forward.1} parent=11 // pred_check
          %p523 = pneg %p412
        $region78: #{convnet_forward.1} parent=11 // pred_check_branch
          %525 = sbr.rel (%p523) target = $region80
        $region79: #{convnet_forward.1} parent=11 // pred_region
          _
        $region80: #{convnet_forward.1} parent=11 // pred_fallthru
          _
      $region12: #{convnet_forward.1} parent=5 // pred_fallthru
        _
      %p526 = scmp.lt.s32.totalorder %s29, 2
      // Predicated region
      $region81: #{convnet_forward.1} parent=5 // pred_check
        %p527 = pneg %p526
      $region82: #{convnet_forward.1} parent=5 // pred_check_branch
        %529 = sbr.rel (%p527) target = $region84
      $region83: #{convnet_forward.1} parent=5 // pred_region
        // Predicated region
        $region85: #{convnet_forward.1} parent=83 // pred_check
          %p530 = pneg %p49
        $region86: #{convnet_forward.1} parent=83 // pred_check_branch
          %532 = sbr.rel (%p530) target = $region88
        $region87: #{convnet_forward.1} parent=83 // pred_region
          %s533 = smul.u32 8, %s29
          %p534 = scmp.lt.s32.totalorder %s533, 15
          %s535 = scalar_select %p534, %s533, 15
          %s536 = smul.addr %s535, 4
          %s537 = smul.addr %s536, 8
          %s538 = scalar_lea.vmem %s0, %s537
          %s539 = smul.u32 8, %s29
        $region88: #{convnet_forward.1} parent=83 // pred_fallthru
          _
      $region84: #{convnet_forward.1} parent=5 // pred_fallthru
        _
      %p540 = scmp.le.s32.totalorder 1, %s29
      %p541 = scmp.lt.s32.totalorder %s29, 3
      %p542 = pnand %p540, %p541
      %p543 = pneg %p542
      // Predicated region
      $region89: #{convnet_forward.1} parent=5 // pred_check
        _
      $region90: #{convnet_forward.1} parent=5 // pred_check_branch
        %545 = sbr.rel (%p542) target = $region92
      $region91: #{convnet_forward.1} parent=5 // pred_region
        %s546 = ssub.s32 %s29, 1
        // Predicated region
        $region93: #{convnet_forward.1} parent=91 // pred_check
          %p547 = pneg %p181
        $region94: #{convnet_forward.1} parent=91 // pred_check_branch
          %549 = sbr.rel (%p547) target = $region96
        $region95: #{convnet_forward.1} parent=91 // pred_region
          %551 = dma.done [#allocation4], 512
        $region96: #{convnet_forward.1} parent=91 // pred_fallthru
          _
        // Predicated region
        $region97: #{convnet_forward.1} parent=91 // pred_check
          %p552 = pneg %p202
        $region98: #{convnet_forward.1} parent=91 // pred_check_branch
          %554 = sbr.rel (%p552) target = $region100
        $region99: #{convnet_forward.1} parent=91 // pred_region
          %556 = dma.done [#allocation7], 512
        $region100: #{convnet_forward.1} parent=91 // pred_fallthru
          _
        %s557 = smul.u32 8, %s34
        %p558 = scmp.lt.s32.totalorder %s557, 15
        %s559 = scalar_select %p558, %s557, 15
        %s560 = smul.addr %s559, 4
        %s561 = smul.addr %s560, 8
        %s562 = scalar_lea.vmem %s0, %s561
        %p563 = pneg %p55
        %p564 = pneg %p52
        %p565 = pneg %p76
        %p566 = pneg %p73
        %p567 = pneg %p97
        %p568 = pneg %p94
        %p569 = pneg %p118
        %p570 = pneg %p115
        %p571 = pneg %p139
        %p572 = pneg %p136
        %p573 = pneg %p160
        %p574 = pneg %p157
        %p575 = pneg %p181
        %p576 = pneg %p178
        %p577 = pneg %p202
        %p578 = pneg %p199
        %p579 = pneg %p223
        %p580 = pneg %p220
        %p581 = pneg %p244
        %p582 = pneg %p241
        %p583 = pneg %p265
        %p584 = pneg %p262
        %p585 = pneg %p286
        %p586 = pneg %p283
        %p587 = pneg %p307
        %p588 = pneg %p304
        %p589 = pneg %p328
        %p590 = pneg %p325
        %p591 = pneg %p349
        %p592 = pneg %p346
        %p593 = pneg %p370
        %p594 = pneg %p367
        %p595 = pneg %p391
        %p596 = pneg %p388
        %p597 = pneg %p412
        %p598 = pneg %p409
        %p599 = pneg %p438
        %p600 = pneg %p435
        %s601 = sand.u32 %s425, 1
        %s602 = scalar_lea.sflag [#allocation5], %s601
        %s603 = sand.u32 %s425, 1
        %s604 = smul.addr %s603, 8
        %s605 = scalar_lea.vmem [#allocation8], %s604
        %s606 = smul.u32 8, %s34
        %p607 = scmp.lt.s32.totalorder %s606, 15
        %s608 = scalar_select %p607, %s606, 15
        %s609 = smul.addr %s608, 4
        %s610 = smul.addr %s609, 8
        %s611 = scalar_lea.vmem %s0, %s610
        %s612 = smul.u32 8, %s34
        %v613 = vld [vmem:[%s611] sm:$0xff]
        %v614 = vld [vmem:[%s611 + $0x8] sm:$0xff]
        %v615 = vld [vmem:[%s611 + $0x10] sm:$0xff]
        %v616 = vld [vmem:[%s611 + $0x20] sm:$0xff]
        %v617 = vld [vmem:[%s611 + $0x28] sm:$0xff]
        %v618 = vld [vmem:[%s611 + $0x30] sm:$0xff]
        %v619 = vld [vmem:[%s611 + $0x40] sm:$0xff]
        %v620 = vld [vmem:[%s611 + $0x48] sm:$0xff]
        %v621 = vld [vmem:[%s611 + $0x50] sm:$0xff]
        %v622 = vld [vmem:[%s611 + $0x60] sm:$0xff]
        %v623 = vld [vmem:[%s611 + $0x68] sm:$0xff]
        %v624 = vld [vmem:[%s611 + $0x70] sm:$0xff]
        %v625 = vld [vmem:[%s611 + $0x80] sm:$0xff]
        %v626 = vld [vmem:[%s611 + $0x88] sm:$0xff]
        %v627 = vld [vmem:[%s611 + $0x90] sm:$0xff]
        %v628 = vld [vmem:[%s611 + $0xa0] sm:$0xff]
        %v629 = vld [vmem:[%s611 + $0xa8] sm:$0xff]
        %v630 = vld [vmem:[%s611 + $0xb0] sm:$0xff]
        %v631 = vld [vmem:[%s611 + $0xc0] sm:$0xff]
        %v632 = vld [vmem:[%s611 + $0xc8] sm:$0xff]
        %v633 = vld [vmem:[%s611 + $0xd0] sm:$0xff]
        %v634 = vld [vmem:[%s611 + $0xe0] sm:$0xff]
        %v635 = vld [vmem:[%s611 + $0xe8] sm:$0xff]
        %v636 = vld [vmem:[%s611 + $0xf0] sm:$0xff]
        %v637 = vld [vmem:[%s1] sm:$0xff]
        %v638 = vld [vmem:[%s1 + $0x8] sm:$0xff]
        %v639 = vld [vmem:[%s1 + $0x10] sm:$0xff]
        %v640 = vld [vmem:[%s1 + $0x18] sm:$0xff]
        %v641 = vld [vmem:[%s1 + $0x20] sm:$0xff]
        %v642 = vld [vmem:[%s1 + $0x28] sm:$0xff]
        %v643 = vld [vmem:[%s1 + $0x30] sm:$0xf]
        %v644 = vld [vmem:[%s1 + $0x38] sm:$0xf]
        %v645 = vld [vmem:[%s611 + $0x1] sm:$0xff]
        %v646 = vld [vmem:[%s611 + $0x9] sm:$0xff]
        %v647 = vld [vmem:[%s611 + $0x11] sm:$0xff]
        %v648 = vld [vmem:[%s611 + $0x21] sm:$0xff]
        %v649 = vld [vmem:[%s611 + $0x29] sm:$0xff]
        %v650 = vld [vmem:[%s611 + $0x31] sm:$0xff]
        %v651 = vld [vmem:[%s611 + $0x41] sm:$0xff]
        %v652 = vld [vmem:[%s611 + $0x49] sm:$0xff]
        %v653 = vld [vmem:[%s611 + $0x51] sm:$0xff]
        %v654 = vld [vmem:[%s611 + $0x61] sm:$0xff]
        %v655 = vld [vmem:[%s611 + $0x69] sm:$0xff]
        %v656 = vld [vmem:[%s611 + $0x71] sm:$0xff]
        %v657 = vld [vmem:[%s611 + $0x81] sm:$0xff]
        %v658 = vld [vmem:[%s611 + $0x89] sm:$0xff]
        %v659 = vld [vmem:[%s611 + $0x91] sm:$0xff]
        %v660 = vld [vmem:[%s611 + $0xa1] sm:$0xff]
        %v661 = vld [vmem:[%s611 + $0xa9] sm:$0xff]
        %v662 = vld [vmem:[%s611 + $0xb1] sm:$0xff]
        %v663 = vld [vmem:[%s611 + $0xc1] sm:$0xff]
        %v664 = vld [vmem:[%s611 + $0xc9] sm:$0xff]
        %v665 = vld [vmem:[%s611 + $0xd1] sm:$0xff]
        %v666 = vld [vmem:[%s611 + $0xe1] sm:$0xff]
        %v667 = vld [vmem:[%s611 + $0xe9] sm:$0xff]
        %v668 = vld [vmem:[%s611 + $0xf1] sm:$0xff]
        %s669 = scalar_lea.vmem %s1, 64
        %v670 = vld [vmem:[%s669] sm:$0xff]
        %v671 = vld [vmem:[%s669 + $0x8] sm:$0xff]
        %v672 = vld [vmem:[%s669 + $0x10] sm:$0xff]
        %v673 = vld [vmem:[%s669 + $0x18] sm:$0xff]
        %v674 = vld [vmem:[%s669 + $0x20] sm:$0xff]
        %v675 = vld [vmem:[%s669 + $0x28] sm:$0xff]
        %v676 = vld [vmem:[%s669 + $0x30] sm:$0xf]
        %v677 = vld [vmem:[%s669 + $0x38] sm:$0xf]
        %vm678 = vcmask 228352
        %v680 = vsel %vm678, %v645, 0
        %v683 = vsel %vm678, %v646, 0
        %v686 = vsel %vm678, %v647, 0
        %v689 = vsel %vm678, %v648, 0
        %v692 = vsel %vm678, %v649, 0
        %v695 = vsel %vm678, %v650, 0
        %v698 = vsel %vm678, %v651, 0
        %v701 = vsel %vm678, %v652, 0
        %v704 = vsel %vm678, %v653, 0
        %v707 = vsel %vm678, %v654, 0
        %v710 = vsel %vm678, %v655, 0
        %v713 = vsel %vm678, %v656, 0
        %v716 = vsel %vm678, %v657, 0
        %v719 = vsel %vm678, %v658, 0
        %v722 = vsel %vm678, %v659, 0
        %v725 = vsel %vm678, %v660, 0
        %v728 = vsel %vm678, %v661, 0
        %v731 = vsel %vm678, %v662, 0
        %v734 = vsel %vm678, %v663, 0
        %v737 = vsel %vm678, %v664, 0
        %v740 = vsel %vm678, %v665, 0
        %v743 = vsel %vm678, %v666, 0
        %v746 = vsel %vm678, %v667, 0
        %v749 = vsel %vm678, %v668, 0
        %vm751 = vcmask 1043456
        %v753 = vsel %vm751, %v676, 0
        %v756 = vsel %vm751, %v677, 0
        %758 = vmatpush.msra.mxu0 0.0
        %759 = vmatpush.msra.mxu0 0.0
        %760 = vmatpush.msra.mxu0 0.0
        %761 = vmatpush.msra.mxu0 0.0
        %762 = vmatpush.msra.mxu0 0.0
        %763 = vmatpush.msra.mxu0 0.0
        %764 = vmatpush.msra.mxu0 0.0
        %765 = vmatpush.msra.mxu0 0.0
        %766 = vmatpush.msra.mxu0 0.0
        %767 = vmatpush.msra.mxu0 0.0
        %768 = vmatpush.msra.mxu0 0.0
        %769 = vmatpush.msra.mxu0 0.0
        %770 = vmatpush.msra.mxu0 %v753
        %771 = vmatpush.msra.mxu0 %v674
        %772 = vmatpush.msra.mxu0 %v672
        %773 = vmatpush.msra.mxu0 %v670
        %774 = vmatmul.f32.gmra.mxu0 %v680
        %v775 = vpop.f32.mrf.mxu0
        %v776 = vadd.f32 0.0, %v775
        %777 = vmatmul.f32.gmra.mxu0 %v683
        %v778 = vpop.f32.mrf.mxu0
        %v779 = vadd.f32 0.0, %v778
        %780 = vmatmul.f32.gmra.mxu0 %v686
        %v781 = vpop.f32.mrf.mxu0
        %v782 = vadd.f32 0.0, %v781
        %783 = vmatmul.f32.gmra.mxu0 %v689
        %v784 = vpop.f32.mrf.mxu0
        %v785 = vadd.f32 0.0, %v784
        %786 = vmatmul.f32.gmra.mxu0 %v692
        %v787 = vpop.f32.mrf.mxu0
        %v788 = vadd.f32 0.0, %v787
        %789 = vmatmul.f32.gmra.mxu0 %v695
        %v790 = vpop.f32.mrf.mxu0
        %v791 = vadd.f32 0.0, %v790
        %792 = vmatmul.f32.gmra.mxu0 %v698
        %v793 = vpop.f32.mrf.mxu0
        %v794 = vadd.f32 0.0, %v793
        %795 = vmatmul.f32.gmra.mxu0 %v701
        %v796 = vpop.f32.mrf.mxu0
        %v797 = vadd.f32 0.0, %v796
        %798 = vmatmul.f32.gmra.mxu0 %v704
        %v799 = vpop.f32.mrf.mxu0
        %v800 = vadd.f32 0.0, %v799
        %801 = vmatmul.f32.gmra.mxu0 %v707
        %v802 = vpop.f32.mrf.mxu0
        %v803 = vadd.f32 0.0, %v802
        %804 = vmatmul.f32.gmra.mxu0 %v710
        %v805 = vpop.f32.mrf.mxu0
        %v806 = vadd.f32 0.0, %v805
        %807 = vmatmul.f32.gmra.mxu0 %v713
        %v808 = vpop.f32.mrf.mxu0
        %v809 = vadd.f32 0.0, %v808
        %810 = vmatmul.f32.gmra.mxu0 %v716
        %v811 = vpop.f32.mrf.mxu0
        %v812 = vadd.f32 0.0, %v811
        %813 = vmatmul.f32.gmra.mxu0 %v719
        %v814 = vpop.f32.mrf.mxu0
        %v815 = vadd.f32 0.0, %v814
        %816 = vmatmul.f32.gmra.mxu0 %v722
        %v817 = vpop.f32.mrf.mxu0
        %v818 = vadd.f32 0.0, %v817
        %819 = vmatmul.f32.gmra.mxu0 %v725
        %v820 = vpop.f32.mrf.mxu0
        %v821 = vadd.f32 0.0, %v820
        %822 = vmatmul.f32.gmra.mxu0 %v728
        %v823 = vpop.f32.mrf.mxu0
        %v824 = vadd.f32 0.0, %v823
        %825 = vmatmul.f32.gmra.mxu0 %v731
        %v826 = vpop.f32.mrf.mxu0
        %v827 = vadd.f32 0.0, %v826
        %828 = vmatmul.f32.gmra.mxu0 %v734
        %v829 = vpop.f32.mrf.mxu0
        %v830 = vadd.f32 0.0, %v829
        %831 = vmatmul.f32.gmra.mxu0 %v737
        %v832 = vpop.f32.mrf.mxu0
        %v833 = vadd.f32 0.0, %v832
        %834 = vmatmul.f32.gmra.mxu0 %v740
        %v835 = vpop.f32.mrf.mxu0
        %v836 = vadd.f32 0.0, %v835
        %837 = vmatmul.f32.gmra.mxu0 %v743
        %v838 = vpop.f32.mrf.mxu0
        %v839 = vadd.f32 0.0, %v838
        %840 = vmatmul.f32.gmra.mxu0 %v746
        %v841 = vpop.f32.mrf.mxu0
        %v842 = vadd.f32 0.0, %v841
        %843 = vmatmul.f32.gmra.mxu0 %v749
        %v844 = vpop.f32.mrf.mxu0
        %v845 = vadd.f32 0.0, %v844
        %846 = vdwg.mxu0
        %847 = vmatpush.msra.mxu0 0.0
        %848 = vmatpush.msra.mxu0 0.0
        %849 = vmatpush.msra.mxu0 0.0
        %850 = vmatpush.msra.mxu0 0.0
        %851 = vmatpush.msra.mxu0 0.0
        %852 = vmatpush.msra.mxu0 0.0
        %853 = vmatpush.msra.mxu0 0.0
        %854 = vmatpush.msra.mxu0 0.0
        %855 = vmatpush.msra.mxu0 0.0
        %856 = vmatpush.msra.mxu0 0.0
        %857 = vmatpush.msra.mxu0 0.0
        %858 = vmatpush.msra.mxu0 0.0
        %859 = vmatpush.msra.mxu0 %v756
        %860 = vmatpush.msra.mxu0 %v675
        %861 = vmatpush.msra.mxu0 %v673
        %862 = vmatpush.msra.mxu0 %v671
        %863 = vmatmul.f32.gmra.mxu0 %v680
        %v864 = vpop.f32.mrf.mxu0
        %v865 = vadd.f32 0.0, %v864
        %866 = vmatmul.f32.gmra.mxu0 %v683
        %v867 = vpop.f32.mrf.mxu0
        %v868 = vadd.f32 0.0, %v867
        %869 = vmatmul.f32.gmra.mxu0 %v686
        %v870 = vpop.f32.mrf.mxu0
        %v871 = vadd.f32 0.0, %v870
        %872 = vmatmul.f32.gmra.mxu0 %v689
        %v873 = vpop.f32.mrf.mxu0
        %v874 = vadd.f32 0.0, %v873
        %875 = vmatmul.f32.gmra.mxu0 %v692
        %v876 = vpop.f32.mrf.mxu0
        %v877 = vadd.f32 0.0, %v876
        %878 = vmatmul.f32.gmra.mxu0 %v695
        %v879 = vpop.f32.mrf.mxu0
        %v880 = vadd.f32 0.0, %v879
        %881 = vmatmul.f32.gmra.mxu0 %v698
        %v882 = vpop.f32.mrf.mxu0
        %v883 = vadd.f32 0.0, %v882
        %884 = vmatmul.f32.gmra.mxu0 %v701
        %v885 = vpop.f32.mrf.mxu0
        %v886 = vadd.f32 0.0, %v885
        %887 = vmatmul.f32.gmra.mxu0 %v704
        %v888 = vpop.f32.mrf.mxu0
        %v889 = vadd.f32 0.0, %v888
        %890 = vmatmul.f32.gmra.mxu0 %v707
        %v891 = vpop.f32.mrf.mxu0
        %v892 = vadd.f32 0.0, %v891
        %893 = vmatmul.f32.gmra.mxu0 %v710
        %v894 = vpop.f32.mrf.mxu0
        %v895 = vadd.f32 0.0, %v894
        %896 = vmatmul.f32.gmra.mxu0 %v713
        %v897 = vpop.f32.mrf.mxu0
        %v898 = vadd.f32 0.0, %v897
        %899 = vmatmul.f32.gmra.mxu0 %v716
        %v900 = vpop.f32.mrf.mxu0
        %v901 = vadd.f32 0.0, %v900
        %902 = vmatmul.f32.gmra.mxu0 %v719
        %v903 = vpop.f32.mrf.mxu0
        %v904 = vadd.f32 0.0, %v903
        %905 = vmatmul.f32.gmra.mxu0 %v722
        %v906 = vpop.f32.mrf.mxu0
        %v907 = vadd.f32 0.0, %v906
        %908 = vmatmul.f32.gmra.mxu0 %v725
        %v909 = vpop.f32.mrf.mxu0
        %v910 = vadd.f32 0.0, %v909
        %911 = vmatmul.f32.gmra.mxu0 %v728
        %v912 = vpop.f32.mrf.mxu0
        %v913 = vadd.f32 0.0, %v912
        %914 = vmatmul.f32.gmra.mxu0 %v731
        %v915 = vpop.f32.mrf.mxu0
        %v916 = vadd.f32 0.0, %v915
        %917 = vmatmul.f32.gmra.mxu0 %v734
        %v918 = vpop.f32.mrf.mxu0
        %v919 = vadd.f32 0.0, %v918
        %920 = vmatmul.f32.gmra.mxu0 %v737
        %v921 = vpop.f32.mrf.mxu0
        %v922 = vadd.f32 0.0, %v921
        %923 = vmatmul.f32.gmra.mxu0 %v740
        %v924 = vpop.f32.mrf.mxu0
        %v925 = vadd.f32 0.0, %v924
        %926 = vmatmul.f32.gmra.mxu0 %v743
        %v927 = vpop.f32.mrf.mxu0
        %v928 = vadd.f32 0.0, %v927
        %929 = vmatmul.f32.gmra.mxu0 %v746
        %v930 = vpop.f32.mrf.mxu0
        %v931 = vadd.f32 0.0, %v930
        %932 = vmatmul.f32.gmra.mxu0 %v749
        %v933 = vpop.f32.mrf.mxu0
        %v934 = vadd.f32 0.0, %v933
        %935 = vdwg.mxu0
        %v937 = vsel %vm678, %v613, 0
        %v940 = vsel %vm678, %v614, 0
        %v943 = vsel %vm678, %v615, 0
        %v946 = vsel %vm678, %v616, 0
        %v949 = vsel %vm678, %v617, 0
        %v952 = vsel %vm678, %v618, 0
        %v955 = vsel %vm678, %v619, 0
        %v958 = vsel %vm678, %v620, 0
        %v961 = vsel %vm678, %v621, 0
        %v964 = vsel %vm678, %v622, 0
        %v967 = vsel %vm678, %v623, 0
        %v970 = vsel %vm678, %v624, 0
        %v973 = vsel %vm678, %v625, 0
        %v976 = vsel %vm678, %v626, 0
        %v979 = vsel %vm678, %v627, 0
        %v982 = vsel %vm678, %v628, 0
        %v985 = vsel %vm678, %v629, 0
        %v988 = vsel %vm678, %v630, 0
        %v991 = vsel %vm678, %v631, 0
        %v994 = vsel %vm678, %v632, 0
        %v997 = vsel %vm678, %v633, 0
        %v1000 = vsel %vm678, %v634, 0
        %v1003 = vsel %vm678, %v635, 0
        %v1006 = vsel %vm678, %v636, 0
        %v1009 = vsel %vm751, %v643, 0
        %v1012 = vsel %vm751, %v644, 0
        %1014 = vmatpush.msra.mxu0 0.0
        %1015 = vmatpush.msra.mxu0 0.0
        %1016 = vmatpush.msra.mxu0 0.0
        %1017 = vmatpush.msra.mxu0 0.0
        %1018 = vmatpush.msra.mxu0 0.0
        %1019 = vmatpush.msra.mxu0 0.0
        %1020 = vmatpush.msra.mxu0 0.0
        %1021 = vmatpush.msra.mxu0 0.0
        %1022 = vmatpush.msra.mxu0 0.0
        %1023 = vmatpush.msra.mxu0 0.0
        %1024 = vmatpush.msra.mxu0 0.0
        %1025 = vmatpush.msra.mxu0 0.0
        %1026 = vmatpush.msra.mxu0 %v1009
        %1027 = vmatpush.msra.mxu0 %v641
        %1028 = vmatpush.msra.mxu0 %v639
        %1029 = vmatpush.msra.mxu0 %v637
        %1030 = vmatmul.f32.gmra.mxu0 %v937
        %v1031 = vpop.f32.mrf.mxu0
        %v1032 = vadd.f32 %v776, %v1031
        %1033 = vmatmul.f32.gmra.mxu0 %v940
        %v1034 = vpop.f32.mrf.mxu0
        %v1035 = vadd.f32 %v779, %v1034
        %1036 = vmatmul.f32.gmra.mxu0 %v943
        %v1037 = vpop.f32.mrf.mxu0
        %v1038 = vadd.f32 %v782, %v1037
        %1039 = vmatmul.f32.gmra.mxu0 %v946
        %v1040 = vpop.f32.mrf.mxu0
        %v1041 = vadd.f32 %v785, %v1040
        %1042 = vmatmul.f32.gmra.mxu0 %v949
        %v1043 = vpop.f32.mrf.mxu0
        %v1044 = vadd.f32 %v788, %v1043
        %1045 = vmatmul.f32.gmra.mxu0 %v952
        %v1046 = vpop.f32.mrf.mxu0
        %v1047 = vadd.f32 %v791, %v1046
        %1048 = vmatmul.f32.gmra.mxu0 %v955
        %v1049 = vpop.f32.mrf.mxu0
        %v1050 = vadd.f32 %v794, %v1049
        %1051 = vmatmul.f32.gmra.mxu0 %v958
        %v1052 = vpop.f32.mrf.mxu0
        %v1053 = vadd.f32 %v797, %v1052
        %1054 = vmatmul.f32.gmra.mxu0 %v961
        %v1055 = vpop.f32.mrf.mxu0
        %v1056 = vadd.f32 %v800, %v1055
        %1057 = vmatmul.f32.gmra.mxu0 %v964
        %v1058 = vpop.f32.mrf.mxu0
        %v1059 = vadd.f32 %v803, %v1058
        %1060 = vmatmul.f32.gmra.mxu0 %v967
        %v1061 = vpop.f32.mrf.mxu0
        %v1062 = vadd.f32 %v806, %v1061
        %1063 = vmatmul.f32.gmra.mxu0 %v970
        %v1064 = vpop.f32.mrf.mxu0
        %v1065 = vadd.f32 %v809, %v1064
        %1066 = vmatmul.f32.gmra.mxu0 %v973
        %v1067 = vpop.f32.mrf.mxu0
        %v1068 = vadd.f32 %v812, %v1067
        %1069 = vmatmul.f32.gmra.mxu0 %v976
        %v1070 = vpop.f32.mrf.mxu0
        %v1071 = vadd.f32 %v815, %v1070
        %1072 = vmatmul.f32.gmra.mxu0 %v979
        %v1073 = vpop.f32.mrf.mxu0
        %v1074 = vadd.f32 %v818, %v1073
        %1075 = vmatmul.f32.gmra.mxu0 %v982
        %v1076 = vpop.f32.mrf.mxu0
        %v1077 = vadd.f32 %v821, %v1076
        %1078 = vmatmul.f32.gmra.mxu0 %v985
        %v1079 = vpop.f32.mrf.mxu0
        %v1080 = vadd.f32 %v824, %v1079
        %1081 = vmatmul.f32.gmra.mxu0 %v988
        %v1082 = vpop.f32.mrf.mxu0
        %v1083 = vadd.f32 %v827, %v1082
        %1084 = vmatmul.f32.gmra.mxu0 %v991
        %v1085 = vpop.f32.mrf.mxu0
        %v1086 = vadd.f32 %v830, %v1085
        %1087 = vmatmul.f32.gmra.mxu0 %v994
        %v1088 = vpop.f32.mrf.mxu0
        %v1089 = vadd.f32 %v833, %v1088
        %1090 = vmatmul.f32.gmra.mxu0 %v997
        %v1091 = vpop.f32.mrf.mxu0
        %v1092 = vadd.f32 %v836, %v1091
        %1093 = vmatmul.f32.gmra.mxu0 %v1000
        %v1094 = vpop.f32.mrf.mxu0
        %v1095 = vadd.f32 %v839, %v1094
        %1096 = vmatmul.f32.gmra.mxu0 %v1003
        %v1097 = vpop.f32.mrf.mxu0
        %v1098 = vadd.f32 %v842, %v1097
        %1099 = vmatmul.f32.gmra.mxu0 %v1006
        %v1100 = vpop.f32.mrf.mxu0
        %v1101 = vadd.f32 %v845, %v1100
        %1102 = vdwg.mxu0
        %1103 = vmatpush.msra.mxu0 0.0
        %1104 = vmatpush.msra.mxu0 0.0
        %1105 = vmatpush.msra.mxu0 0.0
        %1106 = vmatpush.msra.mxu0 0.0
        %1107 = vmatpush.msra.mxu0 0.0
        %1108 = vmatpush.msra.mxu0 0.0
        %1109 = vmatpush.msra.mxu0 0.0
        %1110 = vmatpush.msra.mxu0 0.0
        %1111 = vmatpush.msra.mxu0 0.0
        %1112 = vmatpush.msra.mxu0 0.0
        %1113 = vmatpush.msra.mxu0 0.0
        %1114 = vmatpush.msra.mxu0 0.0
        %1115 = vmatpush.msra.mxu0 %v1012
        %1116 = vmatpush.msra.mxu0 %v642
        %1117 = vmatpush.msra.mxu0 %v640
        %1118 = vmatpush.msra.mxu0 %v638
        %1119 = vmatmul.f32.gmra.mxu0 %v937
        %v1120 = vpop.f32.mrf.mxu0
        %v1121 = vadd.f32 %v865, %v1120
        %1122 = vmatmul.f32.gmra.mxu0 %v940
        %v1123 = vpop.f32.mrf.mxu0
        %v1124 = vadd.f32 %v868, %v1123
        %1125 = vmatmul.f32.gmra.mxu0 %v943
        %v1126 = vpop.f32.mrf.mxu0
        %v1127 = vadd.f32 %v871, %v1126
        %1128 = vmatmul.f32.gmra.mxu0 %v946
        %v1129 = vpop.f32.mrf.mxu0
        %v1130 = vadd.f32 %v874, %v1129
        %1131 = vmatmul.f32.gmra.mxu0 %v949
        %v1132 = vpop.f32.mrf.mxu0
        %v1133 = vadd.f32 %v877, %v1132
        %1134 = vmatmul.f32.gmra.mxu0 %v952
        %v1135 = vpop.f32.mrf.mxu0
        %v1136 = vadd.f32 %v880, %v1135
        %1137 = vmatmul.f32.gmra.mxu0 %v955
        %v1138 = vpop.f32.mrf.mxu0
        %v1139 = vadd.f32 %v883, %v1138
        %1140 = vmatmul.f32.gmra.mxu0 %v958
        %v1141 = vpop.f32.mrf.mxu0
        %v1142 = vadd.f32 %v886, %v1141
        %1143 = vmatmul.f32.gmra.mxu0 %v961
        %v1144 = vpop.f32.mrf.mxu0
        %v1145 = vadd.f32 %v889, %v1144
        %1146 = vmatmul.f32.gmra.mxu0 %v964
        %v1147 = vpop.f32.mrf.mxu0
        %v1148 = vadd.f32 %v892, %v1147
        %1149 = vmatmul.f32.gmra.mxu0 %v967
        %v1150 = vpop.f32.mrf.mxu0
        %v1151 = vadd.f32 %v895, %v1150
        %1152 = vmatmul.f32.gmra.mxu0 %v970
        %v1153 = vpop.f32.mrf.mxu0
        %v1154 = vadd.f32 %v898, %v1153
        %1155 = vmatmul.f32.gmra.mxu0 %v973
        %v1156 = vpop.f32.mrf.mxu0
        %v1157 = vadd.f32 %v901, %v1156
        %1158 = vmatmul.f32.gmra.mxu0 %v976
        %v1159 = vpop.f32.mrf.mxu0
        %v1160 = vadd.f32 %v904, %v1159
        %1161 = vmatmul.f32.gmra.mxu0 %v979
        %v1162 = vpop.f32.mrf.mxu0
        %v1163 = vadd.f32 %v907, %v1162
        %1164 = vmatmul.f32.gmra.mxu0 %v982
        %v1165 = vpop.f32.mrf.mxu0
        %v1166 = vadd.f32 %v910, %v1165
        %1167 = vmatmul.f32.gmra.mxu0 %v985
        %v1168 = vpop.f32.mrf.mxu0
        %v1169 = vadd.f32 %v913, %v1168
        %1170 = vmatmul.f32.gmra.mxu0 %v988
        %v1171 = vpop.f32.mrf.mxu0
        %v1172 = vadd.f32 %v916, %v1171
        %1173 = vmatmul.f32.gmra.mxu0 %v991
        %v1174 = vpop.f32.mrf.mxu0
        %v1175 = vadd.f32 %v919, %v1174
        %1176 = vmatmul.f32.gmra.mxu0 %v994
        %v1177 = vpop.f32.mrf.mxu0
        %v1178 = vadd.f32 %v922, %v1177
        %1179 = vmatmul.f32.gmra.mxu0 %v997
        %v1180 = vpop.f32.mrf.mxu0
        %v1181 = vadd.f32 %v925, %v1180
        %1182 = vmatmul.f32.gmra.mxu0 %v1000
        %v1183 = vpop.f32.mrf.mxu0
        %v1184 = vadd.f32 %v928, %v1183
        %1185 = vmatmul.f32.gmra.mxu0 %v1003
        %v1186 = vpop.f32.mrf.mxu0
        %v1187 = vadd.f32 %v931, %v1186
        %1188 = vmatmul.f32.gmra.mxu0 %v1006
        %v1189 = vpop.f32.mrf.mxu0
        %v1190 = vadd.f32 %v934, %v1189
        %1191 = vdwg.mxu0
        %v1192 = vld [vmem:[%s611 + $0x2] sm:$0xff]
        %v1193 = vld [vmem:[%s611 + $0xa] sm:$0xff]
        %v1194 = vld [vmem:[%s611 + $0x12] sm:$0xff]
        %v1195 = vld [vmem:[%s611 + $0x22] sm:$0xff]
        %v1196 = vld [vmem:[%s611 + $0x2a] sm:$0xff]
        %v1197 = vld [vmem:[%s611 + $0x32] sm:$0xff]
        %v1198 = vld [vmem:[%s611 + $0x42] sm:$0xff]
        %v1199 = vld [vmem:[%s611 + $0x4a] sm:$0xff]
        %v1200 = vld [vmem:[%s611 + $0x52] sm:$0xff]
        %v1201 = vld [vmem:[%s611 + $0x62] sm:$0xff]
        %v1202 = vld [vmem:[%s611 + $0x6a] sm:$0xff]
        %v1203 = vld [vmem:[%s611 + $0x72] sm:$0xff]
        %v1204 = vld [vmem:[%s611 + $0x82] sm:$0xff]
        %v1205 = vld [vmem:[%s611 + $0x8a] sm:$0xff]
        %v1206 = vld [vmem:[%s611 + $0x92] sm:$0xff]
        %v1207 = vld [vmem:[%s611 + $0xa2] sm:$0xff]
        %v1208 = vld [vmem:[%s611 + $0xaa] sm:$0xff]
        %v1209 = vld [vmem:[%s611 + $0xb2] sm:$0xff]
        %v1210 = vld [vmem:[%s611 + $0xc2] sm:$0xff]
        %v1211 = vld [vmem:[%s611 + $0xca] sm:$0xff]
        %v1212 = vld [vmem:[%s611 + $0xd2] sm:$0xff]
        %v1213 = vld [vmem:[%s611 + $0xe2] sm:$0xff]
        %v1214 = vld [vmem:[%s611 + $0xea] sm:$0xff]
        %v1215 = vld [vmem:[%s611 + $0xf2] sm:$0xff]
        %s1216 = scalar_lea.vmem %s1, 128
        %v1217 = vld [vmem:[%s1216] sm:$0xff]
        %v1218 = vld [vmem:[%s1216 + $0x8] sm:$0xff]
        %v1219 = vld [vmem:[%s1216 + $0x10] sm:$0xff]
        %v1220 = vld [vmem:[%s1216 + $0x18] sm:$0xff]
        %v1221 = vld [vmem:[%s1216 + $0x20] sm:$0xff]
        %v1222 = vld [vmem:[%s1216 + $0x28] sm:$0xff]
        %v1223 = vld [vmem:[%s1216 + $0x30] sm:$0xf]
        %v1224 = vld [vmem:[%s1216 + $0x38] sm:$0xf]
        %v1226 = vsel %vm678, %v1192, 0
        %v1229 = vsel %vm678, %v1193, 0
        %v1232 = vsel %vm678, %v1194, 0
        %v1235 = vsel %vm678, %v1195, 0
        %v1238 = vsel %vm678, %v1196, 0
        %v1241 = vsel %vm678, %v1197, 0
        %v1244 = vsel %vm678, %v1198, 0
        %v1247 = vsel %vm678, %v1199, 0
        %v1250 = vsel %vm678, %v1200, 0
        %v1253 = vsel %vm678, %v1201, 0
        %v1256 = vsel %vm678, %v1202, 0
        %v1259 = vsel %vm678, %v1203, 0
        %v1262 = vsel %vm678, %v1204, 0
        %v1265 = vsel %vm678, %v1205, 0
        %v1268 = vsel %vm678, %v1206, 0
        %v1271 = vsel %vm678, %v1207, 0
        %v1274 = vsel %vm678, %v1208, 0
        %v1277 = vsel %vm678, %v1209, 0
        %v1280 = vsel %vm678, %v1210, 0
        %v1283 = vsel %vm678, %v1211, 0
        %v1286 = vsel %vm678, %v1212, 0
        %v1289 = vsel %vm678, %v1213, 0
        %v1292 = vsel %vm678, %v1214, 0
        %v1295 = vsel %vm678, %v1215, 0
        %v1298 = vsel %vm751, %v1223, 0
        %v1301 = vsel %vm751, %v1224, 0
        %1303 = vmatpush.msra.mxu0 0.0
        %1304 = vmatpush.msra.mxu0 0.0
        %1305 = vmatpush.msra.mxu0 0.0
        %1306 = vmatpush.msra.mxu0 0.0
        %1307 = vmatpush.msra.mxu0 0.0
        %1308 = vmatpush.msra.mxu0 0.0
        %1309 = vmatpush.msra.mxu0 0.0
        %1310 = vmatpush.msra.mxu0 0.0
        %1311 = vmatpush.msra.mxu0 0.0
        %1312 = vmatpush.msra.mxu0 0.0
        %1313 = vmatpush.msra.mxu0 0.0
        %1314 = vmatpush.msra.mxu0 0.0
        %1315 = vmatpush.msra.mxu0 %v1298
        %1316 = vmatpush.msra.mxu0 %v1221
        %1317 = vmatpush.msra.mxu0 %v1219
        %1318 = vmatpush.msra.mxu0 %v1217
        %1319 = vmatmul.f32.gmra.mxu0 %v1226
        %v1320 = vpop.f32.mrf.mxu0
        %v1321 = vadd.f32 0.0, %v1320
        %1322 = vmatmul.f32.gmra.mxu0 %v1229
        %v1323 = vpop.f32.mrf.mxu0
        %v1324 = vadd.f32 0.0, %v1323
        %1325 = vmatmul.f32.gmra.mxu0 %v1232
        %v1326 = vpop.f32.mrf.mxu0
        %v1327 = vadd.f32 0.0, %v1326
        %1328 = vmatmul.f32.gmra.mxu0 %v1235
        %v1329 = vpop.f32.mrf.mxu0
        %v1330 = vadd.f32 0.0, %v1329
        %1331 = vmatmul.f32.gmra.mxu0 %v1238
        %v1332 = vpop.f32.mrf.mxu0
        %v1333 = vadd.f32 0.0, %v1332
        %1334 = vmatmul.f32.gmra.mxu0 %v1241
        %v1335 = vpop.f32.mrf.mxu0
        %v1336 = vadd.f32 0.0, %v1335
        %1337 = vmatmul.f32.gmra.mxu0 %v1244
        %v1338 = vpop.f32.mrf.mxu0
        %v1339 = vadd.f32 0.0, %v1338
        %1340 = vmatmul.f32.gmra.mxu0 %v1247
        %v1341 = vpop.f32.mrf.mxu0
        %v1342 = vadd.f32 0.0, %v1341
        %1343 = vmatmul.f32.gmra.mxu0 %v1250
        %v1344 = vpop.f32.mrf.mxu0
        %v1345 = vadd.f32 0.0, %v1344
        %1346 = vmatmul.f32.gmra.mxu0 %v1253
        %v1347 = vpop.f32.mrf.mxu0
        %v1348 = vadd.f32 0.0, %v1347
        %1349 = vmatmul.f32.gmra.mxu0 %v1256
        %v1350 = vpop.f32.mrf.mxu0
        %v1351 = vadd.f32 0.0, %v1350
        %1352 = vmatmul.f32.gmra.mxu0 %v1259
        %v1353 = vpop.f32.mrf.mxu0
        %v1354 = vadd.f32 0.0, %v1353
        %1355 = vmatmul.f32.gmra.mxu0 %v1262
        %v1356 = vpop.f32.mrf.mxu0
        %v1357 = vadd.f32 0.0, %v1356
        %1358 = vmatmul.f32.gmra.mxu0 %v1265
        %v1359 = vpop.f32.mrf.mxu0
        %v1360 = vadd.f32 0.0, %v1359
        %1361 = vmatmul.f32.gmra.mxu0 %v1268
        %v1362 = vpop.f32.mrf.mxu0
        %v1363 = vadd.f32 0.0, %v1362
        %1364 = vmatmul.f32.gmra.mxu0 %v1271
        %v1365 = vpop.f32.mrf.mxu0
        %v1366 = vadd.f32 0.0, %v1365
        %1367 = vmatmul.f32.gmra.mxu0 %v1274
        %v1368 = vpop.f32.mrf.mxu0
        %v1369 = vadd.f32 0.0, %v1368
        %1370 = vmatmul.f32.gmra.mxu0 %v1277
        %v1371 = vpop.f32.mrf.mxu0
        %v1372 = vadd.f32 0.0, %v1371
        %1373 = vmatmul.f32.gmra.mxu0 %v1280
        %v1374 = vpop.f32.mrf.mxu0
        %v1375 = vadd.f32 0.0, %v1374
        %1376 = vmatmul.f32.gmra.mxu0 %v1283
        %v1377 = vpop.f32.mrf.mxu0
        %v1378 = vadd.f32 0.0, %v1377
        %1379 = vmatmul.f32.gmra.mxu0 %v1286
        %v1380 = vpop.f32.mrf.mxu0
        %v1381 = vadd.f32 0.0, %v1380
        %1382 = vmatmul.f32.gmra.mxu0 %v1289
        %v1383 = vpop.f32.mrf.mxu0
        %v1384 = vadd.f32 0.0, %v1383
        %1385 = vmatmul.f32.gmra.mxu0 %v1292
        %v1386 = vpop.f32.mrf.mxu0
        %v1387 = vadd.f32 0.0, %v1386
        %1388 = vmatmul.f32.gmra.mxu0 %v1295
        %v1389 = vpop.f32.mrf.mxu0
        %v1390 = vadd.f32 0.0, %v1389
        %1391 = vdwg.mxu0
        %1392 = vmatpush.msra.mxu0 0.0
        %1393 = vmatpush.msra.mxu0 0.0
        %1394 = vmatpush.msra.mxu0 0.0
        %1395 = vmatpush.msra.mxu0 0.0
        %1396 = vmatpush.msra.mxu0 0.0
        %1397 = vmatpush.msra.mxu0 0.0
        %1398 = vmatpush.msra.mxu0 0.0
        %1399 = vmatpush.msra.mxu0 0.0
        %1400 = vmatpush.msra.mxu0 0.0
        %1401 = vmatpush.msra.mxu0 0.0
        %1402 = vmatpush.msra.mxu0 0.0
        %1403 = vmatpush.msra.mxu0 0.0
        %1404 = vmatpush.msra.mxu0 %v1301
        %1405 = vmatpush.msra.mxu0 %v1222
        %1406 = vmatpush.msra.mxu0 %v1220
        %1407 = vmatpush.msra.mxu0 %v1218
        %1408 = vmatmul.f32.gmra.mxu0 %v1226
        %v1409 = vpop.f32.mrf.mxu0
        %v1410 = vadd.f32 0.0, %v1409
        %1411 = vmatmul.f32.gmra.mxu0 %v1229
        %v1412 = vpop.f32.mrf.mxu0
        %v1413 = vadd.f32 0.0, %v1412
        %1414 = vmatmul.f32.gmra.mxu0 %v1232
        %v1415 = vpop.f32.mrf.mxu0
        %v1416 = vadd.f32 0.0, %v1415
        %1417 = vmatmul.f32.gmra.mxu0 %v1235
        %v1418 = vpop.f32.mrf.mxu0
        %v1419 = vadd.f32 0.0, %v1418
        %1420 = vmatmul.f32.gmra.mxu0 %v1238
        %v1421 = vpop.f32.mrf.mxu0
        %v1422 = vadd.f32 0.0, %v1421
        %1423 = vmatmul.f32.gmra.mxu0 %v1241
        %v1424 = vpop.f32.mrf.mxu0
        %v1425 = vadd.f32 0.0, %v1424
        %1426 = vmatmul.f32.gmra.mxu0 %v1244
        %v1427 = vpop.f32.mrf.mxu0
        %v1428 = vadd.f32 0.0, %v1427
        %1429 = vmatmul.f32.gmra.mxu0 %v1247
        %v1430 = vpop.f32.mrf.mxu0
        %v1431 = vadd.f32 0.0, %v1430
        %1432 = vmatmul.f32.gmra.mxu0 %v1250
        %v1433 = vpop.f32.mrf.mxu0
        %v1434 = vadd.f32 0.0, %v1433
        %1435 = vmatmul.f32.gmra.mxu0 %v1253
        %v1436 = vpop.f32.mrf.mxu0
        %v1437 = vadd.f32 0.0, %v1436
        %1438 = vmatmul.f32.gmra.mxu0 %v1256
        %v1439 = vpop.f32.mrf.mxu0
        %v1440 = vadd.f32 0.0, %v1439
        %1441 = vmatmul.f32.gmra.mxu0 %v1259
        %v1442 = vpop.f32.mrf.mxu0
        %v1443 = vadd.f32 0.0, %v1442
        %1444 = vmatmul.f32.gmra.mxu0 %v1262
        %v1445 = vpop.f32.mrf.mxu0
        %v1446 = vadd.f32 0.0, %v1445
        %1447 = vmatmul.f32.gmra.mxu0 %v1265
        %v1448 = vpop.f32.mrf.mxu0
        %v1449 = vadd.f32 0.0, %v1448
        %1450 = vmatmul.f32.gmra.mxu0 %v1268
        %v1451 = vpop.f32.mrf.mxu0
        %v1452 = vadd.f32 0.0, %v1451
        %1453 = vmatmul.f32.gmra.mxu0 %v1271
        %v1454 = vpop.f32.mrf.mxu0
        %v1455 = vadd.f32 0.0, %v1454
        %1456 = vmatmul.f32.gmra.mxu0 %v1274
        %v1457 = vpop.f32.mrf.mxu0
        %v1458 = vadd.f32 0.0, %v1457
        %1459 = vmatmul.f32.gmra.mxu0 %v1277
        %v1460 = vpop.f32.mrf.mxu0
        %v1461 = vadd.f32 0.0, %v1460
        %1462 = vmatmul.f32.gmra.mxu0 %v1280
        %v1463 = vpop.f32.mrf.mxu0
        %v1464 = vadd.f32 0.0, %v1463
        %1465 = vmatmul.f32.gmra.mxu0 %v1283
        %v1466 = vpop.f32.mrf.mxu0
        %v1467 = vadd.f32 0.0, %v1466
        %1468 = vmatmul.f32.gmra.mxu0 %v1286
        %v1469 = vpop.f32.mrf.mxu0
        %v1470 = vadd.f32 0.0, %v1469
        %1471 = vmatmul.f32.gmra.mxu0 %v1289
        %v1472 = vpop.f32.mrf.mxu0
        %v1473 = vadd.f32 0.0, %v1472
        %1474 = vmatmul.f32.gmra.mxu0 %v1292
        %v1475 = vpop.f32.mrf.mxu0
        %v1476 = vadd.f32 0.0, %v1475
        %1477 = vmatmul.f32.gmra.mxu0 %v1295
        %v1478 = vpop.f32.mrf.mxu0
        %v1479 = vadd.f32 0.0, %v1478
        %1480 = vdwg.mxu0
        %v1481 = vadd.f32 %v1032, %v1321
        %v1482 = vadd.f32 %v1121, %v1410
        %v1483 = vadd.f32 %v1035, %v1324
        %v1484 = vadd.f32 %v1124, %v1413
        %v1485 = vadd.f32 %v1038, %v1327
        %v1486 = vadd.f32 %v1127, %v1416
        %v1487 = vadd.f32 %v1041, %v1330
        %v1488 = vadd.f32 %v1130, %v1419
        %v1489 = vadd.f32 %v1044, %v1333
        %v1490 = vadd.f32 %v1133, %v1422
        %v1491 = vadd.f32 %v1047, %v1336
        %v1492 = vadd.f32 %v1136, %v1425
        %v1493 = vadd.f32 %v1050, %v1339
        %v1494 = vadd.f32 %v1139, %v1428
        %v1495 = vadd.f32 %v1053, %v1342
        %v1496 = vadd.f32 %v1142, %v1431
        %v1497 = vadd.f32 %v1056, %v1345
        %v1498 = vadd.f32 %v1145, %v1434
        %v1499 = vadd.f32 %v1059, %v1348
        %v1500 = vadd.f32 %v1148, %v1437
        %v1501 = vadd.f32 %v1062, %v1351
        %v1502 = vadd.f32 %v1151, %v1440
        %v1503 = vadd.f32 %v1065, %v1354
        %v1504 = vadd.f32 %v1154, %v1443
        %v1505 = vadd.f32 %v1068, %v1357
        %v1506 = vadd.f32 %v1157, %v1446
        %v1507 = vadd.f32 %v1071, %v1360
        %v1508 = vadd.f32 %v1160, %v1449
        %v1509 = vadd.f32 %v1074, %v1363
        %v1510 = vadd.f32 %v1163, %v1452
        %v1511 = vadd.f32 %v1077, %v1366
        %v1512 = vadd.f32 %v1166, %v1455
        %v1513 = vadd.f32 %v1080, %v1369
        %v1514 = vadd.f32 %v1169, %v1458
        %v1515 = vadd.f32 %v1083, %v1372
        %v1516 = vadd.f32 %v1172, %v1461
        %v1517 = vadd.f32 %v1086, %v1375
        %v1518 = vadd.f32 %v1175, %v1464
        %v1519 = vadd.f32 %v1089, %v1378
        %v1520 = vadd.f32 %v1178, %v1467
        %v1521 = vadd.f32 %v1092, %v1381
        %v1522 = vadd.f32 %v1181, %v1470
        %v1523 = vadd.f32 %v1095, %v1384
        %v1524 = vadd.f32 %v1184, %v1473
        %v1525 = vadd.f32 %v1098, %v1387
        %v1526 = vadd.f32 %v1187, %v1476
        %v1527 = vadd.f32 %v1101, %v1390
        %v1528 = vadd.f32 %v1190, %v1479
        %v1529 = vld [vmem:[%s611 + $0x3] sm:$0xff]
        %v1530 = vld [vmem:[%s611 + $0xb] sm:$0xff]
        %v1531 = vld [vmem:[%s611 + $0x13] sm:$0xff]
        %v1532 = vld [vmem:[%s611 + $0x23] sm:$0xff]
        %v1533 = vld [vmem:[%s611 + $0x2b] sm:$0xff]
        %v1534 = vld [vmem:[%s611 + $0x33] sm:$0xff]
        %v1535 = vld [vmem:[%s611 + $0x43] sm:$0xff]
        %v1536 = vld [vmem:[%s611 + $0x4b] sm:$0xff]
        %v1537 = vld [vmem:[%s611 + $0x53] sm:$0xff]
        %v1538 = vld [vmem:[%s611 + $0x63] sm:$0xff]
        %v1539 = vld [vmem:[%s611 + $0x6b] sm:$0xff]
        %v1540 = vld [vmem:[%s611 + $0x73] sm:$0xff]
        %v1541 = vld [vmem:[%s611 + $0x83] sm:$0xff]
        %v1542 = vld [vmem:[%s611 + $0x8b] sm:$0xff]
        %v1543 = vld [vmem:[%s611 + $0x93] sm:$0xff]
        %v1544 = vld [vmem:[%s611 + $0xa3] sm:$0xff]
        %v1545 = vld [vmem:[%s611 + $0xab] sm:$0xff]
        %v1546 = vld [vmem:[%s611 + $0xb3] sm:$0xff]
        %v1547 = vld [vmem:[%s611 + $0xc3] sm:$0xff]
        %v1548 = vld [vmem:[%s611 + $0xcb] sm:$0xff]
        %v1549 = vld [vmem:[%s611 + $0xd3] sm:$0xff]
        %v1550 = vld [vmem:[%s611 + $0xe3] sm:$0xff]
        %v1551 = vld [vmem:[%s611 + $0xeb] sm:$0xff]
        %v1552 = vld [vmem:[%s611 + $0xf3] sm:$0xff]
        %s1553 = scalar_lea.vmem %s1, 192
        %v1554 = vld [vmem:[%s1553] sm:$0xff]
        %v1555 = vld [vmem:[%s1553 + $0x8] sm:$0xff]
        %v1556 = vld [vmem:[%s1553 + $0x10] sm:$0xff]
        %v1557 = vld [vmem:[%s1553 + $0x18] sm:$0xff]
        %v1558 = vld [vmem:[%s1553 + $0x20] sm:$0xff]
        %v1559 = vld [vmem:[%s1553 + $0x28] sm:$0xff]
        %v1560 = vld [vmem:[%s1553 + $0x30] sm:$0xf]
        %v1561 = vld [vmem:[%s1553 + $0x38] sm:$0xf]
        %v1563 = vsel %vm678, %v1529, 0
        %v1566 = vsel %vm678, %v1530, 0
        %v1569 = vsel %vm678, %v1531, 0
        %v1572 = vsel %vm678, %v1532, 0
        %v1575 = vsel %vm678, %v1533, 0
        %v1578 = vsel %vm678, %v1534, 0
        %v1581 = vsel %vm678, %v1535, 0
        %v1584 = vsel %vm678, %v1536, 0
        %v1587 = vsel %vm678, %v1537, 0
        %v1590 = vsel %vm678, %v1538, 0
        %v1593 = vsel %vm678, %v1539, 0
        %v1596 = vsel %vm678, %v1540, 0
        %v1599 = vsel %vm678, %v1541, 0
        %v1602 = vsel %vm678, %v1542, 0
        %v1605 = vsel %vm678, %v1543, 0
        %v1608 = vsel %vm678, %v1544, 0
        %v1611 = vsel %vm678, %v1545, 0
        %v1614 = vsel %vm678, %v1546, 0
        %v1617 = vsel %vm678, %v1547, 0
        %v1620 = vsel %vm678, %v1548, 0
        %v1623 = vsel %vm678, %v1549, 0
        %v1626 = vsel %vm678, %v1550, 0
        %v1629 = vsel %vm678, %v1551, 0
        %v1632 = vsel %vm678, %v1552, 0
        %v1635 = vsel %vm751, %v1560, 0
        %v1638 = vsel %vm751, %v1561, 0
        %1640 = vmatpush.msra.mxu0 0.0
        %1641 = vmatpush.msra.mxu0 0.0
        %1642 = vmatpush.msra.mxu0 0.0
        %1643 = vmatpush.msra.mxu0 0.0
        %1644 = vmatpush.msra.mxu0 0.0
        %1645 = vmatpush.msra.mxu0 0.0
        %1646 = vmatpush.msra.mxu0 0.0
        %1647 = vmatpush.msra.mxu0 0.0
        %1648 = vmatpush.msra.mxu0 0.0
        %1649 = vmatpush.msra.mxu0 0.0
        %1650 = vmatpush.msra.mxu0 0.0
        %1651 = vmatpush.msra.mxu0 0.0
        %1652 = vmatpush.msra.mxu0 %v1635
        %1653 = vmatpush.msra.mxu0 %v1558
        %1654 = vmatpush.msra.mxu0 %v1556
        %1655 = vmatpush.msra.mxu0 %v1554
        %1656 = vmatmul.f32.gmra.mxu0 %v1563
        %v1657 = vpop.f32.mrf.mxu0
        %v1658 = vadd.f32 0.0, %v1657
        %1659 = vmatmul.f32.gmra.mxu0 %v1566
        %v1660 = vpop.f32.mrf.mxu0
        %v1661 = vadd.f32 0.0, %v1660
        %1662 = vmatmul.f32.gmra.mxu0 %v1569
        %v1663 = vpop.f32.mrf.mxu0
        %v1664 = vadd.f32 0.0, %v1663
        %1665 = vmatmul.f32.gmra.mxu0 %v1572
        %v1666 = vpop.f32.mrf.mxu0
        %v1667 = vadd.f32 0.0, %v1666
        %1668 = vmatmul.f32.gmra.mxu0 %v1575
        %v1669 = vpop.f32.mrf.mxu0
        %v1670 = vadd.f32 0.0, %v1669
        %1671 = vmatmul.f32.gmra.mxu0 %v1578
        %v1672 = vpop.f32.mrf.mxu0
        %v1673 = vadd.f32 0.0, %v1672
        %1674 = vmatmul.f32.gmra.mxu0 %v1581
        %v1675 = vpop.f32.mrf.mxu0
        %v1676 = vadd.f32 0.0, %v1675
        %1677 = vmatmul.f32.gmra.mxu0 %v1584
        %v1678 = vpop.f32.mrf.mxu0
        %v1679 = vadd.f32 0.0, %v1678
        %1680 = vmatmul.f32.gmra.mxu0 %v1587
        %v1681 = vpop.f32.mrf.mxu0
        %v1682 = vadd.f32 0.0, %v1681
        %1683 = vmatmul.f32.gmra.mxu0 %v1590
        %v1684 = vpop.f32.mrf.mxu0
        %v1685 = vadd.f32 0.0, %v1684
        %1686 = vmatmul.f32.gmra.mxu0 %v1593
        %v1687 = vpop.f32.mrf.mxu0
        %v1688 = vadd.f32 0.0, %v1687
        %1689 = vmatmul.f32.gmra.mxu0 %v1596
        %v1690 = vpop.f32.mrf.mxu0
        %v1691 = vadd.f32 0.0, %v1690
        %1692 = vmatmul.f32.gmra.mxu0 %v1599
        %v1693 = vpop.f32.mrf.mxu0
        %v1694 = vadd.f32 0.0, %v1693
        %1695 = vmatmul.f32.gmra.mxu0 %v1602
        %v1696 = vpop.f32.mrf.mxu0
        %v1697 = vadd.f32 0.0, %v1696
        %1698 = vmatmul.f32.gmra.mxu0 %v1605
        %v1699 = vpop.f32.mrf.mxu0
        %v1700 = vadd.f32 0.0, %v1699
        %1701 = vmatmul.f32.gmra.mxu0 %v1608
        %v1702 = vpop.f32.mrf.mxu0
        %v1703 = vadd.f32 0.0, %v1702
        %1704 = vmatmul.f32.gmra.mxu0 %v1611
        %v1705 = vpop.f32.mrf.mxu0
        %v1706 = vadd.f32 0.0, %v1705
        %1707 = vmatmul.f32.gmra.mxu0 %v1614
        %v1708 = vpop.f32.mrf.mxu0
        %v1709 = vadd.f32 0.0, %v1708
        %1710 = vmatmul.f32.gmra.mxu0 %v1617
        %v1711 = vpop.f32.mrf.mxu0
        %v1712 = vadd.f32 0.0, %v1711
        %1713 = vmatmul.f32.gmra.mxu0 %v1620
        %v1714 = vpop.f32.mrf.mxu0
        %v1715 = vadd.f32 0.0, %v1714
        %1716 = vmatmul.f32.gmra.mxu0 %v1623
        %v1717 = vpop.f32.mrf.mxu0
        %v1718 = vadd.f32 0.0, %v1717
        %1719 = vmatmul.f32.gmra.mxu0 %v1626
        %v1720 = vpop.f32.mrf.mxu0
        %v1721 = vadd.f32 0.0, %v1720
        %1722 = vmatmul.f32.gmra.mxu0 %v1629
        %v1723 = vpop.f32.mrf.mxu0
        %v1724 = vadd.f32 0.0, %v1723
        %1725 = vmatmul.f32.gmra.mxu0 %v1632
        %v1726 = vpop.f32.mrf.mxu0
        %v1727 = vadd.f32 0.0, %v1726
        %1728 = vdwg.mxu0
        %1729 = vmatpush.msra.mxu0 0.0
        %1730 = vmatpush.msra.mxu0 0.0
        %1731 = vmatpush.msra.mxu0 0.0
        %1732 = vmatpush.msra.mxu0 0.0
        %1733 = vmatpush.msra.mxu0 0.0
        %1734 = vmatpush.msra.mxu0 0.0
        %1735 = vmatpush.msra.mxu0 0.0
        %1736 = vmatpush.msra.mxu0 0.0
        %1737 = vmatpush.msra.mxu0 0.0
        %1738 = vmatpush.msra.mxu0 0.0
        %1739 = vmatpush.msra.mxu0 0.0
        %1740 = vmatpush.msra.mxu0 0.0
        %1741 = vmatpush.msra.mxu0 %v1638
        %1742 = vmatpush.msra.mxu0 %v1559
        %1743 = vmatpush.msra.mxu0 %v1557
        %1744 = vmatpush.msra.mxu0 %v1555
        %1745 = vmatmul.f32.gmra.mxu0 %v1563
        %v1746 = vpop.f32.mrf.mxu0
        %v1747 = vadd.f32 0.0, %v1746
        %1748 = vmatmul.f32.gmra.mxu0 %v1566
        %v1749 = vpop.f32.mrf.mxu0
        %v1750 = vadd.f32 0.0, %v1749
        %1751 = vmatmul.f32.gmra.mxu0 %v1569
        %v1752 = vpop.f32.mrf.mxu0
        %v1753 = vadd.f32 0.0, %v1752
        %1754 = vmatmul.f32.gmra.mxu0 %v1572
        %v1755 = vpop.f32.mrf.mxu0
        %v1756 = vadd.f32 0.0, %v1755
        %1757 = vmatmul.f32.gmra.mxu0 %v1575
        %v1758 = vpop.f32.mrf.mxu0
        %v1759 = vadd.f32 0.0, %v1758
        %1760 = vmatmul.f32.gmra.mxu0 %v1578
        %v1761 = vpop.f32.mrf.mxu0
        %v1762 = vadd.f32 0.0, %v1761
        %1763 = vmatmul.f32.gmra.mxu0 %v1581
        %v1764 = vpop.f32.mrf.mxu0
        %v1765 = vadd.f32 0.0, %v1764
        %1766 = vmatmul.f32.gmra.mxu0 %v1584
        %v1767 = vpop.f32.mrf.mxu0
        %v1768 = vadd.f32 0.0, %v1767
        %1769 = vmatmul.f32.gmra.mxu0 %v1587
        %v1770 = vpop.f32.mrf.mxu0
        %v1771 = vadd.f32 0.0, %v1770
        %1772 = vmatmul.f32.gmra.mxu0 %v1590
        %v1773 = vpop.f32.mrf.mxu0
        %v1774 = vadd.f32 0.0, %v1773
        %1775 = vmatmul.f32.gmra.mxu0 %v1593
        %v1776 = vpop.f32.mrf.mxu0
        %v1777 = vadd.f32 0.0, %v1776
        %1778 = vmatmul.f32.gmra.mxu0 %v1596
        %v1779 = vpop.f32.mrf.mxu0
        %v1780 = vadd.f32 0.0, %v1779
        %1781 = vmatmul.f32.gmra.mxu0 %v1599
        %v1782 = vpop.f32.mrf.mxu0
        %v1783 = vadd.f32 0.0, %v1782
        %1784 = vmatmul.f32.gmra.mxu0 %v1602
        %v1785 = vpop.f32.mrf.mxu0
        %v1786 = vadd.f32 0.0, %v1785
        %1787 = vmatmul.f32.gmra.mxu0 %v1605
        %v1788 = vpop.f32.mrf.mxu0
        %v1789 = vadd.f32 0.0, %v1788
        %1790 = vmatmul.f32.gmra.mxu0 %v1608
        %v1791 = vpop.f32.mrf.mxu0
        %v1792 = vadd.f32 0.0, %v1791
        %1793 = vmatmul.f32.gmra.mxu0 %v1611
        %v1794 = vpop.f32.mrf.mxu0
        %v1795 = vadd.f32 0.0, %v1794
        %1796 = vmatmul.f32.gmra.mxu0 %v1614
        %v1797 = vpop.f32.mrf.mxu0
        %v1798 = vadd.f32 0.0, %v1797
        %1799 = vmatmul.f32.gmra.mxu0 %v1617
        %v1800 = vpop.f32.mrf.mxu0
        %v1801 = vadd.f32 0.0, %v1800
        %1802 = vmatmul.f32.gmra.mxu0 %v1620
        %v1803 = vpop.f32.mrf.mxu0
        %v1804 = vadd.f32 0.0, %v1803
        %1805 = vmatmul.f32.gmra.mxu0 %v1623
        %v1806 = vpop.f32.mrf.mxu0
        %v1807 = vadd.f32 0.0, %v1806
        %1808 = vmatmul.f32.gmra.mxu0 %v1626
        %v1809 = vpop.f32.mrf.mxu0
        %v1810 = vadd.f32 0.0, %v1809
        %1811 = vmatmul.f32.gmra.mxu0 %v1629
        %v1812 = vpop.f32.mrf.mxu0
        %v1813 = vadd.f32 0.0, %v1812
        %1814 = vmatmul.f32.gmra.mxu0 %v1632
        %v1815 = vpop.f32.mrf.mxu0
        %v1816 = vadd.f32 0.0, %v1815
        %1817 = vdwg.mxu0
        %v1818 = vadd.f32 %v1481, %v1658
        %v1819 = vadd.f32 %v1482, %v1747
        %v1820 = vadd.f32 %v1483, %v1661
        %v1821 = vadd.f32 %v1484, %v1750
        %v1822 = vadd.f32 %v1485, %v1664
        %v1823 = vadd.f32 %v1486, %v1753
        %v1824 = vadd.f32 %v1487, %v1667
        %v1825 = vadd.f32 %v1488, %v1756
        %v1826 = vadd.f32 %v1489, %v1670
        %v1827 = vadd.f32 %v1490, %v1759
        %v1828 = vadd.f32 %v1491, %v1673
        %v1829 = vadd.f32 %v1492, %v1762
        %v1830 = vadd.f32 %v1493, %v1676
        %v1831 = vadd.f32 %v1494, %v1765
        %v1832 = vadd.f32 %v1495, %v1679
        %v1833 = vadd.f32 %v1496, %v1768
        %v1834 = vadd.f32 %v1497, %v1682
        %v1835 = vadd.f32 %v1498, %v1771
        %v1836 = vadd.f32 %v1499, %v1685
        %v1837 = vadd.f32 %v1500, %v1774
        %v1838 = vadd.f32 %v1501, %v1688
        %v1839 = vadd.f32 %v1502, %v1777
        %v1840 = vadd.f32 %v1503, %v1691
        %v1841 = vadd.f32 %v1504, %v1780
        %v1842 = vadd.f32 %v1505, %v1694
        %v1843 = vadd.f32 %v1506, %v1783
        %v1844 = vadd.f32 %v1507, %v1697
        %v1845 = vadd.f32 %v1508, %v1786
        %v1846 = vadd.f32 %v1509, %v1700
        %v1847 = vadd.f32 %v1510, %v1789
        %v1848 = vadd.f32 %v1511, %v1703
        %v1849 = vadd.f32 %v1512, %v1792
        %v1850 = vadd.f32 %v1513, %v1706
        %v1851 = vadd.f32 %v1514, %v1795
        %v1852 = vadd.f32 %v1515, %v1709
        %v1853 = vadd.f32 %v1516, %v1798
        %v1854 = vadd.f32 %v1517, %v1712
        %v1855 = vadd.f32 %v1518, %v1801
        %v1856 = vadd.f32 %v1519, %v1715
        %v1857 = vadd.f32 %v1520, %v1804
        %v1858 = vadd.f32 %v1521, %v1718
        %v1859 = vadd.f32 %v1522, %v1807
        %v1860 = vadd.f32 %v1523, %v1721
        %v1861 = vadd.f32 %v1524, %v1810
        %v1862 = vadd.f32 %v1525, %v1724
        %v1863 = vadd.f32 %v1526, %v1813
        %v1864 = vadd.f32 %v1527, %v1727
        %v1865 = vadd.f32 %v1528, %v1816
        %v1866 = vld [vmem:[%s611 + $0x4] sm:$0xff]
        %v1867 = vld [vmem:[%s611 + $0xc] sm:$0xff]
        %v1868 = vld [vmem:[%s611 + $0x14] sm:$0xff]
        %v1869 = vld [vmem:[%s611 + $0x24] sm:$0xff]
        %v1870 = vld [vmem:[%s611 + $0x2c] sm:$0xff]
        %v1871 = vld [vmem:[%s611 + $0x34] sm:$0xff]
        %v1872 = vld [vmem:[%s611 + $0x44] sm:$0xff]
        %v1873 = vld [vmem:[%s611 + $0x4c] sm:$0xff]
        %v1874 = vld [vmem:[%s611 + $0x54] sm:$0xff]
        %v1875 = vld [vmem:[%s611 + $0x64] sm:$0xff]
        %v1876 = vld [vmem:[%s611 + $0x6c] sm:$0xff]
        %v1877 = vld [vmem:[%s611 + $0x74] sm:$0xff]
        %v1878 = vld [vmem:[%s611 + $0x84] sm:$0xff]
        %v1879 = vld [vmem:[%s611 + $0x8c] sm:$0xff]
        %v1880 = vld [vmem:[%s611 + $0x94] sm:$0xff]
        %v1881 = vld [vmem:[%s611 + $0xa4] sm:$0xff]
        %v1882 = vld [vmem:[%s611 + $0xac] sm:$0xff]
        %v1883 = vld [vmem:[%s611 + $0xb4] sm:$0xff]
        %v1884 = vld [vmem:[%s611 + $0xc4] sm:$0xff]
        %v1885 = vld [vmem:[%s611 + $0xcc] sm:$0xff]
        %v1886 = vld [vmem:[%s611 + $0xd4] sm:$0xff]
        %v1887 = vld [vmem:[%s611 + $0xe4] sm:$0xff]
        %v1888 = vld [vmem:[%s611 + $0xec] sm:$0xff]
        %v1889 = vld [vmem:[%s611 + $0xf4] sm:$0xff]
        %s1890 = scalar_lea.vmem %s1, 256
        %v1891 = vld [vmem:[%s1890] sm:$0xff]
        %v1892 = vld [vmem:[%s1890 + $0x8] sm:$0xff]
        %v1893 = vld [vmem:[%s1890 + $0x10] sm:$0xff]
        %v1894 = vld [vmem:[%s1890 + $0x18] sm:$0xff]
        %v1895 = vld [vmem:[%s1890 + $0x20] sm:$0xff]
        %v1896 = vld [vmem:[%s1890 + $0x28] sm:$0xff]
        %v1897 = vld [vmem:[%s1890 + $0x30] sm:$0xf]
        %v1898 = vld [vmem:[%s1890 + $0x38] sm:$0xf]
        %v1900 = vsel %vm678, %v1866, 0
        %v1903 = vsel %vm678, %v1867, 0
        %v1906 = vsel %vm678, %v1868, 0
        %v1909 = vsel %vm678, %v1869, 0
        %v1912 = vsel %vm678, %v1870, 0
        %v1915 = vsel %vm678, %v1871, 0
        %v1918 = vsel %vm678, %v1872, 0
        %v1921 = vsel %vm678, %v1873, 0
        %v1924 = vsel %vm678, %v1874, 0
        %v1927 = vsel %vm678, %v1875, 0
        %v1930 = vsel %vm678, %v1876, 0
        %v1933 = vsel %vm678, %v1877, 0
        %v1936 = vsel %vm678, %v1878, 0
        %v1939 = vsel %vm678, %v1879, 0
        %v1942 = vsel %vm678, %v1880, 0
        %v1945 = vsel %vm678, %v1881, 0
        %v1948 = vsel %vm678, %v1882, 0
        %v1951 = vsel %vm678, %v1883, 0
        %v1954 = vsel %vm678, %v1884, 0
        %v1957 = vsel %vm678, %v1885, 0
        %v1960 = vsel %vm678, %v1886, 0
        %v1963 = vsel %vm678, %v1887, 0
        %v1966 = vsel %vm678, %v1888, 0
        %v1969 = vsel %vm678, %v1889, 0
        %v1972 = vsel %vm751, %v1897, 0
        %v1975 = vsel %vm751, %v1898, 0
        %1977 = vmatpush.msra.mxu0 0.0
        %1978 = vmatpush.msra.mxu0 0.0
        %1979 = vmatpush.msra.mxu0 0.0
        %1980 = vmatpush.msra.mxu0 0.0
        %1981 = vmatpush.msra.mxu0 0.0
        %1982 = vmatpush.msra.mxu0 0.0
        %1983 = vmatpush.msra.mxu0 0.0
        %1984 = vmatpush.msra.mxu0 0.0
        %1985 = vmatpush.msra.mxu0 0.0
        %1986 = vmatpush.msra.mxu0 0.0
        %1987 = vmatpush.msra.mxu0 0.0
        %1988 = vmatpush.msra.mxu0 0.0
        %1989 = vmatpush.msra.mxu0 %v1972
        %1990 = vmatpush.msra.mxu0 %v1895
        %1991 = vmatpush.msra.mxu0 %v1893
        %1992 = vmatpush.msra.mxu0 %v1891
        %1993 = vmatmul.f32.gmra.mxu0 %v1900
        %v1994 = vpop.f32.mrf.mxu0
        %v1995 = vadd.f32 0.0, %v1994
        %1996 = vmatmul.f32.gmra.mxu0 %v1903
        %v1997 = vpop.f32.mrf.mxu0
        %v1998 = vadd.f32 0.0, %v1997
        %1999 = vmatmul.f32.gmra.mxu0 %v1906
        %v2000 = vpop.f32.mrf.mxu0
        %v2001 = vadd.f32 0.0, %v2000
        %2002 = vmatmul.f32.gmra.mxu0 %v1909
        %v2003 = vpop.f32.mrf.mxu0
        %v2004 = vadd.f32 0.0, %v2003
        %2005 = vmatmul.f32.gmra.mxu0 %v1912
        %v2006 = vpop.f32.mrf.mxu0
        %v2007 = vadd.f32 0.0, %v2006
        %2008 = vmatmul.f32.gmra.mxu0 %v1915
        %v2009 = vpop.f32.mrf.mxu0
        %v2010 = vadd.f32 0.0, %v2009
        %2011 = vmatmul.f32.gmra.mxu0 %v1918
        %v2012 = vpop.f32.mrf.mxu0
        %v2013 = vadd.f32 0.0, %v2012
        %2014 = vmatmul.f32.gmra.mxu0 %v1921
        %v2015 = vpop.f32.mrf.mxu0
        %v2016 = vadd.f32 0.0, %v2015
        %2017 = vmatmul.f32.gmra.mxu0 %v1924
        %v2018 = vpop.f32.mrf.mxu0
        %v2019 = vadd.f32 0.0, %v2018
        %2020 = vmatmul.f32.gmra.mxu0 %v1927
        %v2021 = vpop.f32.mrf.mxu0
        %v2022 = vadd.f32 0.0, %v2021
        %2023 = vmatmul.f32.gmra.mxu0 %v1930
        %v2024 = vpop.f32.mrf.mxu0
        %v2025 = vadd.f32 0.0, %v2024
        %2026 = vmatmul.f32.gmra.mxu0 %v1933
        %v2027 = vpop.f32.mrf.mxu0
        %v2028 = vadd.f32 0.0, %v2027
        %2029 = vmatmul.f32.gmra.mxu0 %v1936
        %v2030 = vpop.f32.mrf.mxu0
        %v2031 = vadd.f32 0.0, %v2030
        %2032 = vmatmul.f32.gmra.mxu0 %v1939
        %v2033 = vpop.f32.mrf.mxu0
        %v2034 = vadd.f32 0.0, %v2033
        %2035 = vmatmul.f32.gmra.mxu0 %v1942
        %v2036 = vpop.f32.mrf.mxu0
        %v2037 = vadd.f32 0.0, %v2036
        %2038 = vmatmul.f32.gmra.mxu0 %v1945
        %v2039 = vpop.f32.mrf.mxu0
        %v2040 = vadd.f32 0.0, %v2039
        %2041 = vmatmul.f32.gmra.mxu0 %v1948
        %v2042 = vpop.f32.mrf.mxu0
        %v2043 = vadd.f32 0.0, %v2042
        %2044 = vmatmul.f32.gmra.mxu0 %v1951
        %v2045 = vpop.f32.mrf.mxu0
        %v2046 = vadd.f32 0.0, %v2045
        %2047 = vmatmul.f32.gmra.mxu0 %v1954
        %v2048 = vpop.f32.mrf.mxu0
        %v2049 = vadd.f32 0.0, %v2048
        %2050 = vmatmul.f32.gmra.mxu0 %v1957
        %v2051 = vpop.f32.mrf.mxu0
        %v2052 = vadd.f32 0.0, %v2051
        %2053 = vmatmul.f32.gmra.mxu0 %v1960
        %v2054 = vpop.f32.mrf.mxu0
        %v2055 = vadd.f32 0.0, %v2054
        %2056 = vmatmul.f32.gmra.mxu0 %v1963
        %v2057 = vpop.f32.mrf.mxu0
        %v2058 = vadd.f32 0.0, %v2057
        %2059 = vmatmul.f32.gmra.mxu0 %v1966
        %v2060 = vpop.f32.mrf.mxu0
        %v2061 = vadd.f32 0.0, %v2060
        %2062 = vmatmul.f32.gmra.mxu0 %v1969
        %v2063 = vpop.f32.mrf.mxu0
        %v2064 = vadd.f32 0.0, %v2063
        %2065 = vdwg.mxu0
        %2066 = vmatpush.msra.mxu0 0.0
        %2067 = vmatpush.msra.mxu0 0.0
        %2068 = vmatpush.msra.mxu0 0.0
        %2069 = vmatpush.msra.mxu0 0.0
        %2070 = vmatpush.msra.mxu0 0.0
        %2071 = vmatpush.msra.mxu0 0.0
        %2072 = vmatpush.msra.mxu0 0.0
        %2073 = vmatpush.msra.mxu0 0.0
        %2074 = vmatpush.msra.mxu0 0.0
        %2075 = vmatpush.msra.mxu0 0.0
        %2076 = vmatpush.msra.mxu0 0.0
        %2077 = vmatpush.msra.mxu0 0.0
        %2078 = vmatpush.msra.mxu0 %v1975
        %2079 = vmatpush.msra.mxu0 %v1896
        %2080 = vmatpush.msra.mxu0 %v1894
        %2081 = vmatpush.msra.mxu0 %v1892
        %2082 = vmatmul.f32.gmra.mxu0 %v1900
        %v2083 = vpop.f32.mrf.mxu0
        %v2084 = vadd.f32 0.0, %v2083
        %2085 = vmatmul.f32.gmra.mxu0 %v1903
        %v2086 = vpop.f32.mrf.mxu0
        %v2087 = vadd.f32 0.0, %v2086
        %2088 = vmatmul.f32.gmra.mxu0 %v1906
        %v2089 = vpop.f32.mrf.mxu0
        %v2090 = vadd.f32 0.0, %v2089
        %2091 = vmatmul.f32.gmra.mxu0 %v1909
        %v2092 = vpop.f32.mrf.mxu0
        %v2093 = vadd.f32 0.0, %v2092
        %2094 = vmatmul.f32.gmra.mxu0 %v1912
        %v2095 = vpop.f32.mrf.mxu0
        %v2096 = vadd.f32 0.0, %v2095
        %2097 = vmatmul.f32.gmra.mxu0 %v1915
        %v2098 = vpop.f32.mrf.mxu0
        %v2099 = vadd.f32 0.0, %v2098
        %2100 = vmatmul.f32.gmra.mxu0 %v1918
        %v2101 = vpop.f32.mrf.mxu0
        %v2102 = vadd.f32 0.0, %v2101
        %2103 = vmatmul.f32.gmra.mxu0 %v1921
        %v2104 = vpop.f32.mrf.mxu0
        %v2105 = vadd.f32 0.0, %v2104
        %2106 = vmatmul.f32.gmra.mxu0 %v1924
        %v2107 = vpop.f32.mrf.mxu0
        %v2108 = vadd.f32 0.0, %v2107
        %2109 = vmatmul.f32.gmra.mxu0 %v1927
        %v2110 = vpop.f32.mrf.mxu0
        %v2111 = vadd.f32 0.0, %v2110
        %2112 = vmatmul.f32.gmra.mxu0 %v1930
        %v2113 = vpop.f32.mrf.mxu0
        %v2114 = vadd.f32 0.0, %v2113
        %2115 = vmatmul.f32.gmra.mxu0 %v1933
        %v2116 = vpop.f32.mrf.mxu0
        %v2117 = vadd.f32 0.0, %v2116
        %2118 = vmatmul.f32.gmra.mxu0 %v1936
        %v2119 = vpop.f32.mrf.mxu0
        %v2120 = vadd.f32 0.0, %v2119
        %2121 = vmatmul.f32.gmra.mxu0 %v1939
        %v2122 = vpop.f32.mrf.mxu0
        %v2123 = vadd.f32 0.0, %v2122
        %2124 = vmatmul.f32.gmra.mxu0 %v1942
        %v2125 = vpop.f32.mrf.mxu0
        %v2126 = vadd.f32 0.0, %v2125
        %2127 = vmatmul.f32.gmra.mxu0 %v1945
        %v2128 = vpop.f32.mrf.mxu0
        %v2129 = vadd.f32 0.0, %v2128
        %2130 = vmatmul.f32.gmra.mxu0 %v1948
        %v2131 = vpop.f32.mrf.mxu0
        %v2132 = vadd.f32 0.0, %v2131
        %2133 = vmatmul.f32.gmra.mxu0 %v1951
        %v2134 = vpop.f32.mrf.mxu0
        %v2135 = vadd.f32 0.0, %v2134
        %2136 = vmatmul.f32.gmra.mxu0 %v1954
        %v2137 = vpop.f32.mrf.mxu0
        %v2138 = vadd.f32 0.0, %v2137
        %2139 = vmatmul.f32.gmra.mxu0 %v1957
        %v2140 = vpop.f32.mrf.mxu0
        %v2141 = vadd.f32 0.0, %v2140
        %2142 = vmatmul.f32.gmra.mxu0 %v1960
        %v2143 = vpop.f32.mrf.mxu0
        %v2144 = vadd.f32 0.0, %v2143
        %2145 = vmatmul.f32.gmra.mxu0 %v1963
        %v2146 = vpop.f32.mrf.mxu0
        %v2147 = vadd.f32 0.0, %v2146
        %2148 = vmatmul.f32.gmra.mxu0 %v1966
        %v2149 = vpop.f32.mrf.mxu0
        %v2150 = vadd.f32 0.0, %v2149
        %2151 = vmatmul.f32.gmra.mxu0 %v1969
        %v2152 = vpop.f32.mrf.mxu0
        %v2153 = vadd.f32 0.0, %v2152
        %2154 = vdwg.mxu0
        %v2155 = vadd.f32 %v1818, %v1995
        %v2156 = vadd.f32 %v1819, %v2084
        %v2157 = vadd.f32 %v1820, %v1998
        %v2158 = vadd.f32 %v1821, %v2087
        %v2159 = vadd.f32 %v1822, %v2001
        %v2160 = vadd.f32 %v1823, %v2090
        %v2161 = vadd.f32 %v1824, %v2004
        %v2162 = vadd.f32 %v1825, %v2093
        %v2163 = vadd.f32 %v1826, %v2007
        %v2164 = vadd.f32 %v1827, %v2096
        %v2165 = vadd.f32 %v1828, %v2010
        %v2166 = vadd.f32 %v1829, %v2099
        %v2167 = vadd.f32 %v1830, %v2013
        %v2168 = vadd.f32 %v1831, %v2102
        %v2169 = vadd.f32 %v1832, %v2016
        %v2170 = vadd.f32 %v1833, %v2105
        %v2171 = vadd.f32 %v1834, %v2019
        %v2172 = vadd.f32 %v1835, %v2108
        %v2173 = vadd.f32 %v1836, %v2022
        %v2174 = vadd.f32 %v1837, %v2111
        %v2175 = vadd.f32 %v1838, %v2025
        %v2176 = vadd.f32 %v1839, %v2114
        %v2177 = vadd.f32 %v1840, %v2028
        %v2178 = vadd.f32 %v1841, %v2117
        %v2179 = vadd.f32 %v1842, %v2031
        %v2180 = vadd.f32 %v1843, %v2120
        %v2181 = vadd.f32 %v1844, %v2034
        %v2182 = vadd.f32 %v1845, %v2123
        %v2183 = vadd.f32 %v1846, %v2037
        %v2184 = vadd.f32 %v1847, %v2126
        %v2185 = vadd.f32 %v1848, %v2040
        %v2186 = vadd.f32 %v1849, %v2129
        %v2187 = vadd.f32 %v1850, %v2043
        %v2188 = vadd.f32 %v1851, %v2132
        %v2189 = vadd.f32 %v1852, %v2046
        %v2190 = vadd.f32 %v1853, %v2135
        %v2191 = vadd.f32 %v1854, %v2049
        %v2192 = vadd.f32 %v1855, %v2138
        %v2193 = vadd.f32 %v1856, %v2052
        %v2194 = vadd.f32 %v1857, %v2141
        %v2195 = vadd.f32 %v1858, %v2055
        %v2196 = vadd.f32 %v1859, %v2144
        %v2197 = vadd.f32 %v1860, %v2058
        %v2198 = vadd.f32 %v1861, %v2147
        %v2199 = vadd.f32 %v1862, %v2061
        %v2200 = vadd.f32 %v1863, %v2150
        %v2201 = vadd.f32 %v1864, %v2064
        %v2202 = vadd.f32 %v1865, %v2153
        %v2203 = vmax.f32 %v2155, %v2156
        %v2204 = vmax.f32 %v2157, %v2158
        %v2205 = vmax.f32 %v2159, %v2160
        %v2206 = vmax.f32 %v2161, %v2162
        %v2207 = vmax.f32 %v2163, %v2164
        %v2208 = vmax.f32 %v2165, %v2166
        %v2209 = vmax.f32 %v2167, %v2168
        %v2210 = vmax.f32 %v2169, %v2170
        %v2211 = vmax.f32 %v2171, %v2172
        %v2212 = vmax.f32 %v2173, %v2174
        %v2213 = vmax.f32 %v2175, %v2176
        %v2214 = vmax.f32 %v2177, %v2178
        %v2215 = vmax.f32 %v2179, %v2180
        %v2216 = vmax.f32 %v2181, %v2182
        %v2217 = vmax.f32 %v2183, %v2184
        %v2218 = vmax.f32 %v2185, %v2186
        %v2219 = vmax.f32 %v2187, %v2188
        %v2220 = vmax.f32 %v2189, %v2190
        %v2221 = vmax.f32 %v2191, %v2192
        %v2222 = vmax.f32 %v2193, %v2194
        %v2223 = vmax.f32 %v2195, %v2196
        %v2224 = vmax.f32 %v2197, %v2198
        %v2225 = vmax.f32 %v2199, %v2200
        %v2226 = vmax.f32 %v2201, %v2202
        %v2227 = vld [vmem:[%s2] sm:$0xff]
        %v2228 = vld [vmem:[%s2 + $0x8] sm:$0xff]
        %v2229 = vld [vmem:[%s2 + $0x10] sm:$0xff]
        %v2230 = vld [vmem:[%s2 + $0x18] sm:$0xff]
        %v2231 = vld [vmem:[%s2 + $0x20] sm:$0xff]
        %v2232 = vld [vmem:[%s2 + $0x28] sm:$0xff]
        %v2233 = vld [vmem:[%s2 + $0x30] sm:$0xff]
        %v2234 = vld [vmem:[%s2 + $0x38] sm:$0xff]
        %v2235 = vld [vmem:[%s2 + $0x40] sm:$0xff]
        %v2236 = vld [vmem:[%s2 + $0x48] sm:$0xff]
        %v2237 = vld [vmem:[%s2 + $0x50] sm:$0xff]
        %v2238 = vld [vmem:[%s2 + $0x58] sm:$0xff]
        %v2239 = vld [vmem:[%s2 + $0x60] sm:$0xff]
        %v2240 = vld [vmem:[%s2 + $0x68] sm:$0xff]
        %v2241 = vld [vmem:[%s2 + $0x70] sm:$0xff]
        %v2242 = vld [vmem:[%s2 + $0x78] sm:$0xff]
        %v2243 = vld [vmem:[%s2 + $0x80] sm:$0xff]
        %v2244 = vld [vmem:[%s2 + $0x88] sm:$0xff]
        %v2245 = vld [vmem:[%s2 + $0x90] sm:$0xff]
        %v2246 = vld [vmem:[%s2 + $0x98] sm:$0xff]
        %v2247 = vld [vmem:[%s2 + $0xa0] sm:$0xff]
        %v2248 = vld [vmem:[%s2 + $0xa8] sm:$0xff]
        %v2249 = vld [vmem:[%s2 + $0xb0] sm:$0xff]
        %v2250 = vld [vmem:[%s2 + $0xb8] sm:$0xff]
        %v2251 = vld [vmem:[%s2 + $0xc0] sm:$0xff]
        %v2252 = vld [vmem:[%s2 + $0xc8] sm:$0xff]
        %v2253 = vld [vmem:[%s2 + $0xd0] sm:$0xff]
        %v2254 = vld [vmem:[%s2 + $0xd8] sm:$0xff]
        %v2255 = vld [vmem:[%s2 + $0xe0] sm:$0xff]
        %v2256 = vld [vmem:[%s2 + $0xe8] sm:$0xff]
        %v2257 = vld [vmem:[%s2 + $0xf0] sm:$0xff]
        %v2258 = vld [vmem:[%s2 + $0xf8] sm:$0xff]
        %vm2259 = vcmask 523264
        %v2261 = vsel %vm2259, %v2228, 0
        %v2264 = vsel %vm2259, %v2230, 0
        %v2267 = vsel %vm2259, %v2232, 0
        %v2270 = vsel %vm2259, %v2234, 0
        %v2273 = vsel %vm2259, %v2236, 0
        %v2276 = vsel %vm2259, %v2238, 0
        %v2279 = vsel %vm2259, %v2240, 0
        %v2282 = vsel %vm2259, %v2242, 0
        %v2285 = vsel %vm2259, %v2244, 0
        %v2288 = vsel %vm2259, %v2246, 0
        %v2291 = vsel %vm2259, %v2248, 0
        %v2294 = vsel %vm2259, %v2250, 0
        %v2297 = vsel %vm2259, %v2252, 0
        %v2300 = vsel %vm2259, %v2254, 0
        %v2303 = vsel %vm2259, %v2256, 0
        %v2306 = vsel %vm2259, %v2258, 0
        %2308 = vmatpush.msra.mxu0 %v2218
        %2309 = vmatpush.msra.mxu0 %v2217
        %2310 = vmatpush.msra.mxu0 %v2216
        %2311 = vmatpush.msra.mxu0 %v2215
        %2312 = vmatpush.msra.mxu0 %v2214
        %2313 = vmatpush.msra.mxu0 %v2213
        %2314 = vmatpush.msra.mxu0 %v2212
        %2315 = vmatpush.msra.mxu0 %v2211
        %2316 = vmatpush.msra.mxu0 %v2210
        %2317 = vmatpush.msra.mxu0 %v2209
        %2318 = vmatpush.msra.mxu0 %v2208
        %2319 = vmatpush.msra.mxu0 %v2207
        %2320 = vmatpush.msra.mxu0 %v2206
        %2321 = vmatpush.msra.mxu0 %v2205
        %2322 = vmatpush.msra.mxu0 %v2204
        %2323 = vmatpush.msra.mxu0 %v2203
        %2324 = vmatmul.f32.gmra.mxu0 %v2227
        %v2325 = vpop.f32.mrf.mxu0
        %v2326 = vadd.f32 0.0, %v2325
        %2327 = vmatmul.f32.gmra.mxu0 %v2229
        %v2328 = vpop.f32.mrf.mxu0
        %v2329 = vadd.f32 0.0, %v2328
        %2330 = vmatmul.f32.gmra.mxu0 %v2231
        %v2331 = vpop.f32.mrf.mxu0
        %v2332 = vadd.f32 0.0, %v2331
        %2333 = vmatmul.f32.gmra.mxu0 %v2233
        %v2334 = vpop.f32.mrf.mxu0
        %v2335 = vadd.f32 0.0, %v2334
        %2336 = vmatmul.f32.gmra.mxu0 %v2235
        %v2337 = vpop.f32.mrf.mxu0
        %v2338 = vadd.f32 0.0, %v2337
        %2339 = vmatmul.f32.gmra.mxu0 %v2237
        %v2340 = vpop.f32.mrf.mxu0
        %v2341 = vadd.f32 0.0, %v2340
        %2342 = vmatmul.f32.gmra.mxu0 %v2239
        %v2343 = vpop.f32.mrf.mxu0
        %v2344 = vadd.f32 0.0, %v2343
        %2345 = vmatmul.f32.gmra.mxu0 %v2241
        %v2346 = vpop.f32.mrf.mxu0
        %v2347 = vadd.f32 0.0, %v2346
        %2348 = vmatmul.f32.gmra.mxu0 %v2243
        %v2349 = vpop.f32.mrf.mxu0
        %v2350 = vadd.f32 0.0, %v2349
        %2351 = vmatmul.f32.gmra.mxu0 %v2245
        %v2352 = vpop.f32.mrf.mxu0
        %v2353 = vadd.f32 0.0, %v2352
        %2354 = vmatmul.f32.gmra.mxu0 %v2247
        %v2355 = vpop.f32.mrf.mxu0
        %v2356 = vadd.f32 0.0, %v2355
        %2357 = vmatmul.f32.gmra.mxu0 %v2249
        %v2358 = vpop.f32.mrf.mxu0
        %v2359 = vadd.f32 0.0, %v2358
        %2360 = vmatmul.f32.gmra.mxu0 %v2251
        %v2361 = vpop.f32.mrf.mxu0
        %v2362 = vadd.f32 0.0, %v2361
        %2363 = vmatmul.f32.gmra.mxu0 %v2253
        %v2364 = vpop.f32.mrf.mxu0
        %v2365 = vadd.f32 0.0, %v2364
        %2366 = vmatmul.f32.gmra.mxu0 %v2255
        %v2367 = vpop.f32.mrf.mxu0
        %v2368 = vadd.f32 0.0, %v2367
        %2369 = vmatmul.f32.gmra.mxu0 %v2257
        %v2370 = vpop.f32.mrf.mxu0
        %v2371 = vadd.f32 0.0, %v2370
        %2372 = vdwg.mxu0
        %2373 = vmatpush.msra.mxu0 0.0
        %2374 = vmatpush.msra.mxu0 0.0
        %2375 = vmatpush.msra.mxu0 0.0
        %2376 = vmatpush.msra.mxu0 0.0
        %2377 = vmatpush.msra.mxu0 0.0
        %2378 = vmatpush.msra.mxu0 0.0
        %2379 = vmatpush.msra.mxu0 0.0
        %2380 = vmatpush.msra.mxu0 0.0
        %2381 = vmatpush.msra.mxu0 %v2226
        %2382 = vmatpush.msra.mxu0 %v2225
        %2383 = vmatpush.msra.mxu0 %v2224
        %2384 = vmatpush.msra.mxu0 %v2223
        %2385 = vmatpush.msra.mxu0 %v2222
        %2386 = vmatpush.msra.mxu0 %v2221
        %2387 = vmatpush.msra.mxu0 %v2220
        %2388 = vmatpush.msra.mxu0 %v2219
        %2389 = vmatmul.f32.gmra.mxu0 %v2261
        %v2390 = vpop.f32.mrf.mxu0
        %v2391 = vadd.f32 %v2326, %v2390
        %2392 = vmatmul.f32.gmra.mxu0 %v2264
        %v2393 = vpop.f32.mrf.mxu0
        %v2394 = vadd.f32 %v2329, %v2393
        %2395 = vmatmul.f32.gmra.mxu0 %v2267
        %v2396 = vpop.f32.mrf.mxu0
        %v2397 = vadd.f32 %v2332, %v2396
        %2398 = vmatmul.f32.gmra.mxu0 %v2270
        %v2399 = vpop.f32.mrf.mxu0
        %v2400 = vadd.f32 %v2335, %v2399
        %2401 = vmatmul.f32.gmra.mxu0 %v2273
        %v2402 = vpop.f32.mrf.mxu0
        %v2403 = vadd.f32 %v2338, %v2402
        %2404 = vmatmul.f32.gmra.mxu0 %v2276
        %v2405 = vpop.f32.mrf.mxu0
        %v2406 = vadd.f32 %v2341, %v2405
        %2407 = vmatmul.f32.gmra.mxu0 %v2279
        %v2408 = vpop.f32.mrf.mxu0
        %v2409 = vadd.f32 %v2344, %v2408
        %2410 = vmatmul.f32.gmra.mxu0 %v2282
        %v2411 = vpop.f32.mrf.mxu0
        %v2412 = vadd.f32 %v2347, %v2411
        %2413 = vmatmul.f32.gmra.mxu0 %v2285
        %v2414 = vpop.f32.mrf.mxu0
        %v2415 = vadd.f32 %v2350, %v2414
        %2416 = vmatmul.f32.gmra.mxu0 %v2288
        %v2417 = vpop.f32.mrf.mxu0
        %v2418 = vadd.f32 %v2353, %v2417
        %2419 = vmatmul.f32.gmra.mxu0 %v2291
        %v2420 = vpop.f32.mrf.mxu0
        %v2421 = vadd.f32 %v2356, %v2420
        %2422 = vmatmul.f32.gmra.mxu0 %v2294
        %v2423 = vpop.f32.mrf.mxu0
        %v2424 = vadd.f32 %v2359, %v2423
        %2425 = vmatmul.f32.gmra.mxu0 %v2297
        %v2426 = vpop.f32.mrf.mxu0
        %v2427 = vadd.f32 %v2362, %v2426
        %2428 = vmatmul.f32.gmra.mxu0 %v2300
        %v2429 = vpop.f32.mrf.mxu0
        %v2430 = vadd.f32 %v2365, %v2429
        %2431 = vmatmul.f32.gmra.mxu0 %v2303
        %v2432 = vpop.f32.mrf.mxu0
        %v2433 = vadd.f32 %v2368, %v2432
        %2434 = vmatmul.f32.gmra.mxu0 %v2306
        %v2435 = vpop.f32.mrf.mxu0
        %v2436 = vadd.f32 %v2371, %v2435
        %2437 = vdwg.mxu0
        %v2438 = vld [vmem:[%s3] sm:$0xff]
        %v2439 = vld [vmem:[%s3 + $0x8] sm:$0xff]
        %v2440 = vld [vmem:[%s3 + $0x10] sm:$0xff]
        %v2441 = vld [vmem:[%s3 + $0x18] sm:$0xff]
        %v2442 = vld [vmem:[%s3 + $0x20] sm:$0xff]
        %v2443 = vld [vmem:[%s3 + $0x28] sm:$0xff]
        %v2444 = vld [vmem:[%s3 + $0x30] sm:$0xff]
        %v2445 = vld [vmem:[%s3 + $0x38] sm:$0xff]
        %v2446 = vld [vmem:[%s3 + $0x40] sm:$0xff]
        %v2447 = vld [vmem:[%s3 + $0x48] sm:$0xff]
        %v2448 = vld [vmem:[%s3 + $0x50] sm:$0xff]
        %v2449 = vld [vmem:[%s3 + $0x58] sm:$0xff]
        %v2450 = vld [vmem:[%s3 + $0x60] sm:$0xff]
        %v2451 = vld [vmem:[%s3 + $0x68] sm:$0xff]
        %v2452 = vld [vmem:[%s3 + $0x70] sm:$0xff]
        %v2453 = vld [vmem:[%s3 + $0x78] sm:$0xff]
        %v2454 = vld [vmem:[%s3 + $0x80] sm:$0xff]
        %v2455 = vld [vmem:[%s3 + $0x88] sm:$0xff]
        %v2456 = vld [vmem:[%s3 + $0x90] sm:$0xff]
        %v2457 = vld [vmem:[%s3 + $0x98] sm:$0xff]
        %v2458 = vld [vmem:[%s3 + $0xa0] sm:$0xff]
        %v2459 = vld [vmem:[%s3 + $0xa8] sm:$0xff]
        %v2460 = vld [vmem:[%s3 + $0xb0] sm:$0xff]
        %v2461 = vld [vmem:[%s3 + $0xb8] sm:$0xff]
        %v2462 = vld [vmem:[%s3 + $0xc0] sm:$0xff]
        %v2463 = vld [vmem:[%s3 + $0xc8] sm:$0xff]
        %v2464 = vld [vmem:[%s3 + $0xd0] sm:$0xff]
        %v2465 = vld [vmem:[%s3 + $0xd8] sm:$0xff]
        %v2466 = vld [vmem:[%s3 + $0xe0] sm:$0xff]
        %v2467 = vld [vmem:[%s3 + $0xe8] sm:$0xff]
        %v2468 = vld [vmem:[%s3 + $0xf0] sm:$0xff]
        %v2469 = vld [vmem:[%s3 + $0xf8] sm:$0xff]
        %v2471 = vsel %vm2259, %v2439, 0
        %v2474 = vsel %vm2259, %v2441, 0
        %v2477 = vsel %vm2259, %v2443, 0
        %v2480 = vsel %vm2259, %v2445, 0
        %v2483 = vsel %vm2259, %v2447, 0
        %v2486 = vsel %vm2259, %v2449, 0
        %v2489 = vsel %vm2259, %v2451, 0
        %v2492 = vsel %vm2259, %v2453, 0
        %v2495 = vsel %vm2259, %v2455, 0
        %v2498 = vsel %vm2259, %v2457, 0
        %v2501 = vsel %vm2259, %v2459, 0
        %v2504 = vsel %vm2259, %v2461, 0
        %v2507 = vsel %vm2259, %v2463, 0
        %v2510 = vsel %vm2259, %v2465, 0
        %v2513 = vsel %vm2259, %v2467, 0
        %v2516 = vsel %vm2259, %v2469, 0
        %2518 = vmatpush.msra.mxu0 %v2218
        %2519 = vmatpush.msra.mxu0 %v2217
        %2520 = vmatpush.msra.mxu0 %v2216
        %2521 = vmatpush.msra.mxu0 %v2215
        %2522 = vmatpush.msra.mxu0 %v2214
        %2523 = vmatpush.msra.mxu0 %v2213
        %2524 = vmatpush.msra.mxu0 %v2212
        %2525 = vmatpush.msra.mxu0 %v2211
        %2526 = vmatpush.msra.mxu0 %v2210
        %2527 = vmatpush.msra.mxu0 %v2209
        %2528 = vmatpush.msra.mxu0 %v2208
        %2529 = vmatpush.msra.mxu0 %v2207
        %2530 = vmatpush.msra.mxu0 %v2206
        %2531 = vmatpush.msra.mxu0 %v2205
        %2532 = vmatpush.msra.mxu0 %v2204
        %2533 = vmatpush.msra.mxu0 %v2203
        %2534 = vmatmul.f32.gmra.mxu0 %v2438
        %v2535 = vpop.f32.mrf.mxu0
        %v2536 = vadd.f32 0.0, %v2535
        %2537 = vmatmul.f32.gmra.mxu0 %v2440
        %v2538 = vpop.f32.mrf.mxu0
        %v2539 = vadd.f32 0.0, %v2538
        %2540 = vmatmul.f32.gmra.mxu0 %v2442
        %v2541 = vpop.f32.mrf.mxu0
        %v2542 = vadd.f32 0.0, %v2541
        %2543 = vmatmul.f32.gmra.mxu0 %v2444
        %v2544 = vpop.f32.mrf.mxu0
        %v2545 = vadd.f32 0.0, %v2544
        %2546 = vmatmul.f32.gmra.mxu0 %v2446
        %v2547 = vpop.f32.mrf.mxu0
        %v2548 = vadd.f32 0.0, %v2547
        %2549 = vmatmul.f32.gmra.mxu0 %v2448
        %v2550 = vpop.f32.mrf.mxu0
        %v2551 = vadd.f32 0.0, %v2550
        %2552 = vmatmul.f32.gmra.mxu0 %v2450
        %v2553 = vpop.f32.mrf.mxu0
        %v2554 = vadd.f32 0.0, %v2553
        %2555 = vmatmul.f32.gmra.mxu0 %v2452
        %v2556 = vpop.f32.mrf.mxu0
        %v2557 = vadd.f32 0.0, %v2556
        %2558 = vmatmul.f32.gmra.mxu0 %v2454
        %v2559 = vpop.f32.mrf.mxu0
        %v2560 = vadd.f32 0.0, %v2559
        %2561 = vmatmul.f32.gmra.mxu0 %v2456
        %v2562 = vpop.f32.mrf.mxu0
        %v2563 = vadd.f32 0.0, %v2562
        %2564 = vmatmul.f32.gmra.mxu0 %v2458
        %v2565 = vpop.f32.mrf.mxu0
        %v2566 = vadd.f32 0.0, %v2565
        %2567 = vmatmul.f32.gmra.mxu0 %v2460
        %v2568 = vpop.f32.mrf.mxu0
        %v2569 = vadd.f32 0.0, %v2568
        %2570 = vmatmul.f32.gmra.mxu0 %v2462
        %v2571 = vpop.f32.mrf.mxu0
        %v2572 = vadd.f32 0.0, %v2571
        %2573 = vmatmul.f32.gmra.mxu0 %v2464
        %v2574 = vpop.f32.mrf.mxu0
        %v2575 = vadd.f32 0.0, %v2574
        %2576 = vmatmul.f32.gmra.mxu0 %v2466
        %v2577 = vpop.f32.mrf.mxu0
        %v2578 = vadd.f32 0.0, %v2577
        %2579 = vmatmul.f32.gmra.mxu0 %v2468
        %v2580 = vpop.f32.mrf.mxu0
        %v2581 = vadd.f32 0.0, %v2580
        %2582 = vdwg.mxu0
        %2583 = vmatpush.msra.mxu0 0.0
        %2584 = vmatpush.msra.mxu0 0.0
        %2585 = vmatpush.msra.mxu0 0.0
        %2586 = vmatpush.msra.mxu0 0.0
        %2587 = vmatpush.msra.mxu0 0.0
        %2588 = vmatpush.msra.mxu0 0.0
        %2589 = vmatpush.msra.mxu0 0.0
        %2590 = vmatpush.msra.mxu0 0.0
        %2591 = vmatpush.msra.mxu0 %v2226
        %2592 = vmatpush.msra.mxu0 %v2225
        %2593 = vmatpush.msra.mxu0 %v2224
        %2594 = vmatpush.msra.mxu0 %v2223
        %2595 = vmatpush.msra.mxu0 %v2222
        %2596 = vmatpush.msra.mxu0 %v2221
        %2597 = vmatpush.msra.mxu0 %v2220
        %2598 = vmatpush.msra.mxu0 %v2219
        %2599 = vmatmul.f32.gmra.mxu0 %v2471
        %v2600 = vpop.f32.mrf.mxu0
        %v2601 = vadd.f32 %v2536, %v2600
        %2602 = vmatmul.f32.gmra.mxu0 %v2474
        %v2603 = vpop.f32.mrf.mxu0
        %v2604 = vadd.f32 %v2539, %v2603
        %2605 = vmatmul.f32.gmra.mxu0 %v2477
        %v2606 = vpop.f32.mrf.mxu0
        %v2607 = vadd.f32 %v2542, %v2606
        %2608 = vmatmul.f32.gmra.mxu0 %v2480
        %v2609 = vpop.f32.mrf.mxu0
        %v2610 = vadd.f32 %v2545, %v2609
        %2611 = vmatmul.f32.gmra.mxu0 %v2483
        %v2612 = vpop.f32.mrf.mxu0
        %v2613 = vadd.f32 %v2548, %v2612
        %2614 = vmatmul.f32.gmra.mxu0 %v2486
        %v2615 = vpop.f32.mrf.mxu0
        %v2616 = vadd.f32 %v2551, %v2615
        %2617 = vmatmul.f32.gmra.mxu0 %v2489
        %v2618 = vpop.f32.mrf.mxu0
        %v2619 = vadd.f32 %v2554, %v2618
        %2620 = vmatmul.f32.gmra.mxu0 %v2492
        %v2621 = vpop.f32.mrf.mxu0
        %v2622 = vadd.f32 %v2557, %v2621
        %2623 = vmatmul.f32.gmra.mxu0 %v2495
        %v2624 = vpop.f32.mrf.mxu0
        %v2625 = vadd.f32 %v2560, %v2624
        %2626 = vmatmul.f32.gmra.mxu0 %v2498
        %v2627 = vpop.f32.mrf.mxu0
        %v2628 = vadd.f32 %v2563, %v2627
        %2629 = vmatmul.f32.gmra.mxu0 %v2501
        %v2630 = vpop.f32.mrf.mxu0
        %v2631 = vadd.f32 %v2566, %v2630
        %2632 = vmatmul.f32.gmra.mxu0 %v2504
        %v2633 = vpop.f32.mrf.mxu0
        %v2634 = vadd.f32 %v2569, %v2633
        %2635 = vmatmul.f32.gmra.mxu0 %v2507
        %v2636 = vpop.f32.mrf.mxu0
        %v2637 = vadd.f32 %v2572, %v2636
        %2638 = vmatmul.f32.gmra.mxu0 %v2510
        %v2639 = vpop.f32.mrf.mxu0
        %v2640 = vadd.f32 %v2575, %v2639
        %2641 = vmatmul.f32.gmra.mxu0 %v2513
        %v2642 = vpop.f32.mrf.mxu0
        %v2643 = vadd.f32 %v2578, %v2642
        %2644 = vmatmul.f32.gmra.mxu0 %v2516
        %v2645 = vpop.f32.mrf.mxu0
        %v2646 = vadd.f32 %v2581, %v2645
        %2647 = vdwg.mxu0
        %v2648 = vmax.f32 %v2391, %v2601
        %v2649 = vmax.f32 %v2394, %v2604
        %v2650 = vmax.f32 %v2397, %v2607
        %v2651 = vmax.f32 %v2400, %v2610
        %v2652 = vmax.f32 %v2403, %v2613
        %v2653 = vmax.f32 %v2406, %v2616
        %v2654 = vmax.f32 %v2409, %v2619
        %v2655 = vmax.f32 %v2412, %v2622
        %v2656 = vmax.f32 %v2415, %v2625
        %v2657 = vmax.f32 %v2418, %v2628
        %v2658 = vmax.f32 %v2421, %v2631
        %v2659 = vmax.f32 %v2424, %v2634
        %v2660 = vmax.f32 %v2427, %v2637
        %v2661 = vmax.f32 %v2430, %v2640
        %v2662 = vmax.f32 %v2433, %v2643
        %v2663 = vmax.f32 %v2436, %v2646
        %v2664 = vld [vmem:[%s4] sm:$0x1]
        %v2666 = vperm.slane %v2664, 0
        %v2668 = vadd.f32 %v2648, %v2666
        %v2669 = vadd.f32 %v2649, %v2666
        %v2670 = vadd.f32 %v2650, %v2666
        %v2671 = vadd.f32 %v2651, %v2666
        %v2672 = vadd.f32 %v2652, %v2666
        %v2673 = vadd.f32 %v2653, %v2666
        %v2674 = vadd.f32 %v2654, %v2666
        %v2675 = vadd.f32 %v2655, %v2666
        %v2676 = vadd.f32 %v2656, %v2666
        %v2677 = vadd.f32 %v2657, %v2666
        %v2678 = vadd.f32 %v2658, %v2666
        %v2679 = vadd.f32 %v2659, %v2666
        %v2680 = vadd.f32 %v2660, %v2666
        %v2681 = vadd.f32 %v2661, %v2666
        %v2682 = vadd.f32 %v2662, %v2666
        %v2683 = vadd.f32 %v2663, %v2666
        %v2684 = vmax.f32 %v2668, 0.0
        %v2685 = vmax.f32 %v2669, 0.0
        %v2686 = vmax.f32 %v2670, 0.0
        %v2687 = vmax.f32 %v2671, 0.0
        %v2688 = vmax.f32 %v2672, 0.0
        %v2689 = vmax.f32 %v2673, 0.0
        %v2690 = vmax.f32 %v2674, 0.0
        %v2691 = vmax.f32 %v2675, 0.0
        %v2692 = vmax.f32 %v2676, 0.0
        %v2693 = vmax.f32 %v2677, 0.0
        %v2694 = vmax.f32 %v2678, 0.0
        %v2695 = vmax.f32 %v2679, 0.0
        %v2696 = vmax.f32 %v2680, 0.0
        %v2697 = vmax.f32 %v2681, 0.0
        %v2698 = vmax.f32 %v2682, 0.0
        %v2699 = vmax.f32 %v2683, 0.0
        %2700 = vst [vmem:[#allocation2] sm:$0xff] %v2684
        %2701 = vst [vmem:[#allocation2 + $0x8] sm:$0xff] %v2685
        %2702 = vst [vmem:[#allocation2 + $0x10] sm:$0xff] %v2686
        %2703 = vst [vmem:[#allocation2 + $0x18] sm:$0xff] %v2687
        %2704 = vst [vmem:[#allocation2 + $0x20] sm:$0xff] %v2688
        %2705 = vst [vmem:[#allocation2 + $0x28] sm:$0xff] %v2689
        %2706 = vst [vmem:[#allocation2 + $0x30] sm:$0xff] %v2690
        %2707 = vst [vmem:[#allocation2 + $0x38] sm:$0xff] %v2691
        %2708 = vst [vmem:[#allocation2 + $0x40] sm:$0xff] %v2692
        %2709 = vst [vmem:[#allocation2 + $0x48] sm:$0xff] %v2693
        %2710 = vst [vmem:[#allocation2 + $0x50] sm:$0xff] %v2694
        %2711 = vst [vmem:[#allocation2 + $0x58] sm:$0xff] %v2695
        %2712 = vst [vmem:[#allocation2 + $0x60] sm:$0xff] %v2696
        %2713 = vst [vmem:[#allocation2 + $0x68] sm:$0xff] %v2697
        %2714 = vst [vmem:[#allocation2 + $0x70] sm:$0xff] %v2698
        %2715 = vst [vmem:[#allocation2 + $0x78] sm:$0xff] %v2699
        %v2716 = vld [vmem:[#allocation2] sm:$0xff]
        %v2717 = vld [vmem:[#allocation2 + $0x10] sm:$0xff]
        %v2718 = vld [vmem:[#allocation2 + $0x20] sm:$0xff]
        %v2719 = vld [vmem:[#allocation2 + $0x30] sm:$0xff]
        %v2720 = vld [vmem:[#allocation2 + $0x40] sm:$0xff]
        %v2721 = vld [vmem:[#allocation2 + $0x50] sm:$0xff]
        %v2722 = vld [vmem:[#allocation2 + $0x60] sm:$0xff]
        %v2723 = vld [vmem:[#allocation2 + $0x70] sm:$0xff]
        %v2724 = vld [vmem:[%s5] sm:$0xff]
        %v2725 = vld [vmem:[%s5 + $0x8] sm:$0xff]
        %v2726 = vld [vmem:[%s5 + $0x10] sm:$0xff]
        %v2727 = vld [vmem:[%s5 + $0x18] sm:$0xff]
        %v2728 = vld [vmem:[%s5 + $0x20] sm:$0xff]
        %v2729 = vld [vmem:[%s5 + $0x28] sm:$0xff]
        %v2730 = vld [vmem:[%s5 + $0x30] sm:$0xff]
        %v2731 = vld [vmem:[%s5 + $0x38] sm:$0xff]
        %v2732 = vld [vmem:[%s5 + $0x40] sm:$0xff]
        %v2733 = vld [vmem:[%s5 + $0x48] sm:$0xff]
        %v2734 = vld [vmem:[%s5 + $0x50] sm:$0xff]
        %v2735 = vld [vmem:[%s5 + $0x58] sm:$0xff]
        %v2736 = vld [vmem:[%s5 + $0x60] sm:$0xff]
        %v2737 = vld [vmem:[%s5 + $0x68] sm:$0xff]
        %v2738 = vld [vmem:[%s5 + $0x70] sm:$0xff]
        %v2739 = vld [vmem:[%s5 + $0x78] sm:$0xff]
        %v2740 = vld [vmem:[%s5 + $0x80] sm:$0xff]
        %v2741 = vld [vmem:[%s5 + $0x88] sm:$0xff]
        %v2742 = vld [vmem:[%s5 + $0x90] sm:$0xff]
        %v2743 = vld [vmem:[%s5 + $0x98] sm:$0xff]
        %v2744 = vld [vmem:[%s5 + $0xa0] sm:$0xff]
        %v2745 = vld [vmem:[%s5 + $0xa8] sm:$0xff]
        %v2746 = vld [vmem:[%s5 + $0xb0] sm:$0xff]
        %v2747 = vld [vmem:[%s5 + $0xb8] sm:$0xff]
        %v2748 = vld [vmem:[%s5 + $0xc0] sm:$0xff]
        %v2749 = vld [vmem:[%s5 + $0xc8] sm:$0xff]
        %v2750 = vld [vmem:[%s5 + $0xd0] sm:$0xff]
        %v2751 = vld [vmem:[%s5 + $0xd8] sm:$0xff]
        %v2752 = vld [vmem:[%s5 + $0xe0] sm:$0xff]
        %v2753 = vld [vmem:[%s5 + $0xe8] sm:$0xff]
        %v2754 = vld [vmem:[%s5 + $0xf0] sm:$0xff]
        %v2755 = vld [vmem:[%s5 + $0xf8] sm:$0xff]
        %v2756 = vld [vmem:[#allocation2 + $0x1] sm:$0xff]
        %v2757 = vld [vmem:[#allocation2 + $0x11] sm:$0xff]
        %v2758 = vld [vmem:[#allocation2 + $0x21] sm:$0xff]
        %v2759 = vld [vmem:[#allocation2 + $0x31] sm:$0xff]
        %v2760 = vld [vmem:[#allocation2 + $0x41] sm:$0xff]
        %v2761 = vld [vmem:[#allocation2 + $0x51] sm:$0xff]
        %v2762 = vld [vmem:[#allocation2 + $0x61] sm:$0xff]
        %v2763 = vld [vmem:[#allocation2 + $0x71] sm:$0xff]
        %s2764 = scalar_lea.vmem %s5, 256
        %v2765 = vld [vmem:[%s2764] sm:$0xff]
        %v2766 = vld [vmem:[%s2764 + $0x8] sm:$0xff]
        %v2767 = vld [vmem:[%s2764 + $0x10] sm:$0xff]
        %v2768 = vld [vmem:[%s2764 + $0x18] sm:$0xff]
        %v2769 = vld [vmem:[%s2764 + $0x20] sm:$0xff]
        %v2770 = vld [vmem:[%s2764 + $0x28] sm:$0xff]
        %v2771 = vld [vmem:[%s2764 + $0x30] sm:$0xff]
        %v2772 = vld [vmem:[%s2764 + $0x38] sm:$0xff]
        %v2773 = vld [vmem:[%s2764 + $0x40] sm:$0xff]
        %v2774 = vld [vmem:[%s2764 + $0x48] sm:$0xff]
        %v2775 = vld [vmem:[%s2764 + $0x50] sm:$0xff]
        %v2776 = vld [vmem:[%s2764 + $0x58] sm:$0xff]
        %v2777 = vld [vmem:[%s2764 + $0x60] sm:$0xff]
        %v2778 = vld [vmem:[%s2764 + $0x68] sm:$0xff]
        %v2779 = vld [vmem:[%s2764 + $0x70] sm:$0xff]
        %v2780 = vld [vmem:[%s2764 + $0x78] sm:$0xff]
        %v2781 = vld [vmem:[%s2764 + $0x80] sm:$0xff]
        %v2782 = vld [vmem:[%s2764 + $0x88] sm:$0xff]
        %v2783 = vld [vmem:[%s2764 + $0x90] sm:$0xff]
        %v2784 = vld [vmem:[%s2764 + $0x98] sm:$0xff]
        %v2785 = vld [vmem:[%s2764 + $0xa0] sm:$0xff]
        %v2786 = vld [vmem:[%s2764 + $0xa8] sm:$0xff]
        %v2787 = vld [vmem:[%s2764 + $0xb0] sm:$0xff]
        %v2788 = vld [vmem:[%s2764 + $0xb8] sm:$0xff]
        %v2789 = vld [vmem:[%s2764 + $0xc0] sm:$0xff]
        %v2790 = vld [vmem:[%s2764 + $0xc8] sm:$0xff]
        %v2791 = vld [vmem:[%s2764 + $0xd0] sm:$0xff]
        %v2792 = vld [vmem:[%s2764 + $0xd8] sm:$0xff]
        %v2793 = vld [vmem:[%s2764 + $0xe0] sm:$0xff]
        %v2794 = vld [vmem:[%s2764 + $0xe8] sm:$0xff]
        %v2795 = vld [vmem:[%s2764 + $0xf0] sm:$0xff]
        %v2796 = vld [vmem:[%s2764 + $0xf8] sm:$0xff]
        %2797 = vmatpush.msra.mxu0 %v2795
        %2798 = vmatpush.msra.mxu0 %v2793
        %2799 = vmatpush.msra.mxu0 %v2791
        %2800 = vmatpush.msra.mxu0 %v2789
        %2801 = vmatpush.msra.mxu0 %v2787
        %2802 = vmatpush.msra.mxu0 %v2785
        %2803 = vmatpush.msra.mxu0 %v2783
        %2804 = vmatpush.msra.mxu0 %v2781
        %2805 = vmatpush.msra.mxu0 %v2779
        %2806 = vmatpush.msra.mxu0 %v2777
        %2807 = vmatpush.msra.mxu0 %v2775
        %2808 = vmatpush.msra.mxu0 %v2773
        %2809 = vmatpush.msra.mxu0 %v2771
        %2810 = vmatpush.msra.mxu0 %v2769
        %2811 = vmatpush.msra.mxu0 %v2767
        %2812 = vmatpush.msra.mxu0 %v2765
        %2813 = vmatmul.f32.gmra.mxu0 %v2756
        %v2814 = vpop.f32.mrf.mxu0
        %v2815 = vadd.f32 0.0, %v2814
        %2816 = vmatmul.f32.gmra.mxu0 %v2757
        %v2817 = vpop.f32.mrf.mxu0
        %v2818 = vadd.f32 0.0, %v2817
        %2819 = vmatmul.f32.gmra.mxu0 %v2758
        %v2820 = vpop.f32.mrf.mxu0
        %v2821 = vadd.f32 0.0, %v2820
        %2822 = vmatmul.f32.gmra.mxu0 %v2759
        %v2823 = vpop.f32.mrf.mxu0
        %v2824 = vadd.f32 0.0, %v2823
        %2825 = vmatmul.f32.gmra.mxu0 %v2760
        %v2826 = vpop.f32.mrf.mxu0
        %v2827 = vadd.f32 0.0, %v2826
        %2828 = vmatmul.f32.gmra.mxu0 %v2761
        %v2829 = vpop.f32.mrf.mxu0
        %v2830 = vadd.f32 0.0, %v2829
        %2831 = vmatmul.f32.gmra.mxu0 %v2762
        %v2832 = vpop.f32.mrf.mxu0
        %v2833 = vadd.f32 0.0, %v2832
        %2834 = vmatmul.f32.gmra.mxu0 %v2763
        %v2835 = vpop.f32.mrf.mxu0
        %v2836 = vadd.f32 0.0, %v2835
        %2837 = vdwg.mxu0
        %2838 = vmatpush.msra.mxu0 %v2796
        %2839 = vmatpush.msra.mxu0 %v2794
        %2840 = vmatpush.msra.mxu0 %v2792
        %2841 = vmatpush.msra.mxu0 %v2790
        %2842 = vmatpush.msra.mxu0 %v2788
        %2843 = vmatpush.msra.mxu0 %v2786
        %2844 = vmatpush.msra.mxu0 %v2784
        %2845 = vmatpush.msra.mxu0 %v2782
        %2846 = vmatpush.msra.mxu0 %v2780
        %2847 = vmatpush.msra.mxu0 %v2778
        %2848 = vmatpush.msra.mxu0 %v2776
        %2849 = vmatpush.msra.mxu0 %v2774
        %2850 = vmatpush.msra.mxu0 %v2772
        %2851 = vmatpush.msra.mxu0 %v2770
        %2852 = vmatpush.msra.mxu0 %v2768
        %2853 = vmatpush.msra.mxu0 %v2766
        %2854 = vmatmul.f32.gmra.mxu0 %v2756
        %v2855 = vpop.f32.mrf.mxu0
        %v2856 = vadd.f32 0.0, %v2855
        %2857 = vmatmul.f32.gmra.mxu0 %v2757
        %v2858 = vpop.f32.mrf.mxu0
        %v2859 = vadd.f32 0.0, %v2858
        %2860 = vmatmul.f32.gmra.mxu0 %v2758
        %v2861 = vpop.f32.mrf.mxu0
        %v2862 = vadd.f32 0.0, %v2861
        %2863 = vmatmul.f32.gmra.mxu0 %v2759
        %v2864 = vpop.f32.mrf.mxu0
        %v2865 = vadd.f32 0.0, %v2864
        %2866 = vmatmul.f32.gmra.mxu0 %v2760
        %v2867 = vpop.f32.mrf.mxu0
        %v2868 = vadd.f32 0.0, %v2867
        %2869 = vmatmul.f32.gmra.mxu0 %v2761
        %v2870 = vpop.f32.mrf.mxu0
        %v2871 = vadd.f32 0.0, %v2870
        %2872 = vmatmul.f32.gmra.mxu0 %v2762
        %v2873 = vpop.f32.mrf.mxu0
        %v2874 = vadd.f32 0.0, %v2873
        %2875 = vmatmul.f32.gmra.mxu0 %v2763
        %v2876 = vpop.f32.mrf.mxu0
        %v2877 = vadd.f32 0.0, %v2876
        %2878 = vdwg.mxu0
        %2879 = vmatpush.msra.mxu0 %v2754
        %2880 = vmatpush.msra.mxu0 %v2752
        %2881 = vmatpush.msra.mxu0 %v2750
        %2882 = vmatpush.msra.mxu0 %v2748
        %2883 = vmatpush.msra.mxu0 %v2746
        %2884 = vmatpush.msra.mxu0 %v2744
        %2885 = vmatpush.msra.mxu0 %v2742
        %2886 = vmatpush.msra.mxu0 %v2740
        %2887 = vmatpush.msra.mxu0 %v2738
        %2888 = vmatpush.msra.mxu0 %v2736
        %2889 = vmatpush.msra.mxu0 %v2734
        %2890 = vmatpush.msra.mxu0 %v2732
        %2891 = vmatpush.msra.mxu0 %v2730
        %2892 = vmatpush.msra.mxu0 %v2728
        %2893 = vmatpush.msra.mxu0 %v2726
        %2894 = vmatpush.msra.mxu0 %v2724
        %2895 = vmatmul.f32.gmra.mxu0 %v2716
        %v2896 = vpop.f32.mrf.mxu0
        %v2897 = vadd.f32 %v2815, %v2896
        %2898 = vmatmul.f32.gmra.mxu0 %v2717
        %v2899 = vpop.f32.mrf.mxu0
        %v2900 = vadd.f32 %v2818, %v2899
        %2901 = vmatmul.f32.gmra.mxu0 %v2718
        %v2902 = vpop.f32.mrf.mxu0
        %v2903 = vadd.f32 %v2821, %v2902
        %2904 = vmatmul.f32.gmra.mxu0 %v2719
        %v2905 = vpop.f32.mrf.mxu0
        %v2906 = vadd.f32 %v2824, %v2905
        %2907 = vmatmul.f32.gmra.mxu0 %v2720
        %v2908 = vpop.f32.mrf.mxu0
        %v2909 = vadd.f32 %v2827, %v2908
        %2910 = vmatmul.f32.gmra.mxu0 %v2721
        %v2911 = vpop.f32.mrf.mxu0
        %v2912 = vadd.f32 %v2830, %v2911
        %2913 = vmatmul.f32.gmra.mxu0 %v2722
        %v2914 = vpop.f32.mrf.mxu0
        %v2915 = vadd.f32 %v2833, %v2914
        %2916 = vmatmul.f32.gmra.mxu0 %v2723
        %v2917 = vpop.f32.mrf.mxu0
        %v2918 = vadd.f32 %v2836, %v2917
        %2919 = vdwg.mxu0
        %2920 = vmatpush.msra.mxu0 %v2755
        %2921 = vmatpush.msra.mxu0 %v2753
        %2922 = vmatpush.msra.mxu0 %v2751
        %2923 = vmatpush.msra.mxu0 %v2749
        %2924 = vmatpush.msra.mxu0 %v2747
        %2925 = vmatpush.msra.mxu0 %v2745
        %2926 = vmatpush.msra.mxu0 %v2743
        %2927 = vmatpush.msra.mxu0 %v2741
        %2928 = vmatpush.msra.mxu0 %v2739
        %2929 = vmatpush.msra.mxu0 %v2737
        %2930 = vmatpush.msra.mxu0 %v2735
        %2931 = vmatpush.msra.mxu0 %v2733
        %2932 = vmatpush.msra.mxu0 %v2731
        %2933 = vmatpush.msra.mxu0 %v2729
        %2934 = vmatpush.msra.mxu0 %v2727
        %2935 = vmatpush.msra.mxu0 %v2725
        %2936 = vmatmul.f32.gmra.mxu0 %v2716
        %v2937 = vpop.f32.mrf.mxu0
        %v2938 = vadd.f32 %v2856, %v2937
        %2939 = vmatmul.f32.gmra.mxu0 %v2717
        %v2940 = vpop.f32.mrf.mxu0
        %v2941 = vadd.f32 %v2859, %v2940
        %2942 = vmatmul.f32.gmra.mxu0 %v2718
        %v2943 = vpop.f32.mrf.mxu0
        %v2944 = vadd.f32 %v2862, %v2943
        %2945 = vmatmul.f32.gmra.mxu0 %v2719
        %v2946 = vpop.f32.mrf.mxu0
        %v2947 = vadd.f32 %v2865, %v2946
        %2948 = vmatmul.f32.gmra.mxu0 %v2720
        %v2949 = vpop.f32.mrf.mxu0
        %v2950 = vadd.f32 %v2868, %v2949
        %2951 = vmatmul.f32.gmra.mxu0 %v2721
        %v2952 = vpop.f32.mrf.mxu0
        %v2953 = vadd.f32 %v2871, %v2952
        %2954 = vmatmul.f32.gmra.mxu0 %v2722
        %v2955 = vpop.f32.mrf.mxu0
        %v2956 = vadd.f32 %v2874, %v2955
        %2957 = vmatmul.f32.gmra.mxu0 %v2723
        %v2958 = vpop.f32.mrf.mxu0
        %v2959 = vadd.f32 %v2877, %v2958
        %2960 = vdwg.mxu0
        %v2961 = vld [vmem:[#allocation2 + $0x2] sm:$0xff]
        %v2962 = vld [vmem:[#allocation2 + $0x12] sm:$0xff]
        %v2963 = vld [vmem:[#allocation2 + $0x22] sm:$0xff]
        %v2964 = vld [vmem:[#allocation2 + $0x32] sm:$0xff]
        %v2965 = vld [vmem:[#allocation2 + $0x42] sm:$0xff]
        %v2966 = vld [vmem:[#allocation2 + $0x52] sm:$0xff]
        %v2967 = vld [vmem:[#allocation2 + $0x62] sm:$0xff]
        %v2968 = vld [vmem:[#allocation2 + $0x72] sm:$0xff]
        %s2969 = scalar_lea.vmem %s5, 512
        %v2970 = vld [vmem:[%s2969] sm:$0xff]
        %v2971 = vld [vmem:[%s2969 + $0x8] sm:$0xff]
        %v2972 = vld [vmem:[%s2969 + $0x10] sm:$0xff]
        %v2973 = vld [vmem:[%s2969 + $0x18] sm:$0xff]
        %v2974 = vld [vmem:[%s2969 + $0x20] sm:$0xff]
        %v2975 = vld [vmem:[%s2969 + $0x28] sm:$0xff]
        %v2976 = vld [vmem:[%s2969 + $0x30] sm:$0xff]
        %v2977 = vld [vmem:[%s2969 + $0x38] sm:$0xff]
        %v2978 = vld [vmem:[%s2969 + $0x40] sm:$0xff]
        %v2979 = vld [vmem:[%s2969 + $0x48] sm:$0xff]
        %v2980 = vld [vmem:[%s2969 + $0x50] sm:$0xff]
        %v2981 = vld [vmem:[%s2969 + $0x58] sm:$0xff]
        %v2982 = vld [vmem:[%s2969 + $0x60] sm:$0xff]
        %v2983 = vld [vmem:[%s2969 + $0x68] sm:$0xff]
        %v2984 = vld [vmem:[%s2969 + $0x70] sm:$0xff]
        %v2985 = vld [vmem:[%s2969 + $0x78] sm:$0xff]
        %v2986 = vld [vmem:[%s2969 + $0x80] sm:$0xff]
        %v2987 = vld [vmem:[%s2969 + $0x88] sm:$0xff]
        %v2988 = vld [vmem:[%s2969 + $0x90] sm:$0xff]
        %v2989 = vld [vmem:[%s2969 + $0x98] sm:$0xff]
        %v2990 = vld [vmem:[%s2969 + $0xa0] sm:$0xff]
        %v2991 = vld [vmem:[%s2969 + $0xa8] sm:$0xff]
        %v2992 = vld [vmem:[%s2969 + $0xb0] sm:$0xff]
        %v2993 = vld [vmem:[%s2969 + $0xb8] sm:$0xff]
        %v2994 = vld [vmem:[%s2969 + $0xc0] sm:$0xff]
        %v2995 = vld [vmem:[%s2969 + $0xc8] sm:$0xff]
        %v2996 = vld [vmem:[%s2969 + $0xd0] sm:$0xff]
        %v2997 = vld [vmem:[%s2969 + $0xd8] sm:$0xff]
        %v2998 = vld [vmem:[%s2969 + $0xe0] sm:$0xff]
        %v2999 = vld [vmem:[%s2969 + $0xe8] sm:$0xff]
        %v3000 = vld [vmem:[%s2969 + $0xf0] sm:$0xff]
        %v3001 = vld [vmem:[%s2969 + $0xf8] sm:$0xff]
        %3002 = vmatpush.msra.mxu0 %v3000
        %3003 = vmatpush.msra.mxu0 %v2998
        %3004 = vmatpush.msra.mxu0 %v2996
        %3005 = vmatpush.msra.mxu0 %v2994
        %3006 = vmatpush.msra.mxu0 %v2992
        %3007 = vmatpush.msra.mxu0 %v2990
        %3008 = vmatpush.msra.mxu0 %v2988
        %3009 = vmatpush.msra.mxu0 %v2986
        %3010 = vmatpush.msra.mxu0 %v2984
        %3011 = vmatpush.msra.mxu0 %v2982
        %3012 = vmatpush.msra.mxu0 %v2980
        %3013 = vmatpush.msra.mxu0 %v2978
        %3014 = vmatpush.msra.mxu0 %v2976
        %3015 = vmatpush.msra.mxu0 %v2974
        %3016 = vmatpush.msra.mxu0 %v2972
        %3017 = vmatpush.msra.mxu0 %v2970
        %3018 = vmatmul.f32.gmra.mxu0 %v2961
        %v3019 = vpop.f32.mrf.mxu0
        %v3020 = vadd.f32 0.0, %v3019
        %3021 = vmatmul.f32.gmra.mxu0 %v2962
        %v3022 = vpop.f32.mrf.mxu0
        %v3023 = vadd.f32 0.0, %v3022
        %3024 = vmatmul.f32.gmra.mxu0 %v2963
        %v3025 = vpop.f32.mrf.mxu0
        %v3026 = vadd.f32 0.0, %v3025
        %3027 = vmatmul.f32.gmra.mxu0 %v2964
        %v3028 = vpop.f32.mrf.mxu0
        %v3029 = vadd.f32 0.0, %v3028
        %3030 = vmatmul.f32.gmra.mxu0 %v2965
        %v3031 = vpop.f32.mrf.mxu0
        %v3032 = vadd.f32 0.0, %v3031
        %3033 = vmatmul.f32.gmra.mxu0 %v2966
        %v3034 = vpop.f32.mrf.mxu0
        %v3035 = vadd.f32 0.0, %v3034
        %3036 = vmatmul.f32.gmra.mxu0 %v2967
        %v3037 = vpop.f32.mrf.mxu0
        %v3038 = vadd.f32 0.0, %v3037
        %3039 = vmatmul.f32.gmra.mxu0 %v2968
        %v3040 = vpop.f32.mrf.mxu0
        %v3041 = vadd.f32 0.0, %v3040
        %3042 = vdwg.mxu0
        %3043 = vmatpush.msra.mxu0 %v3001
        %3044 = vmatpush.msra.mxu0 %v2999
        %3045 = vmatpush.msra.mxu0 %v2997
        %3046 = vmatpush.msra.mxu0 %v2995
        %3047 = vmatpush.msra.mxu0 %v2993
        %3048 = vmatpush.msra.mxu0 %v2991
        %3049 = vmatpush.msra.mxu0 %v2989
        %3050 = vmatpush.msra.mxu0 %v2987
        %3051 = vmatpush.msra.mxu0 %v2985
        %3052 = vmatpush.msra.mxu0 %v2983
        %3053 = vmatpush.msra.mxu0 %v2981
        %3054 = vmatpush.msra.mxu0 %v2979
        %3055 = vmatpush.msra.mxu0 %v2977
        %3056 = vmatpush.msra.mxu0 %v2975
        %3057 = vmatpush.msra.mxu0 %v2973
        %3058 = vmatpush.msra.mxu0 %v2971
        %3059 = vmatmul.f32.gmra.mxu0 %v2961
        %v3060 = vpop.f32.mrf.mxu0
        %v3061 = vadd.f32 0.0, %v3060
        %3062 = vmatmul.f32.gmra.mxu0 %v2962
        %v3063 = vpop.f32.mrf.mxu0
        %v3064 = vadd.f32 0.0, %v3063
        %3065 = vmatmul.f32.gmra.mxu0 %v2963
        %v3066 = vpop.f32.mrf.mxu0
        %v3067 = vadd.f32 0.0, %v3066
        %3068 = vmatmul.f32.gmra.mxu0 %v2964
        %v3069 = vpop.f32.mrf.mxu0
        %v3070 = vadd.f32 0.0, %v3069
        %3071 = vmatmul.f32.gmra.mxu0 %v2965
        %v3072 = vpop.f32.mrf.mxu0
        %v3073 = vadd.f32 0.0, %v3072
        %3074 = vmatmul.f32.gmra.mxu0 %v2966
        %v3075 = vpop.f32.mrf.mxu0
        %v3076 = vadd.f32 0.0, %v3075
        %3077 = vmatmul.f32.gmra.mxu0 %v2967
        %v3078 = vpop.f32.mrf.mxu0
        %v3079 = vadd.f32 0.0, %v3078
        %3080 = vmatmul.f32.gmra.mxu0 %v2968
        %v3081 = vpop.f32.mrf.mxu0
        %v3082 = vadd.f32 0.0, %v3081
        %3083 = vdwg.mxu0
        %v3084 = vadd.f32 %v2897, %v3020
        %v3085 = vadd.f32 %v2938, %v3061
        %v3086 = vadd.f32 %v2900, %v3023
        %v3087 = vadd.f32 %v2941, %v3064
        %v3088 = vadd.f32 %v2903, %v3026
        %v3089 = vadd.f32 %v2944, %v3067
        %v3090 = vadd.f32 %v2906, %v3029
        %v3091 = vadd.f32 %v2947, %v3070
        %v3092 = vadd.f32 %v2909, %v3032
        %v3093 = vadd.f32 %v2950, %v3073
        %v3094 = vadd.f32 %v2912, %v3035
        %v3095 = vadd.f32 %v2953, %v3076
        %v3096 = vadd.f32 %v2915, %v3038
        %v3097 = vadd.f32 %v2956, %v3079
        %v3098 = vadd.f32 %v2918, %v3041
        %v3099 = vadd.f32 %v2959, %v3082
        %v3100 = vld [vmem:[#allocation2 + $0x3] sm:$0xff]
        %v3101 = vld [vmem:[#allocation2 + $0x13] sm:$0xff]
        %v3102 = vld [vmem:[#allocation2 + $0x23] sm:$0xff]
        %v3103 = vld [vmem:[#allocation2 + $0x33] sm:$0xff]
        %v3104 = vld [vmem:[#allocation2 + $0x43] sm:$0xff]
        %v3105 = vld [vmem:[#allocation2 + $0x53] sm:$0xff]
        %v3106 = vld [vmem:[#allocation2 + $0x63] sm:$0xff]
        %v3107 = vld [vmem:[#allocation2 + $0x73] sm:$0xff]
        %s3108 = scalar_lea.vmem %s5, 768
        %v3109 = vld [vmem:[%s3108] sm:$0xff]
        %v3110 = vld [vmem:[%s3108 + $0x8] sm:$0xff]
        %v3111 = vld [vmem:[%s3108 + $0x10] sm:$0xff]
        %v3112 = vld [vmem:[%s3108 + $0x18] sm:$0xff]
        %v3113 = vld [vmem:[%s3108 + $0x20] sm:$0xff]
        %v3114 = vld [vmem:[%s3108 + $0x28] sm:$0xff]
        %v3115 = vld [vmem:[%s3108 + $0x30] sm:$0xff]
        %v3116 = vld [vmem:[%s3108 + $0x38] sm:$0xff]
        %v3117 = vld [vmem:[%s3108 + $0x40] sm:$0xff]
        %v3118 = vld [vmem:[%s3108 + $0x48] sm:$0xff]
        %v3119 = vld [vmem:[%s3108 + $0x50] sm:$0xff]
        %v3120 = vld [vmem:[%s3108 + $0x58] sm:$0xff]
        %v3121 = vld [vmem:[%s3108 + $0x60] sm:$0xff]
        %v3122 = vld [vmem:[%s3108 + $0x68] sm:$0xff]
        %v3123 = vld [vmem:[%s3108 + $0x70] sm:$0xff]
        %v3124 = vld [vmem:[%s3108 + $0x78] sm:$0xff]
        %v3125 = vld [vmem:[%s3108 + $0x80] sm:$0xff]
        %v3126 = vld [vmem:[%s3108 + $0x88] sm:$0xff]
        %v3127 = vld [vmem:[%s3108 + $0x90] sm:$0xff]
        %v3128 = vld [vmem:[%s3108 + $0x98] sm:$0xff]
        %v3129 = vld [vmem:[%s3108 + $0xa0] sm:$0xff]
        %v3130 = vld [vmem:[%s3108 + $0xa8] sm:$0xff]
        %v3131 = vld [vmem:[%s3108 + $0xb0] sm:$0xff]
        %v3132 = vld [vmem:[%s3108 + $0xb8] sm:$0xff]
        %v3133 = vld [vmem:[%s3108 + $0xc0] sm:$0xff]
        %v3134 = vld [vmem:[%s3108 + $0xc8] sm:$0xff]
        %v3135 = vld [vmem:[%s3108 + $0xd0] sm:$0xff]
        %v3136 = vld [vmem:[%s3108 + $0xd8] sm:$0xff]
        %v3137 = vld [vmem:[%s3108 + $0xe0] sm:$0xff]
        %v3138 = vld [vmem:[%s3108 + $0xe8] sm:$0xff]
        %v3139 = vld [vmem:[%s3108 + $0xf0] sm:$0xff]
        %v3140 = vld [vmem:[%s3108 + $0xf8] sm:$0xff]
        %3141 = vmatpush.msra.mxu0 %v3139
        %3142 = vmatpush.msra.mxu0 %v3137
        %3143 = vmatpush.msra.mxu0 %v3135
        %3144 = vmatpush.msra.mxu0 %v3133
        %3145 = vmatpush.msra.mxu0 %v3131
        %3146 = vmatpush.msra.mxu0 %v3129
        %3147 = vmatpush.msra.mxu0 %v3127
        %3148 = vmatpush.msra.mxu0 %v3125
        %3149 = vmatpush.msra.mxu0 %v3123
        %3150 = vmatpush.msra.mxu0 %v3121
        %3151 = vmatpush.msra.mxu0 %v3119
        %3152 = vmatpush.msra.mxu0 %v3117
        %3153 = vmatpush.msra.mxu0 %v3115
        %3154 = vmatpush.msra.mxu0 %v3113
        %3155 = vmatpush.msra.mxu0 %v3111
        %3156 = vmatpush.msra.mxu0 %v3109
        %3157 = vmatmul.f32.gmra.mxu0 %v3100
        %v3158 = vpop.f32.mrf.mxu0
        %v3159 = vadd.f32 0.0, %v3158
        %3160 = vmatmul.f32.gmra.mxu0 %v3101
        %v3161 = vpop.f32.mrf.mxu0
        %v3162 = vadd.f32 0.0, %v3161
        %3163 = vmatmul.f32.gmra.mxu0 %v3102
        %v3164 = vpop.f32.mrf.mxu0
        %v3165 = vadd.f32 0.0, %v3164
        %3166 = vmatmul.f32.gmra.mxu0 %v3103
        %v3167 = vpop.f32.mrf.mxu0
        %v3168 = vadd.f32 0.0, %v3167
        %3169 = vmatmul.f32.gmra.mxu0 %v3104
        %v3170 = vpop.f32.mrf.mxu0
        %v3171 = vadd.f32 0.0, %v3170
        %3172 = vmatmul.f32.gmra.mxu0 %v3105
        %v3173 = vpop.f32.mrf.mxu0
        %v3174 = vadd.f32 0.0, %v3173
        %3175 = vmatmul.f32.gmra.mxu0 %v3106
        %v3176 = vpop.f32.mrf.mxu0
        %v3177 = vadd.f32 0.0, %v3176
        %3178 = vmatmul.f32.gmra.mxu0 %v3107
        %v3179 = vpop.f32.mrf.mxu0
        %v3180 = vadd.f32 0.0, %v3179
        %3181 = vdwg.mxu0
        %3182 = vmatpush.msra.mxu0 %v3140
        %3183 = vmatpush.msra.mxu0 %v3138
        %3184 = vmatpush.msra.mxu0 %v3136
        %3185 = vmatpush.msra.mxu0 %v3134
        %3186 = vmatpush.msra.mxu0 %v3132
        %3187 = vmatpush.msra.mxu0 %v3130
        %3188 = vmatpush.msra.mxu0 %v3128
        %3189 = vmatpush.msra.mxu0 %v3126
        %3190 = vmatpush.msra.mxu0 %v3124
        %3191 = vmatpush.msra.mxu0 %v3122
        %3192 = vmatpush.msra.mxu0 %v3120
        %3193 = vmatpush.msra.mxu0 %v3118
        %3194 = vmatpush.msra.mxu0 %v3116
        %3195 = vmatpush.msra.mxu0 %v3114
        %3196 = vmatpush.msra.mxu0 %v3112
        %3197 = vmatpush.msra.mxu0 %v3110
        %3198 = vmatmul.f32.gmra.mxu0 %v3100
        %v3199 = vpop.f32.mrf.mxu0
        %v3200 = vadd.f32 0.0, %v3199
        %3201 = vmatmul.f32.gmra.mxu0 %v3101
        %v3202 = vpop.f32.mrf.mxu0
        %v3203 = vadd.f32 0.0, %v3202
        %3204 = vmatmul.f32.gmra.mxu0 %v3102
        %v3205 = vpop.f32.mrf.mxu0
        %v3206 = vadd.f32 0.0, %v3205
        %3207 = vmatmul.f32.gmra.mxu0 %v3103
        %v3208 = vpop.f32.mrf.mxu0
        %v3209 = vadd.f32 0.0, %v3208
        %3210 = vmatmul.f32.gmra.mxu0 %v3104
        %v3211 = vpop.f32.mrf.mxu0
        %v3212 = vadd.f32 0.0, %v3211
        %3213 = vmatmul.f32.gmra.mxu0 %v3105
        %v3214 = vpop.f32.mrf.mxu0
        %v3215 = vadd.f32 0.0, %v3214
        %3216 = vmatmul.f32.gmra.mxu0 %v3106
        %v3217 = vpop.f32.mrf.mxu0
        %v3218 = vadd.f32 0.0, %v3217
        %3219 = vmatmul.f32.gmra.mxu0 %v3107
        %v3220 = vpop.f32.mrf.mxu0
        %v3221 = vadd.f32 0.0, %v3220
        %3222 = vdwg.mxu0
        %v3223 = vadd.f32 %v3084, %v3159
        %v3224 = vadd.f32 %v3085, %v3200
        %v3225 = vadd.f32 %v3086, %v3162
        %v3226 = vadd.f32 %v3087, %v3203
        %v3227 = vadd.f32 %v3088, %v3165
        %v3228 = vadd.f32 %v3089, %v3206
        %v3229 = vadd.f32 %v3090, %v3168
        %v3230 = vadd.f32 %v3091, %v3209
        %v3231 = vadd.f32 %v3092, %v3171
        %v3232 = vadd.f32 %v3093, %v3212
        %v3233 = vadd.f32 %v3094, %v3174
        %v3234 = vadd.f32 %v3095, %v3215
        %v3235 = vadd.f32 %v3096, %v3177
        %v3236 = vadd.f32 %v3097, %v3218
        %v3237 = vadd.f32 %v3098, %v3180
        %v3238 = vadd.f32 %v3099, %v3221
        %v3239 = vld [vmem:[#allocation2 + $0x4] sm:$0xff]
        %v3240 = vld [vmem:[#allocation2 + $0x14] sm:$0xff]
        %v3241 = vld [vmem:[#allocation2 + $0x24] sm:$0xff]
        %v3242 = vld [vmem:[#allocation2 + $0x34] sm:$0xff]
        %v3243 = vld [vmem:[#allocation2 + $0x44] sm:$0xff]
        %v3244 = vld [vmem:[#allocation2 + $0x54] sm:$0xff]
        %v3245 = vld [vmem:[#allocation2 + $0x64] sm:$0xff]
        %v3246 = vld [vmem:[#allocation2 + $0x74] sm:$0xff]
        %s3247 = scalar_lea.vmem %s5, 1024
        %v3248 = vld [vmem:[%s3247] sm:$0xff]
        %v3249 = vld [vmem:[%s3247 + $0x8] sm:$0xff]
        %v3250 = vld [vmem:[%s3247 + $0x10] sm:$0xff]
        %v3251 = vld [vmem:[%s3247 + $0x18] sm:$0xff]
        %v3252 = vld [vmem:[%s3247 + $0x20] sm:$0xff]
        %v3253 = vld [vmem:[%s3247 + $0x28] sm:$0xff]
        %v3254 = vld [vmem:[%s3247 + $0x30] sm:$0xff]
        %v3255 = vld [vmem:[%s3247 + $0x38] sm:$0xff]
        %v3256 = vld [vmem:[%s3247 + $0x40] sm:$0xff]
        %v3257 = vld [vmem:[%s3247 + $0x48] sm:$0xff]
        %v3258 = vld [vmem:[%s3247 + $0x50] sm:$0xff]
        %v3259 = vld [vmem:[%s3247 + $0x58] sm:$0xff]
        %v3260 = vld [vmem:[%s3247 + $0x60] sm:$0xff]
        %v3261 = vld [vmem:[%s3247 + $0x68] sm:$0xff]
        %v3262 = vld [vmem:[%s3247 + $0x70] sm:$0xff]
        %v3263 = vld [vmem:[%s3247 + $0x78] sm:$0xff]
        %v3264 = vld [vmem:[%s3247 + $0x80] sm:$0xff]
        %v3265 = vld [vmem:[%s3247 + $0x88] sm:$0xff]
        %v3266 = vld [vmem:[%s3247 + $0x90] sm:$0xff]
        %v3267 = vld [vmem:[%s3247 + $0x98] sm:$0xff]
        %v3268 = vld [vmem:[%s3247 + $0xa0] sm:$0xff]
        %v3269 = vld [vmem:[%s3247 + $0xa8] sm:$0xff]
        %v3270 = vld [vmem:[%s3247 + $0xb0] sm:$0xff]
        %v3271 = vld [vmem:[%s3247 + $0xb8] sm:$0xff]
        %v3272 = vld [vmem:[%s3247 + $0xc0] sm:$0xff]
        %v3273 = vld [vmem:[%s3247 + $0xc8] sm:$0xff]
        %v3274 = vld [vmem:[%s3247 + $0xd0] sm:$0xff]
        %v3275 = vld [vmem:[%s3247 + $0xd8] sm:$0xff]
        %v3276 = vld [vmem:[%s3247 + $0xe0] sm:$0xff]
        %v3277 = vld [vmem:[%s3247 + $0xe8] sm:$0xff]
        %v3278 = vld [vmem:[%s3247 + $0xf0] sm:$0xff]
        %v3279 = vld [vmem:[%s3247 + $0xf8] sm:$0xff]
        %3280 = vmatpush.msra.mxu0 %v3278
        %3281 = vmatpush.msra.mxu0 %v3276
        %3282 = vmatpush.msra.mxu0 %v3274
        %3283 = vmatpush.msra.mxu0 %v3272
        %3284 = vmatpush.msra.mxu0 %v3270
        %3285 = vmatpush.msra.mxu0 %v3268
        %3286 = vmatpush.msra.mxu0 %v3266
        %3287 = vmatpush.msra.mxu0 %v3264
        %3288 = vmatpush.msra.mxu0 %v3262
        %3289 = vmatpush.msra.mxu0 %v3260
        %3290 = vmatpush.msra.mxu0 %v3258
        %3291 = vmatpush.msra.mxu0 %v3256
        %3292 = vmatpush.msra.mxu0 %v3254
        %3293 = vmatpush.msra.mxu0 %v3252
        %3294 = vmatpush.msra.mxu0 %v3250
        %3295 = vmatpush.msra.mxu0 %v3248
        %3296 = vmatmul.f32.gmra.mxu0 %v3239
        %v3297 = vpop.f32.mrf.mxu0
        %v3298 = vadd.f32 0.0, %v3297
        %3299 = vmatmul.f32.gmra.mxu0 %v3240
        %v3300 = vpop.f32.mrf.mxu0
        %v3301 = vadd.f32 0.0, %v3300
        %3302 = vmatmul.f32.gmra.mxu0 %v3241
        %v3303 = vpop.f32.mrf.mxu0
        %v3304 = vadd.f32 0.0, %v3303
        %3305 = vmatmul.f32.gmra.mxu0 %v3242
        %v3306 = vpop.f32.mrf.mxu0
        %v3307 = vadd.f32 0.0, %v3306
        %3308 = vmatmul.f32.gmra.mxu0 %v3243
        %v3309 = vpop.f32.mrf.mxu0
        %v3310 = vadd.f32 0.0, %v3309
        %3311 = vmatmul.f32.gmra.mxu0 %v3244
        %v3312 = vpop.f32.mrf.mxu0
        %v3313 = vadd.f32 0.0, %v3312
        %3314 = vmatmul.f32.gmra.mxu0 %v3245
        %v3315 = vpop.f32.mrf.mxu0
        %v3316 = vadd.f32 0.0, %v3315
        %3317 = vmatmul.f32.gmra.mxu0 %v3246
        %v3318 = vpop.f32.mrf.mxu0
        %v3319 = vadd.f32 0.0, %v3318
        %3320 = vdwg.mxu0
        %3321 = vmatpush.msra.mxu0 %v3279
        %3322 = vmatpush.msra.mxu0 %v3277
        %3323 = vmatpush.msra.mxu0 %v3275
        %3324 = vmatpush.msra.mxu0 %v3273
        %3325 = vmatpush.msra.mxu0 %v3271
        %3326 = vmatpush.msra.mxu0 %v3269
        %3327 = vmatpush.msra.mxu0 %v3267
        %3328 = vmatpush.msra.mxu0 %v3265
        %3329 = vmatpush.msra.mxu0 %v3263
        %3330 = vmatpush.msra.mxu0 %v3261
        %3331 = vmatpush.msra.mxu0 %v3259
        %3332 = vmatpush.msra.mxu0 %v3257
        %3333 = vmatpush.msra.mxu0 %v3255
        %3334 = vmatpush.msra.mxu0 %v3253
        %3335 = vmatpush.msra.mxu0 %v3251
        %3336 = vmatpush.msra.mxu0 %v3249
        %3337 = vmatmul.f32.gmra.mxu0 %v3239
        %v3338 = vpop.f32.mrf.mxu0
        %v3339 = vadd.f32 0.0, %v3338
        %3340 = vmatmul.f32.gmra.mxu0 %v3240
        %v3341 = vpop.f32.mrf.mxu0
        %v3342 = vadd.f32 0.0, %v3341
        %3343 = vmatmul.f32.gmra.mxu0 %v3241
        %v3344 = vpop.f32.mrf.mxu0
        %v3345 = vadd.f32 0.0, %v3344
        %3346 = vmatmul.f32.gmra.mxu0 %v3242
        %v3347 = vpop.f32.mrf.mxu0
        %v3348 = vadd.f32 0.0, %v3347
        %3349 = vmatmul.f32.gmra.mxu0 %v3243
        %v3350 = vpop.f32.mrf.mxu0
        %v3351 = vadd.f32 0.0, %v3350
        %3352 = vmatmul.f32.gmra.mxu0 %v3244
        %v3353 = vpop.f32.mrf.mxu0
        %v3354 = vadd.f32 0.0, %v3353
        %3355 = vmatmul.f32.gmra.mxu0 %v3245
        %v3356 = vpop.f32.mrf.mxu0
        %v3357 = vadd.f32 0.0, %v3356
        %3358 = vmatmul.f32.gmra.mxu0 %v3246
        %v3359 = vpop.f32.mrf.mxu0
        %v3360 = vadd.f32 0.0, %v3359
        %3361 = vdwg.mxu0
        %v3362 = vadd.f32 %v3223, %v3298
        %v3363 = vadd.f32 %v3224, %v3339
        %v3364 = vadd.f32 %v3225, %v3301
        %v3365 = vadd.f32 %v3226, %v3342
        %v3366 = vadd.f32 %v3227, %v3304
        %v3367 = vadd.f32 %v3228, %v3345
        %v3368 = vadd.f32 %v3229, %v3307
        %v3369 = vadd.f32 %v3230, %v3348
        %v3370 = vadd.f32 %v3231, %v3310
        %v3371 = vadd.f32 %v3232, %v3351
        %v3372 = vadd.f32 %v3233, %v3313
        %v3373 = vadd.f32 %v3234, %v3354
        %v3374 = vadd.f32 %v3235, %v3316
        %v3375 = vadd.f32 %v3236, %v3357
        %v3376 = vadd.f32 %v3237, %v3319
        %v3377 = vadd.f32 %v3238, %v3360
        %v3378 = vmax.f32 %v3362, %v3363
        %v3379 = vmax.f32 %v3364, %v3365
        %v3380 = vmax.f32 %v3366, %v3367
        %v3381 = vmax.f32 %v3368, %v3369
        %v3382 = vmax.f32 %v3370, %v3371
        %v3383 = vmax.f32 %v3372, %v3373
        %v3384 = vmax.f32 %v3374, %v3375
        %v3385 = vmax.f32 %v3376, %v3377
        %v3386 = vld [vmem:[#allocation3] sm:$0xff]
        %v3387 = vld [vmem:[#allocation3 + $0x8] sm:$0xff]
        %v3388 = vld [vmem:[#allocation3 + $0x10] sm:$0xff]
        %v3389 = vld [vmem:[#allocation3 + $0x18] sm:$0xff]
        %v3391 = vsel %vm2259, %v3386, 0
        %v3394 = vsel %vm2259, %v3387, 0
        %v3397 = vsel %vm2259, %v3388, 0
        %v3400 = vsel %vm2259, %v3389, 0
        %3402 = vmatpush.msra.mxu0 0.0
        %3403 = vmatpush.msra.mxu0 0.0
        %3404 = vmatpush.msra.mxu0 0.0
        %3405 = vmatpush.msra.mxu0 0.0
        %3406 = vmatpush.msra.mxu0 0.0
        %3407 = vmatpush.msra.mxu0 0.0
        %3408 = vmatpush.msra.mxu0 0.0
        %3409 = vmatpush.msra.mxu0 0.0
        %3410 = vmatpush.msra.mxu0 %v3385
        %3411 = vmatpush.msra.mxu0 %v3384
        %3412 = vmatpush.msra.mxu0 %v3383
        %3413 = vmatpush.msra.mxu0 %v3382
        %3414 = vmatpush.msra.mxu0 %v3381
        %3415 = vmatpush.msra.mxu0 %v3380
        %3416 = vmatpush.msra.mxu0 %v3379
        %3417 = vmatpush.msra.mxu0 %v3378
        %3418 = vmatmul.f32.gmra.mxu0 %v3391
        %v3419 = vpop.f32.mrf.mxu0
        %v3420 = vadd.f32 0.0, %v3419
        %3421 = vmatmul.f32.gmra.mxu0 %v3394
        %v3422 = vpop.f32.mrf.mxu0
        %v3423 = vadd.f32 0.0, %v3422
        %3424 = vmatmul.f32.gmra.mxu0 %v3397
        %v3425 = vpop.f32.mrf.mxu0
        %v3426 = vadd.f32 0.0, %v3425
        %3427 = vmatmul.f32.gmra.mxu0 %v3400
        %v3428 = vpop.f32.mrf.mxu0
        %v3429 = vadd.f32 0.0, %v3428
        %3430 = vdwg.mxu0
        %v3431 = vld [vmem:[#allocation6] sm:$0xff]
        %v3432 = vld [vmem:[#allocation6 + $0x8] sm:$0xff]
        %v3433 = vld [vmem:[#allocation6 + $0x10] sm:$0xff]
        %v3434 = vld [vmem:[#allocation6 + $0x18] sm:$0xff]
        %v3436 = vsel %vm2259, %v3431, 0
        %v3439 = vsel %vm2259, %v3432, 0
        %v3442 = vsel %vm2259, %v3433, 0
        %v3445 = vsel %vm2259, %v3434, 0
        %3447 = vmatpush.msra.mxu0 0.0
        %3448 = vmatpush.msra.mxu0 0.0
        %3449 = vmatpush.msra.mxu0 0.0
        %3450 = vmatpush.msra.mxu0 0.0
        %3451 = vmatpush.msra.mxu0 0.0
        %3452 = vmatpush.msra.mxu0 0.0
        %3453 = vmatpush.msra.mxu0 0.0
        %3454 = vmatpush.msra.mxu0 0.0
        %3455 = vmatpush.msra.mxu0 %v3385
        %3456 = vmatpush.msra.mxu0 %v3384
        %3457 = vmatpush.msra.mxu0 %v3383
        %3458 = vmatpush.msra.mxu0 %v3382
        %3459 = vmatpush.msra.mxu0 %v3381
        %3460 = vmatpush.msra.mxu0 %v3380
        %3461 = vmatpush.msra.mxu0 %v3379
        %3462 = vmatpush.msra.mxu0 %v3378
        %3463 = vmatmul.f32.gmra.mxu0 %v3436
        %v3464 = vpop.f32.mrf.mxu0
        %v3465 = vadd.f32 0.0, %v3464
        %3466 = vmatmul.f32.gmra.mxu0 %v3439
        %v3467 = vpop.f32.mrf.mxu0
        %v3468 = vadd.f32 0.0, %v3467
        %3469 = vmatmul.f32.gmra.mxu0 %v3442
        %v3470 = vpop.f32.mrf.mxu0
        %v3471 = vadd.f32 0.0, %v3470
        %3472 = vmatmul.f32.gmra.mxu0 %v3445
        %v3473 = vpop.f32.mrf.mxu0
        %v3474 = vadd.f32 0.0, %v3473
        %3475 = vdwg.mxu0
        %v3476 = vmax.f32 %v3420, %v3465
        %v3477 = vmax.f32 %v3423, %v3468
        %v3478 = vmax.f32 %v3426, %v3471
        %v3479 = vmax.f32 %v3429, %v3474
        %v3480 = vld [vmem:[%s8] sm:$0x1]
        %v3482 = vperm.slane %v3480, 0
        %v3484 = vadd.f32 %v3476, %v3482
        %v3485 = vadd.f32 %v3477, %v3482
        %v3486 = vadd.f32 %v3478, %v3482
        %v3487 = vadd.f32 %v3479, %v3482
        %v3488 = vmax.f32 %v3484, 0.0
        %v3489 = vmax.f32 %v3485, 0.0
        %v3490 = vmax.f32 %v3486, 0.0
        %v3491 = vmax.f32 %v3487, 0.0
        %v3492 = vld [vmem:[%s9] sm:$0xff]
        %v3493 = vld [vmem:[%s9 + $0x8] sm:$0xff]
        %v3494 = vld [vmem:[%s9 + $0x10] sm:$0xff]
        %v3495 = vld [vmem:[%s9 + $0x18] sm:$0xff]
        %v3496 = vld [vmem:[%s9 + $0x20] sm:$0xff]
        %v3497 = vld [vmem:[%s9 + $0x28] sm:$0xff]
        %v3498 = vld [vmem:[%s9 + $0x30] sm:$0xff]
        %v3499 = vld [vmem:[%s9 + $0x38] sm:$0xff]
        %v3500 = vld [vmem:[%s9 + $0x40] sm:$0xff]
        %v3501 = vld [vmem:[%s9 + $0x48] sm:$0xff]
        %v3502 = vld [vmem:[%s9 + $0x50] sm:$0xff]
        %v3503 = vld [vmem:[%s9 + $0x58] sm:$0xff]
        %v3504 = vld [vmem:[%s9 + $0x60] sm:$0xff]
        %v3505 = vld [vmem:[%s9 + $0x68] sm:$0xff]
        %v3506 = vld [vmem:[%s9 + $0x70] sm:$0xff]
        %v3507 = vld [vmem:[%s9 + $0x78] sm:$0xff]
        %s3508 = scalar_lea.vmem %s9, 128
        %v3509 = vld [vmem:[%s3508] sm:$0xff]
        %v3510 = vld [vmem:[%s3508 + $0x8] sm:$0xff]
        %v3511 = vld [vmem:[%s3508 + $0x10] sm:$0xff]
        %v3512 = vld [vmem:[%s3508 + $0x18] sm:$0xff]
        %v3513 = vld [vmem:[%s3508 + $0x20] sm:$0xff]
        %v3514 = vld [vmem:[%s3508 + $0x28] sm:$0xff]
        %v3515 = vld [vmem:[%s3508 + $0x30] sm:$0xff]
        %v3516 = vld [vmem:[%s3508 + $0x38] sm:$0xff]
        %v3517 = vld [vmem:[%s3508 + $0x40] sm:$0xff]
        %v3518 = vld [vmem:[%s3508 + $0x48] sm:$0xff]
        %v3519 = vld [vmem:[%s3508 + $0x50] sm:$0xff]
        %v3520 = vld [vmem:[%s3508 + $0x58] sm:$0xff]
        %v3521 = vld [vmem:[%s3508 + $0x60] sm:$0xff]
        %v3522 = vld [vmem:[%s3508 + $0x68] sm:$0xff]
        %v3523 = vld [vmem:[%s3508 + $0x70] sm:$0xff]
        %v3524 = vld [vmem:[%s3508 + $0x78] sm:$0xff]
        %3525 = vmatpush.msra.mxu0 %v3524
        %3526 = vmatpush.msra.mxu0 %v3523
        %3527 = vmatpush.msra.mxu0 %v3522
        %3528 = vmatpush.msra.mxu0 %v3521
        %3529 = vmatpush.msra.mxu0 %v3520
        %3530 = vmatpush.msra.mxu0 %v3519
        %3531 = vmatpush.msra.mxu0 %v3518
        %3532 = vmatpush.msra.mxu0 %v3517
        %3533 = vmatpush.msra.mxu0 %v3516
        %3534 = vmatpush.msra.mxu0 %v3515
        %3535 = vmatpush.msra.mxu0 %v3514
        %3536 = vmatpush.msra.mxu0 %v3513
        %3537 = vmatpush.msra.mxu0 %v3512
        %3538 = vmatpush.msra.mxu0 %v3511
        %3539 = vmatpush.msra.mxu0 %v3510
        %3540 = vmatpush.msra.mxu0 %v3509
        %3541 = vmatmul.f32.gmra.mxu0 %v3489
        %v3542 = vpop.f32.mrf.mxu0
        %v3543 = vadd.f32 0.0, %v3542
        %3544 = vdwg.mxu0
        %3545 = vmatpush.msra.mxu0 %v3507
        %3546 = vmatpush.msra.mxu0 %v3506
        %3547 = vmatpush.msra.mxu0 %v3505
        %3548 = vmatpush.msra.mxu0 %v3504
        %3549 = vmatpush.msra.mxu0 %v3503
        %3550 = vmatpush.msra.mxu0 %v3502
        %3551 = vmatpush.msra.mxu0 %v3501
        %3552 = vmatpush.msra.mxu0 %v3500
        %3553 = vmatpush.msra.mxu0 %v3499
        %3554 = vmatpush.msra.mxu0 %v3498
        %3555 = vmatpush.msra.mxu0 %v3497
        %3556 = vmatpush.msra.mxu0 %v3496
        %3557 = vmatpush.msra.mxu0 %v3495
        %3558 = vmatpush.msra.mxu0 %v3494
        %3559 = vmatpush.msra.mxu0 %v3493
        %3560 = vmatpush.msra.mxu0 %v3492
        %3561 = vmatmul.f32.gmra.mxu0 %v3488
        %v3562 = vpop.f32.mrf.mxu0
        %v3563 = vadd.f32 %v3543, %v3562
        %3564 = vdwg.mxu0
        %3565 = vmatpush.msra.mxu0 %v3524
        %3566 = vmatpush.msra.mxu0 %v3523
        %3567 = vmatpush.msra.mxu0 %v3522
        %3568 = vmatpush.msra.mxu0 %v3521
        %3569 = vmatpush.msra.mxu0 %v3520
        %3570 = vmatpush.msra.mxu0 %v3519
        %3571 = vmatpush.msra.mxu0 %v3518
        %3572 = vmatpush.msra.mxu0 %v3517
        %3573 = vmatpush.msra.mxu0 %v3516
        %3574 = vmatpush.msra.mxu0 %v3515
        %3575 = vmatpush.msra.mxu0 %v3514
        %3576 = vmatpush.msra.mxu0 %v3513
        %3577 = vmatpush.msra.mxu0 %v3512
        %3578 = vmatpush.msra.mxu0 %v3511
        %3579 = vmatpush.msra.mxu0 %v3510
        %3580 = vmatpush.msra.mxu0 %v3509
        %3581 = vmatmul.f32.gmra.mxu0 %v3490
        %v3582 = vpop.f32.mrf.mxu0
        %v3583 = vadd.f32 0.0, %v3582
        %3584 = vdwg.mxu0
        %3585 = vmatpush.msra.mxu0 %v3507
        %3586 = vmatpush.msra.mxu0 %v3506
        %3587 = vmatpush.msra.mxu0 %v3505
        %3588 = vmatpush.msra.mxu0 %v3504
        %3589 = vmatpush.msra.mxu0 %v3503
        %3590 = vmatpush.msra.mxu0 %v3502
        %3591 = vmatpush.msra.mxu0 %v3501
        %3592 = vmatpush.msra.mxu0 %v3500
        %3593 = vmatpush.msra.mxu0 %v3499
        %3594 = vmatpush.msra.mxu0 %v3498
        %3595 = vmatpush.msra.mxu0 %v3497
        %3596 = vmatpush.msra.mxu0 %v3496
        %3597 = vmatpush.msra.mxu0 %v3495
        %3598 = vmatpush.msra.mxu0 %v3494
        %3599 = vmatpush.msra.mxu0 %v3493
        %3600 = vmatpush.msra.mxu0 %v3492
        %3601 = vmatmul.f32.gmra.mxu0 %v3489
        %v3602 = vpop.f32.mrf.mxu0
        %v3603 = vadd.f32 %v3583, %v3602
        %3604 = vdwg.mxu0
        %s3605 = scalar_lea.vmem %s9, 256
        %v3606 = vld [vmem:[%s3605] sm:$0xff]
        %v3607 = vld [vmem:[%s3605 + $0x8] sm:$0xff]
        %v3608 = vld [vmem:[%s3605 + $0x10] sm:$0xff]
        %v3609 = vld [vmem:[%s3605 + $0x18] sm:$0xff]
        %v3610 = vld [vmem:[%s3605 + $0x20] sm:$0xff]
        %v3611 = vld [vmem:[%s3605 + $0x28] sm:$0xff]
        %v3612 = vld [vmem:[%s3605 + $0x30] sm:$0xff]
        %v3613 = vld [vmem:[%s3605 + $0x38] sm:$0xff]
        %v3614 = vld [vmem:[%s3605 + $0x40] sm:$0xff]
        %v3615 = vld [vmem:[%s3605 + $0x48] sm:$0xff]
        %v3616 = vld [vmem:[%s3605 + $0x50] sm:$0xff]
        %v3617 = vld [vmem:[%s3605 + $0x58] sm:$0xff]
        %v3618 = vld [vmem:[%s3605 + $0x60] sm:$0xff]
        %v3619 = vld [vmem:[%s3605 + $0x68] sm:$0xff]
        %v3620 = vld [vmem:[%s3605 + $0x70] sm:$0xff]
        %v3621 = vld [vmem:[%s3605 + $0x78] sm:$0xff]
        %3622 = vmatpush.msra.mxu0 %v3621
        %3623 = vmatpush.msra.mxu0 %v3620
        %3624 = vmatpush.msra.mxu0 %v3619
        %3625 = vmatpush.msra.mxu0 %v3618
        %3626 = vmatpush.msra.mxu0 %v3617
        %3627 = vmatpush.msra.mxu0 %v3616
        %3628 = vmatpush.msra.mxu0 %v3615
        %3629 = vmatpush.msra.mxu0 %v3614
        %3630 = vmatpush.msra.mxu0 %v3613
        %3631 = vmatpush.msra.mxu0 %v3612
        %3632 = vmatpush.msra.mxu0 %v3611
        %3633 = vmatpush.msra.mxu0 %v3610
        %3634 = vmatpush.msra.mxu0 %v3609
        %3635 = vmatpush.msra.mxu0 %v3608
        %3636 = vmatpush.msra.mxu0 %v3607
        %3637 = vmatpush.msra.mxu0 %v3606
        %3638 = vmatmul.f32.gmra.mxu0 %v3490
        %v3639 = vpop.f32.mrf.mxu0
        %v3640 = vadd.f32 0.0, %v3639
        %3641 = vdwg.mxu0
        %v3642 = vadd.f32 %v3563, %v3640
        %3643 = vmatpush.msra.mxu0 %v3621
        %3644 = vmatpush.msra.mxu0 %v3620
        %3645 = vmatpush.msra.mxu0 %v3619
        %3646 = vmatpush.msra.mxu0 %v3618
        %3647 = vmatpush.msra.mxu0 %v3617
        %3648 = vmatpush.msra.mxu0 %v3616
        %3649 = vmatpush.msra.mxu0 %v3615
        %3650 = vmatpush.msra.mxu0 %v3614
        %3651 = vmatpush.msra.mxu0 %v3613
        %3652 = vmatpush.msra.mxu0 %v3612
        %3653 = vmatpush.msra.mxu0 %v3611
        %3654 = vmatpush.msra.mxu0 %v3610
        %3655 = vmatpush.msra.mxu0 %v3609
        %3656 = vmatpush.msra.mxu0 %v3608
        %3657 = vmatpush.msra.mxu0 %v3607
        %3658 = vmatpush.msra.mxu0 %v3606
        %3659 = vmatmul.f32.gmra.mxu0 %v3491
        %v3660 = vpop.f32.mrf.mxu0
        %v3661 = vadd.f32 0.0, %v3660
        %3662 = vdwg.mxu0
        %v3663 = vadd.f32 %v3603, %v3661
        %v3664 = vld [vmem:[%s10] sm:$0x1]
        %v3666 = vperm.slane %v3664, 0
        %v3668 = vadd.f32 %v3642, %v3666
        %v3669 = vmax.f32 %v3668, 0.0
        %v3670 = vadd.f32 %v3663, %v3666
        %v3671 = vmax.f32 %v3670, 0.0
        %v3672 = vld [vmem:[%s11] sm:$0xff]
        %v3673 = vld [vmem:[%s11 + $0x8] sm:$0xff]
        %v3674 = vld [vmem:[%s11 + $0x10] sm:$0xff]
        %v3675 = vld [vmem:[%s11 + $0x18] sm:$0xff]
        %v3676 = vld [vmem:[%s11 + $0x20] sm:$0xff]
        %v3677 = vld [vmem:[%s11 + $0x28] sm:$0xff]
        %v3678 = vld [vmem:[%s11 + $0x30] sm:$0xff]
        %v3679 = vld [vmem:[%s11 + $0x38] sm:$0xff]
        %v3680 = vld [vmem:[%s12] sm:$0xff]
        %v3681 = vld [vmem:[%s12 + $0x8] sm:$0xff]
        %v3682 = vld [vmem:[%s12 + $0x10] sm:$0xff]
        %v3683 = vld [vmem:[%s12 + $0x18] sm:$0xff]
        %v3684 = vld [vmem:[%s12 + $0x20] sm:$0xff]
        %v3685 = vld [vmem:[%s12 + $0x28] sm:$0xff]
        %v3686 = vld [vmem:[%s12 + $0x30] sm:$0xff]
        %v3687 = vld [vmem:[%s12 + $0x38] sm:$0xff]
        %v3689 = vsel %vm2259, %v3671, 0
        %3691 = vmatpush.msra.mxu0 0.0
        %3692 = vmatpush.msra.mxu0 0.0
        %3693 = vmatpush.msra.mxu0 0.0
        %3694 = vmatpush.msra.mxu0 0.0
        %3695 = vmatpush.msra.mxu0 0.0
        %3696 = vmatpush.msra.mxu0 0.0
        %3697 = vmatpush.msra.mxu0 0.0
        %3698 = vmatpush.msra.mxu0 0.0
        %3699 = vmatpush.msra.mxu0 %v3687
        %3700 = vmatpush.msra.mxu0 %v3686
        %3701 = vmatpush.msra.mxu0 %v3685
        %3702 = vmatpush.msra.mxu0 %v3684
        %3703 = vmatpush.msra.mxu0 %v3683
        %3704 = vmatpush.msra.mxu0 %v3682
        %3705 = vmatpush.msra.mxu0 %v3681
        %3706 = vmatpush.msra.mxu0 %v3680
        %3707 = vmatmul.f32.gmra.mxu0 %v3689
        %v3708 = vpop.f32.mrf.mxu0
        %v3709 = vadd.f32 0.0, %v3708
        %3710 = vdwg.mxu0
        %v3712 = vsel %vm2259, %v3669, 0
        %3714 = vmatpush.msra.mxu0 0.0
        %3715 = vmatpush.msra.mxu0 0.0
        %3716 = vmatpush.msra.mxu0 0.0
        %3717 = vmatpush.msra.mxu0 0.0
        %3718 = vmatpush.msra.mxu0 0.0
        %3719 = vmatpush.msra.mxu0 0.0
        %3720 = vmatpush.msra.mxu0 0.0
        %3721 = vmatpush.msra.mxu0 0.0
        %3722 = vmatpush.msra.mxu0 %v3679
        %3723 = vmatpush.msra.mxu0 %v3678
        %3724 = vmatpush.msra.mxu0 %v3677
        %3725 = vmatpush.msra.mxu0 %v3676
        %3726 = vmatpush.msra.mxu0 %v3675
        %3727 = vmatpush.msra.mxu0 %v3674
        %3728 = vmatpush.msra.mxu0 %v3673
        %3729 = vmatpush.msra.mxu0 %v3672
        %3730 = vmatmul.f32.gmra.mxu0 %v3712
        %v3731 = vpop.f32.mrf.mxu0
        %v3732 = vadd.f32 %v3709, %v3731
        %3733 = vdwg.mxu0
        %v3734 = vld [vmem:[%s13] sm:$0x1]
        %v3736 = vperm.slane %v3734, 0
        %v3738 = vadd.f32 %v3732, %v3736
        %v3739 = vmax.f32 %v3738, 0.0
        %v3740 = vld [vmem:[%s14] sm:$0xff]
        %v3741 = vld [vmem:[%s14 + $0x8] sm:$0xff]
        %v3742 = vld [vmem:[%s14 + $0x10] sm:$0xff]
        %v3743 = vld [vmem:[%s14 + $0x18] sm:$0xff]
        %v3744 = vld [vmem:[%s15] sm:$0x1]
        %v3746 = vperm.slane %v3744, 0
        %vm3748 = vcmask 261120
        %v3750 = vsel %vm3748, %v3739, 0
        %3752 = vmatpush.msra.mxu0 0.0
        %3753 = vmatpush.msra.mxu0 0.0
        %3754 = vmatpush.msra.mxu0 0.0
        %3755 = vmatpush.msra.mxu0 0.0
        %3756 = vmatpush.msra.mxu0 0.0
        %3757 = vmatpush.msra.mxu0 0.0
        %3758 = vmatpush.msra.mxu0 0.0
        %3759 = vmatpush.msra.mxu0 0.0
        %3760 = vmatpush.msra.mxu0 0.0
        %3761 = vmatpush.msra.mxu0 0.0
        %3762 = vmatpush.msra.mxu0 0.0
        %3763 = vmatpush.msra.mxu0 0.0
        %3764 = vmatpush.msra.mxu0 %v3743
        %3765 = vmatpush.msra.mxu0 %v3742
        %3766 = vmatpush.msra.mxu0 %v3741
        %3767 = vmatpush.msra.mxu0 %v3740
        %3768 = vmatmul.f32.gmra.mxu0 %v3750
        %v3769 = vpop.f32.mrf.mxu0
        %v3770 = vadd.f32 %v3746, %v3769
        %3771 = vdwg.mxu0
        %v3772 = vmax.f32 %v3770, 0.0
        %v3773 = vld [vmem:[%s16] sm:$0xff]
        %v3774 = vld [vmem:[%s16 + $0x8] sm:$0xff]
        %v3775 = vld [vmem:[%s17] sm:$0x1]
        %v3777 = vperm.slane %v3775, 0
        %vm3779 = vcmask 130048
        %v3781 = vsel %vm3779, %v3772, 0
        %3783 = vmatpush.msra.mxu0 0.0
        %3784 = vmatpush.msra.mxu0 0.0
        %3785 = vmatpush.msra.mxu0 0.0
        %3786 = vmatpush.msra.mxu0 0.0
        %3787 = vmatpush.msra.mxu0 0.0
        %3788 = vmatpush.msra.mxu0 0.0
        %3789 = vmatpush.msra.mxu0 0.0
        %3790 = vmatpush.msra.mxu0 0.0
        %3791 = vmatpush.msra.mxu0 0.0
        %3792 = vmatpush.msra.mxu0 0.0
        %3793 = vmatpush.msra.mxu0 0.0
        %3794 = vmatpush.msra.mxu0 0.0
        %3795 = vmatpush.msra.mxu0 0.0
        %3796 = vmatpush.msra.mxu0 0.0
        %3797 = vmatpush.msra.mxu0 %v3774
        %3798 = vmatpush.msra.mxu0 %v3773
        %3799 = vmatmul.f32.gmra.mxu0 %v3781
        %v3800 = vpop.f32.mrf.mxu0
        %v3801 = vadd.f32 %v3777, %v3800
        %3802 = vdwg.mxu0
        %3803 = vst [vmem:[%s605] sm:$0xff] %v3801
        %s3804 = sand.u32 %s425, 1
        %s3805 = scalar_lea.sflag [#allocation5], %s3804
        %s3806 = sand.u32 %s425, 1
        %s3807 = smul.addr %s3806, 8
        %s3808 = scalar_lea.vmem [#allocation8], %s3807
        // Predicated region
        $region101: #{convnet_forward.1} parent=91 // pred_check
          %p3809 = pneg %p435
        $region102: #{convnet_forward.1} parent=91 // pred_check_branch
          %3811 = sbr.rel (%p3809) target = $region104
        $region103: #{convnet_forward.1} parent=91 // pred_region
          %3813 = vsyncadd %s3805, 0
          %s3814 = smul.addr %s34, 8
          %s3815 = scalar_lea.hbm %s18, %s3814
          %s3817 = sshll.u32 %s3808, 4
          %s3818 = int_to_ptr.vmem [resolvable:$true] %s3817
          %s3819 = sshll.u32 %s3815, 4
          %s3820 = int_to_ptr.hbm [resolvable:$true] %s3819
          %3822 = dma.vmem_to_hbm [thread:$0]  %s3818, 128, %s3820, %s3805
        $region104: #{convnet_forward.1} parent=91 // pred_fallthru
          _
      $region92: #{convnet_forward.1} parent=5 // pred_fallthru
        _
      %p3823 = scmp.le.s32.totalorder 2, %s29
      // Predicated region
      $region105: #{convnet_forward.1} parent=5 // pred_check
        %p3824 = pneg %p3823
      $region106: #{convnet_forward.1} parent=5 // pred_check_branch
        %3826 = sbr.rel (%p3824) target = $region108
      $region107: #{convnet_forward.1} parent=5 // pred_region
        %s3827 = ssub.s32 %s29, 2
        // Predicated region
        $region109: #{convnet_forward.1} parent=107 // pred_check
          %p3828 = pneg %p441
        $region110: #{convnet_forward.1} parent=107 // pred_check_branch
          %3830 = sbr.rel (%p3828) target = $region112
        $region111: #{convnet_forward.1} parent=107 // pred_region
          %s3831 = sand.u32 %s426, 1
          %s3832 = scalar_lea.sflag [#allocation5], %s3831
          %s3833 = sand.u32 %s426, 1
          %s3834 = smul.addr %s3833, 8
          %s3835 = scalar_lea.vmem [#allocation8], %s3834
          %3837 = dma.done %s3832, 128
        $region112: #{convnet_forward.1} parent=107 // pred_fallthru
          _
      $region108: #{convnet_forward.1} parent=5 // pred_fallthru
        _
    $region6: #{convnet_forward.1} parent=1 // loop_footer
      %s33 = sadd.s32 1, %s29
    $region7: #{convnet_forward.1} parent=1 // loop_footer_branch
      %28 = sbr.rel target = $region3
    $region8: #{convnet_forward.1} parent=1 // loop_exit
      _
    %3838 = vsyncpa [#allocation4], 1
    %s3839 = scalar_lea.sflag [#allocation4], 1
    %3840 = vsyncpa %s3839, 1
    %3841 = vsyncpa [#allocation7], 1
    %3842 = vsyncpa [#allocation5], 1
    %s3843 = scalar_lea.sflag [#allocation5], 1
    %3844 = vsyncpa %s3843, 1

</llo_original>
